<compile_context>
chip_gen: v7x
topology: tpu7x:2x2x1
jax: 0.10.0
libtpu: 0.0.40
codegen_flags: <defaults>
</compile_context>

<pallas_src>
import jax
import jax.numpy as jnp
import numpy as np
from jax.experimental import pallas as pl
from jax.experimental.pallas import tpu as pltpu

HIDDEN_DIM = 768   # hard-coded in Encoder.__init__
EMBED_DIM = 200    # hard-coded in Encoder.__init__
RANK = 0.6         # hard-coded 'rank' in the 'C' branch
LANE = 128

# Padded widths for the fixed small CLS heads (lane-dense, 128-aligned).
E_PAD = 256     # fc   : 200  -> 256
P_PAD = 128     # fc2  : 13   -> 128
C1_PAD = 128    # fc_C1: 12   -> 128
C2_PAD = 128    # fc_C2: 95   -> 128
C3_PAD = 1536   # fc_C3: 1425 -> 1536
FCLS = E_PAD + P_PAD + C1_PAD + C2_PAD + C3_PAD      # 2176


def _round_up(x, m):
    return (x + m - 1) // m * m


def _pad2(a, rows, cols):
    return jnp.pad(a, ((0, rows - a.shape[0]), (0, cols - a.shape[1])))


def _vmem_limit_bytes():
    """~75% of physical VMEM: ~96 MiB on v5e/v6e, ~48 MiB on v7x."""
    cap = None
    try:
        cap = getattr(pltpu.get_tpu_info(), "vmem_capacity_bytes", None)
    except Exception:
        cap = None
    if not cap:
        cap = 64 * 1024 * 1024          # conservative default (v7x per-TC)
    return int(min(cap * 3 // 4, 100 * 1024 * 1024))


VMEM_LIMIT = _vmem_limit_bytes()


# --------------------------------------------------------------------------- #
# Stage 1a: CLS-token projection (fc | fc2 | fc_C1 | fc_C2 | fc_C3)            #
# --------------------------------------------------------------------------- #
def _stage1a_kernel(hc_ref, w_ref, b_ref, cls_ref):
    z = jnp.dot(hc_ref[...], w_ref[...],
                preferred_element_type=jnp.float32) + b_ref[...]
    cls_ref[...] = z.astype(cls_ref.dtype)


# --------------------------------------------------------------------------- #
# Stage 1b: all-token projection (fc1 | fc3) + running max over L              #
# --------------------------------------------------------------------------- #
def _make_stage1b_kernel(tl, l_true, l_pad):
    need_mask = l_pad > l_true

    def stage1b_kernel(h_ref, w_ref, b_ref, tok_ref, acc_ref):
        li = pl.program_id(1)

        @pl.when(li == 0)
        def _init():
            acc_ref[...] = jnp.full(acc_ref.shape, -jnp.inf, dtype=acc_ref.dtype)

        hb = h_ref[...]                                   # (TB, TL, H) bf16
        TB, TL, H = hb.shape
        # TL is a multiple of 8 and H a multiple of 128: this reshape does not
        # cross (8,128) tile boundaries (no relayout copy).
        z = (jnp.dot(hb.reshape(TB * TL, H), w_ref[...],
                     preferred_element_type=jnp.float32)
             + b_ref[...]).reshape(TB, TL, -1)
        if need_mask:                                     # static at trace time
            pos = li * tl + jax.lax.broadcasted_iota(jnp.int32, (1, TL, 1), 1)
            z = jnp.where(pos < l_true, z, -jnp.inf)
        acc_ref[...] = jnp.maximum(acc_ref[...], jnp.max(z, axis=1))

        @pl.when(li == pl.num_programs(1) - 1)
        def _finalize():
            tok_ref[...] = acc_ref[...].astype(tok_ref.dtype)

    return stage1b_kernel


# --------------------------------------------------------------------------- #
# Stage 2: one class-tile per grid step, single concatenated weight slab       #
# --------------------------------------------------------------------------- #
def _make_stage2_kernel(s_pad, ch_pad):
    o0 = E_PAD
    o1 = o0 + P_PAD
    o2 = o1 + C1_PAD
    o3 = o2 + C2_PAD
    o4 = o3 + C3_PAD
    o5 = o4 + s_pad
    o6 = o5 + ch_pad

    def stage2_kernel(feat_ref, w2_ref, out_ref):
        relu = lambda v: jnp.maximum(v, 0.0)
        dot = lambda a, b: jnp.dot(a, b, preferred_element_type=jnp.float32)

        # score0 + 'P' branch + 'c' branch (no cross-class coupling).
        main = (dot(feat_ref[:, 0:o0], w2_ref[0:o0, :])
                + relu(dot(feat_ref[:, o0:o1], w2_ref[o0:o1, :]))
                + relu(dot(feat_ref[:, o5:o6], w2_ref[o5:o6, :])))
        # 's' branch raw score (mean/mask mixing done in the epilogue).
        s1 = relu(dot(feat_ref[:, o4:o5], w2_ref[o4:o5, :]))
        # 'C' branch raw score; RANK / RANK**2 are pre-folded into the slab.
        s2 = (relu(dot(feat_ref[:, o1:o2], w2_ref[o1:o2, :]))
              + relu(dot(feat_ref[:, o2:o3], w2_ref[o2:o3, :]))
              + relu(dot(feat_ref[:, o3:o4], w2_ref[o3:o4, :])))
        out_ref[0] = main
        out_ref[1] = s1
        out_ref[2] = s2

    return stage2_kernel


# --------------------------------------------------------------------------- #
# Wrapper                                                                      #
# --------------------------------------------------------------------------- #
def encoder_head(h, prep, dims):
    B, L, H = h.shape
    s_pad, ch_pad = dims["S_PAD"], dims["CH_PAD"]
    ftok = dims["FTOK"]
    tile_c, c_pad, class_num = dims["TILE_C"], dims["C_PAD"], dims["CLASS_NUM"]
    fall = FCLS + ftok

    B_pad = _round_up(max(B, 16), 16)          # bf16 sublane packing
    TB = 8 if B_pad >= 16 else B_pad           # >=2 batch blocks -> megacore
    TL = min(128, _round_up(L, 8))
    L_pad = _round_up(L, TL)

    h_p = jnp.pad(h, ((0, B_pad - B), (0, L_pad - L), (0, 0))).astype(jnp.bfloat16)
    h_cls = h_p[:, 0, :]                       # (B_pad, H) bf16

    # ---- stage 1a: CLS projections -----------------------------------------
    ce1a = pl.CostEstimate(
        flops=2 * B_pad * H * FCLS, transcendentals=0,
        bytes_accessed=2 * (B_pad * H + H * FCLS + B_pad * FCLS))
    cls_feat = pl.pallas_call(
        _stage1a_kernel,
        out_shape=jax.ShapeDtypeStruct((B_pad, FCLS), jnp.bfloat16),
        in_specs=[pl.BlockSpec(memory_space=pltpu.MemorySpace.VMEM)] * 3,
        out_specs=pl.BlockSpec(memory_space=pltpu.MemorySpace.VMEM),
        compiler_params=pltpu.CompilerParams(vmem_limit_bytes=VMEM_LIMIT),
        cost_estimate=ce1a,
    )(h_cls, prep["w_cls"], prep["b_cls"])

    # ---- stage 1b: token projections + max over L (gridded, pipelined) -----
    ce1b = pl.CostEstimate(
        flops=2 * B_pad * L_pad * H * ftok, transcendentals=0,
        bytes_accessed=2 * B_pad * L_pad * H + 2 * H * ftok + 2 * B_pad * ftok)
    tok_feat = pl.pallas_call(
        _make_stage1b_kernel(TL, L, L_pad),
        out_shape=jax.ShapeDtypeStruct((B_pad, ftok), jnp.bfloat16),
        grid=(B_pad // TB, L_pad // TL),
        in_specs=[pl.BlockSpec((TB, TL, H), lambda b, l: (b, l, 0)),
                  pl.BlockSpec((H, ftok), lambda b, l: (0, 0)),
                  pl.BlockSpec((1, ftok), lambda b, l: (0, 0))],
        out_specs=pl.BlockSpec((TB, ftok), lambda b, l: (b, 0)),
        scratch_shapes=[pltpu.VMEM((TB, ftok), jnp.float32)],
        compiler_params=pltpu.CompilerParams(
            dimension_semantics=("parallel", "arbitrary"),
            vmem_limit_bytes=VMEM_LIMIT),
        cost_estimate=ce1b,
    )(h_p, prep["w_tok"], prep["b_tok"])

    # ---- stage 2: grid over class tiles, one weight slab stream -------------
    feat = jnp.concatenate([cls_feat, tok_feat], axis=1)   # (B_pad, FALL) bf16
    ce2 = pl.CostEstimate(
        flops=2 * B_pad * fall * c_pad, transcendentals=0,
        bytes_accessed=2 * fall * c_pad + 2 * B_pad * fall + 4 * 3 * B_pad * c_pad)
    out3 = pl.pallas_call(
        _make_stage2_kernel(s_pad, ch_pad),
        out_shape=jax.ShapeDtypeStruct((3, B_pad, c_pad), jnp.float32),
        grid=(c_pad // tile_c,),
        in_specs=[pl.BlockSpec((B_pad, fall), lambda j: (0, 0)),   # resident
                  pl.BlockSpec((fall, tile_c), lambda j: (0, j))], # streamed
        out_specs=pl.BlockSpec((3, B_pad, tile_c), lambda j: (0, 0, j)),
        compiler_params=pltpu.CompilerParams(
            dimension_semantics=("parallel",),       # shard class tiles (v7x)
            vmem_limit_bytes=VMEM_LIMIT),
        cost_estimate=ce2,
    )(feat, prep["w2"])

    # ---- tiny (B, class_num) epilogue: cross-tile means & mask mixing ------
    main = out3[0, :B, :class_num]
    s1 = out3[1, :B, :class_num]
    s2 = out3[2, :B, :class_num]
    msk_s, msk_c = prep["msk_s"], prep["msk_c"]
    mean_c = jnp.mean(s2, axis=1, keepdims=True)       # divide by TRUE class_num
    score2 = s2 * (1.0 - msk_c) + mean_c * msk_c
    score1 = s1 + jnp.mean(s1, axis=1, keepdims=True) * msk_s
    return main + score2 * 0.5 + score1


def encoder_stub(x, params):
    # TODO(synk): `self.encoder` is an externally-injected transformer (e.g. BERT);
    # it is not defined by this module, so a deterministic embedding+projection
    # stand-in produces `h` here. The attention mask matches torch.gt(x, 0).
    attention_mask = (x > 0).astype(jnp.float32)
    emb = params["emb_weight"][x]
    h = jnp.tanh(emb @ params["enc_proj_w"] + params["enc_proj_b"])
    return (h * attention_mask[:, :, None]).astype(jnp.float32)


def encoder_forward_test(x, params, prep, dims):
    """Encoder.forward(operation='test', mode='CPsc')."""
    h = encoder_stub(x, params)
    score = encoder_head(h, prep, dims)
    return h, score


# --------------------------------------------------------------------------- #
# Host-side weight preparation (pad / concat / fold RANK / cast to bf16)       #
# --------------------------------------------------------------------------- #
def prepare_params(params, class_num, sememe_num, chara_num):
    s_pad = _round_up(sememe_num, LANE)
    ch_pad = _round_up(chara_num, LANE)
    ftok = s_pad + ch_pad
    tile_c = min(1024, _round_up(class_num, LANE))
    c_pad = _round_up(class_num, tile_c)
    bf = lambda a: a.astype(jnp.bfloat16)

    # Stage-1a slab (CLS heads): [fc | fc2 | fc_C1 | fc_C2 | fc_C3]
    w_cls = jnp.concatenate([
        _pad2(params["fc_wT"], HIDDEN_DIM, E_PAD),
        _pad2(params["fc2_wT"], HIDDEN_DIM, P_PAD),
        _pad2(params["c1_wT"], HIDDEN_DIM, C1_PAD),
        _pad2(params["c2_wT"], HIDDEN_DIM, C2_PAD),
        _pad2(params["c3_wT"], HIDDEN_DIM, C3_PAD),
    ], axis=1)
    b_cls = jnp.concatenate([
        _pad2(params["fc_b"], 1, E_PAD),
        _pad2(params["fc2_b"], 1, P_PAD),
        _pad2(params["c1_b"], 1, C1_PAD),
        _pad2(params["c2_b"], 1, C2_PAD),
        _pad2(params["c3_b"], 1, C3_PAD),
    ], axis=1).astype(jnp.float32)

    # Stage-1b slab (all-token heads): [fc1 | fc3]
    w_tok = jnp.concatenate([
        _pad2(params["fc1_wT"], HIDDEN_DIM, s_pad),
        _pad2(params["fc3_wT"], HIDDEN_DIM, ch_pad),
    ], axis=1)
    b_tok = jnp.concatenate([
        _pad2(params["fc1_b"], 1, s_pad),
        _pad2(params["fc3_b"], 1, ch_pad),
    ], axis=1).astype(jnp.float32)

    # Stage-2 slab (rows = FCLS + FTOK): [embT | wP | wC1 | wC2*r | wC3*r^2 | ws | wc]
    embT = jnp.transpose(params["emb_weight"][:class_num])   # (EMBED_DIM, C)
    w2 = jnp.concatenate([
        _pad2(embT, E_PAD, c_pad),
        _pad2(params["wP_T"], P_PAD, c_pad),
        _pad2(params["wC1_T"], C1_PAD, c_pad),
        _pad2(params["wC2_T"] * RANK, C2_PAD, c_pad),            # rank**1 folded
        _pad2(params["wC3_T"] * (RANK * RANK), C3_PAD, c_pad),   # rank**2 folded
        _pad2(params["ws_T"], s_pad, c_pad),
        _pad2(params["wc_T"], ch_pad, c_pad),
    ], axis=0)

    prep = dict(
        w_cls=bf(w_cls), b_cls=b_cls,
        w_tok=bf(w_tok), b_tok=b_tok,
        w2=bf(w2),
        msk_s=params["msk_s"], msk_c=params["msk_c"],
    )
    dims = dict(S_PAD=s_pad, CH_PAD=ch_pad, FTOK=ftok,
                TILE_C=tile_c, C_PAD=c_pad, CLASS_NUM=class_num)
    return prep, dims


# --------------------------------------------------------------------------- #
# Pure-JAX reference (mirrors the PyTorch math on the same bf16 weights)       #
# --------------------------------------------------------------------------- #
def reference_head(h, prep, dims):
    relu = lambda v: jnp.maximum(v, 0.0)
    fdot = lambda a, b: jnp.dot(a, b, precision=jax.lax.Precision.HIGHEST)
    f32 = lambda a: a.astype(jnp.float32)
    B, L, H = h.shape
    C = dims["CLASS_NUM"]
    s_pad = dims["S_PAD"]

    hb = f32(h.astype(jnp.bfloat16))                       # kernel input rounding
    cls = f32((fdot(hb[:, 0, :], f32(prep["w_cls"]))
               + prep["b_cls"]).astype(jnp.bfloat16))      # bf16 hand-off
    ztok = (fdot(hb.reshape(B * L, H), f32(prep["w_tok"]))
            + prep["b_tok"]).reshape(B, L, -1)
    tok = f32(jnp.max(ztok, axis=1).astype(jnp.bfloat16))  # bf16 hand-off

    o0 = E_PAD
    o1 = o0 + P_PAD
    o2 = o1 + C1_PAD
    o3 = o2 + C2_PAD
    o4 = o3 + C3_PAD
    o5 = o4 + s_pad
    w2 = f32(prep["w2"])

    vd, score_pos = cls[:, :o0], cls[:, o0:o1]
    scC = [cls[:, o1:o2], cls[:, o2:o3], cls[:, o3:o4]]
    sem, chara = tok[:, :s_pad], tok[:, s_pad:]

    score = fdot(vd, w2[:o0])[:, :C]                                  # score0
    wC = [w2[o1:o2], w2[o2:o3], w2[o3:o4]]                            # rank pre-folded
    score2 = sum(relu(fdot(scC[i], wC[i]))[:, :C] for i in range(3))
    mean_c = jnp.mean(score2, axis=1, keepdims=True)
    score2 = score2 * (1.0 - prep["msk_c"]) + mean_c * prep["msk_c"]
    score = score + score2 / 2.0
    score = score + relu(fdot(score_pos, w2[o0:o1]))[:, :C]           # 'P'
    score1 = relu(fdot(sem, w2[o4:o5]))[:, :C]                        # 's'
    score1 = score1 + jnp.mean(score1, axis=1, keepdims=True) * prep["msk_s"]
    score = score + score1
    score = score + relu(fdot(chara, w2[o5:]))[:, :C]                 # 'c'
    return score


# --------------------------------------------------------------------------- #
# Parameter init (float32 "torch" weights, pre-transposed to (in, out))        #
# --------------------------------------------------------------------------- #
def init_params(key, vocab_size, class_num, sememe_num, chara_num):
    ks = iter(jax.random.split(key, 32))

    def nrm(shape, scale):
        return (scale * jax.random.normal(next(ks), shape)).astype(jnp.float32)

    emb_weight = nrm((vocab_size, EMBED_DIM), 0.1).at[0].set(0.0)   # padding_idx=0
    p = dict(
        emb_weight=emb_weight,
        enc_proj_w=nrm((EMBED_DIM, HIDDEN_DIM), 0.05),
        enc_proj_b=nrm((HIDDEN_DIM,), 0.01),
        fc_wT=nrm((HIDDEN_DIM, EMBED_DIM), 0.02), fc_b=nrm((1, EMBED_DIM), 0.02),
        fc1_wT=nrm((HIDDEN_DIM, sememe_num), 0.02), fc1_b=nrm((1, sememe_num), 0.02),
        fc2_wT=nrm((HIDDEN_DIM, 13), 0.02), fc2_b=nrm((1, 13), 0.02),
        fc3_wT=nrm((HIDDEN_DIM, chara_num), 0.02), fc3_b=nrm((1, chara_num), 0.02),
        c1_wT=nrm((HIDDEN_DIM, 12), 0.02), c1_b=nrm((1, 12), 0.02),
        c2_wT=nrm((HIDDEN_DIM, 95), 0.02), c2_b=nrm((1, 95), 0.02),
        c3_wT=nrm((HIDDEN_DIM, 1425), 0.02), c3_b=nrm((1, 1425), 0.02),
        wP_T=nrm((13, class_num), 0.1),
        ws_T=nrm((sememe_num, class_num), 0.1),
        wc_T=nrm((chara_num, class_num), 0.1),
        wC1_T=nrm((12, class_num), 0.1),
        wC2_T=nrm((95, class_num), 0.1),
        wC3_T=nrm((1425, class_num), 0.1),
    )
    p["msk_s"] = (jax.random.uniform(next(ks), (1, class_num)) < 0.3).astype(jnp.float32)
    p["msk_c"] = (jax.random.uniform(next(ks), (1, class_num)) < 0.3).astype(jnp.float32)
    return p


if __name__ == "__main__":
    B, L = 2, 8
    vocab_size, class_num, sememe_num, chara_num = 64, 32, 24, 16

    key = jax.random.PRNGKey(0)
    k_x, k_p = jax.random.split(key)
    x = jax.random.randint(k_x, (B, L), 0, vocab_size, dtype=jnp.int32)
    x = x.at[:, -2:].set(0)            # trailing padding tokens (padding_idx=0)
    params = init_params(k_p, vocab_size, class_num, sememe_num, chara_num)
    prep, dims = prepare_params(params, class_num, sememe_num, chara_num)

    h, score = encoder_forward_test(x, params, prep, dims)
    score = jax.block_until_ready(score)

    ref = reference_head(h, prep, dims)
    np.testing.assert_allclose(np.asarray(score), np.asarray(ref), rtol=2e-3, atol=2e-3)
    print("KERNEL_OK")
</pallas_src>

<mosaic_0001>
module attributes {stable_mosaic.version = 11 : i64} {
  func.func @_stage1a_kernel(%arg0: memref<16x768xbf16, #tpu.memory_space<vmem>>, %arg1: memref<768x2176xbf16, #tpu.memory_space<vmem>>, %arg2: memref<1x2176xf32, #tpu.memory_space<vmem>>, %arg3: memref<16x2176xbf16, #tpu.memory_space<vmem>>) attributes {dimension_semantics = [], scalar_prefetch = 0 : i64, scratch_operands = 0 : i64, tpu.core_type = #tpu.core_type<tc>} {
    %c0 = arith.constant 0 : index
    %c0_0 = arith.constant 0 : index
    %0 = vector.load %arg0[%c0, %c0_0] : memref<16x768xbf16, #tpu.memory_space<vmem>>, vector<16x768xbf16>
    %c0_1 = arith.constant 0 : index
    %c0_2 = arith.constant 0 : index
    %1 = vector.load %arg1[%c0_1, %c0_2] : memref<768x2176xbf16, #tpu.memory_space<vmem>>, vector<768x2176xbf16>
    %cst = arith.constant dense<0.000000e+00> : vector<16x2176xf32>
    %2 = tpu.matmul %0, %1, %cst {dimension_numbers = #tpu.dot_dimension_numbers<[1], [0], [0], [1], [0, 0, 1, 1], [], []>} : vector<16x768xbf16>, vector<768x2176xbf16>, vector<16x2176xf32> -> vector<16x2176xf32>
    %c0_3 = arith.constant 0 : index
    %c0_4 = arith.constant 0 : index
    %3 = vector.load %arg2[%c0_3, %c0_4] : memref<1x2176xf32, #tpu.memory_space<vmem>>, vector<1x2176xf32>
    %4 = vector.broadcast %3 : vector<1x2176xf32> to vector<16x2176xf32>
    %5 = arith.addf %2, %4 : vector<16x2176xf32>
    %6 = arith.truncf %5 : vector<16x2176xf32> to vector<16x2176xbf16>
    %c0_5 = arith.constant 0 : index
    %c0_6 = arith.constant 0 : index
    %7 = vector.load %arg3[%c0_5, %c0_6] : memref<16x2176xbf16, #tpu.memory_space<vmem>>, vector<16x2176xbf16>
    tpu.vector_store %arg3[%c0_5, %c0_6], %6 {strides = array<i32>} : memref<16x2176xbf16, #tpu.memory_space<vmem>>, vector<16x2176xbf16>,
    return
  }
}

</mosaic_0001>

<llo_original>
// kernel: tpu_custom_call.1
$region0: #{tpu_custom_call.1}
  #allocation0 [shape = 'u32[]', space=smem, size = 0x4, offset = 0x4, fixed_abs, tag = 'smem constant byte address 0x4 - core index']
  #allocation1 [shape = 'u32[144,128]{1,0:T(1,128)}', space=vmem, size = 0x12000, scoped, tag = 'internal scratch']
  %s0 = inlined_call_operand.hbm [shape: bf16[16,768], index: 0, kind: input, shape index: {}]
  %s1 = inlined_call_operand.hbm [shape: bf16[768,2176], index: 1, kind: input, shape index: {}]
  %s2 = inlined_call_operand.hbm [shape: f32[1,2176], index: 2, kind: input, shape index: {}]
  %s3 = inlined_call_operand.hbm [shape: bf16[16,2176], index: 3, kind: output, shape index: {}]
  %s4 = sld [smem:[#allocation0]]
  $region34: #{tpu_custom_call.1} parent=0
    _
  %s6 = ssub.s32 1, %s4
  %s7 = scalar_select 0, %s6, %s4
  $region1: #{tpu_custom_call.1} parent=0
    #allocation2 [shape = 'u8[24576]{0}', space=vmem, size = 0x6000, scoped, tag = 'input window, operand 0, single buffered']
    #allocation3 [shape = 's32[1]{0}', space=sflag, size = 0x4, scoped, tag = 'scoped memory for tpu_custom_call.1']
    #allocation4 [shape = 's32[1]{0}', space=sflag, size = 0x4, scoped, tag = 'scoped memory for tpu_custom_call.1']
    #allocation5 [shape = 'u8[3342336]{0}', space=vmem, size = 0x330000, scoped, tag = 'input window, operand 1, single buffered']
    #allocation6 [shape = 's32[1]{0}', space=sflag, size = 0x4, scoped, tag = 'scoped memory for tpu_custom_call.1']
    #allocation7 [shape = 'u8[8704]{0}', space=vmem, size = 0x2400, scoped, tag = 'input window, operand 2, single buffered']
    #allocation8 [shape = 'u8[69632]{0}', space=vmem, size = 0x11000, scoped, tag = 'output window, operand 0, single buffered']
    %8 = vsyncpa [#allocation3], 0
    %9 = vsyncpa [#allocation6], 0
    %10 = vsyncpa [#allocation4], 0
    // Predicated region
    $region2: #{tpu_custom_call.1} parent=1 // pred_check
      _
    $region3: #{tpu_custom_call.1} parent=1 // pred_check_branch
      %12 = sbr.rel (0) target = $region5
    $region4: #{tpu_custom_call.1} parent=1 // pred_region
      %s14 = ssub.s32 768, 768
      %15 = vsyncadd [#allocation3], %s14
      %s16 = sshll.u32 [#allocation2], 4
      %s17 = int_to_ptr.vmem [resolvable:$true] %s16
      %22 = dma.hbm_to_vmem [thread:$0]  %s0, 768, %s17, [#allocation3], 384, 384, 24
    $region5: #{tpu_custom_call.1} parent=1 // pred_fallthru
      _
    // Predicated region
    $region6: #{tpu_custom_call.1} parent=1 // pred_check
      _
    $region7: #{tpu_custom_call.1} parent=1 // pred_check_branch
      %24 = sbr.rel (0) target = $region9
    $region8: #{tpu_custom_call.1} parent=1 // pred_region
      %s26 = ssub.s32 104448, 104448
      %27 = vsyncadd [#allocation6], %s26
      %s28 = sshll.u32 [#allocation5], 4
      %s29 = int_to_ptr.vmem [resolvable:$true] %s28
      %34 = dma.hbm_to_vmem [thread:$0]  %s1, 104448, %s29, [#allocation6], 1088, 1088, 68
    $region9: #{tpu_custom_call.1} parent=1 // pred_fallthru
      _
    // Predicated region
    $region10: #{tpu_custom_call.1} parent=1 // pred_check
      _
    $region11: #{tpu_custom_call.1} parent=1 // pred_check_branch
      %36 = sbr.rel (0) target = $region13
    $region12: #{tpu_custom_call.1} parent=1 // pred_region
      %s38 = ssub.s32 272, 272
      %39 = vsyncadd [#allocation6], %s38
      %s41 = sshll.u32 [#allocation7], 4
      %s42 = int_to_ptr.vmem [resolvable:$true] %s41
      %44 = dma.hbm_to_vmem [thread:$0]  %s2, 272, %s42, [#allocation6]
    $region13: #{tpu_custom_call.1} parent=1 // pred_fallthru
      _
    // Predicated region
    $region14: #{tpu_custom_call.1} parent=1 // pred_check
      _
    $region15: #{tpu_custom_call.1} parent=1 // pred_check_branch
      %46 = sbr.rel (0) target = $region17
    $region16: #{tpu_custom_call.1} parent=1 // pred_region
      %47 = dma.done [#allocation3], 768
    $region17: #{tpu_custom_call.1} parent=1 // pred_fallthru
      _
    // Predicated region
    $region18: #{tpu_custom_call.1} parent=1 // pred_check
      _
    $region19: #{tpu_custom_call.1} parent=1 // pred_check_branch
      %49 = sbr.rel (0) target = $region21
    $region20: #{tpu_custom_call.1} parent=1 // pred_region
      %50 = dma.done [#allocation6], 104448
    $region21: #{tpu_custom_call.1} parent=1 // pred_fallthru
      _
    // Predicated region
    $region22: #{tpu_custom_call.1} parent=1 // pred_check
      _
    $region23: #{tpu_custom_call.1} parent=1 // pred_check_branch
      %52 = sbr.rel (0) target = $region25
    $region24: #{tpu_custom_call.1} parent=1 // pred_region
      %53 = dma.done [#allocation6], 272
    $region25: #{tpu_custom_call.1} parent=1 // pred_fallthru
      _
    %v55 = vld [vmem:[#allocation2] sm:$0xff]
    %v56 = vld [vmem:[#allocation2 + $0x8] sm:$0xff]
    %v57 = vld [vmem:[#allocation2 + $0x10] sm:$0xff]
    %v58 = vld [vmem:[#allocation2 + $0x18] sm:$0xff]
    %v59 = vld [vmem:[#allocation2 + $0x20] sm:$0xff]
    %v60 = vld [vmem:[#allocation2 + $0x28] sm:$0xff]
    %v61 = vld [vmem:[#allocation5] sm:$0xff]
    %v62 = vld [vmem:[#allocation5 + $0x8] sm:$0xff]
    %v63 = vld [vmem:[#allocation5 + $0x10] sm:$0xff]
    %v64 = vld [vmem:[#allocation5 + $0x18] sm:$0xff]
    %v65 = vld [vmem:[#allocation5 + $0x20] sm:$0xff]
    %v66 = vld [vmem:[#allocation5 + $0x28] sm:$0xff]
    %v67 = vld [vmem:[#allocation5 + $0x30] sm:$0xff]
    %v68 = vld [vmem:[#allocation5 + $0x38] sm:$0xff]
    %v69 = vld [vmem:[#allocation5 + $0x40] sm:$0xf]
    %v70 = vld [vmem:[#allocation5 + $0x44] sm:$0xff]
    %v71 = vld [vmem:[#allocation5 + $0x4c] sm:$0xff]
    %v72 = vld [vmem:[#allocation5 + $0x54] sm:$0xff]
    %v73 = vld [vmem:[#allocation5 + $0x5c] sm:$0xff]
    %v74 = vld [vmem:[#allocation5 + $0x64] sm:$0xff]
    %v75 = vld [vmem:[#allocation5 + $0x6c] sm:$0xff]
    %v76 = vld [vmem:[#allocation5 + $0x74] sm:$0xff]
    %v77 = vld [vmem:[#allocation5 + $0x7c] sm:$0xff]
    %v78 = vld [vmem:[#allocation5 + $0x84] sm:$0xf]
    %v79 = vld [vmem:[#allocation5 + $0x88] sm:$0xff]
    %v80 = vld [vmem:[#allocation5 + $0x90] sm:$0xff]
    %v81 = vld [vmem:[#allocation5 + $0x98] sm:$0xff]
    %v82 = vld [vmem:[#allocation5 + $0xa0] sm:$0xff]
    %v83 = vld [vmem:[#allocation5 + $0xa8] sm:$0xff]
    %v84 = vld [vmem:[#allocation5 + $0xb0] sm:$0xff]
    %v85 = vld [vmem:[#allocation5 + $0xb8] sm:$0xff]
    %v86 = vld [vmem:[#allocation5 + $0xc0] sm:$0xff]
    %v87 = vld [vmem:[#allocation5 + $0xc8] sm:$0xf]
    %v88 = vld [vmem:[#allocation5 + $0xcc] sm:$0xff]
    %v89 = vld [vmem:[#allocation5 + $0xd4] sm:$0xff]
    %v90 = vld [vmem:[#allocation5 + $0xdc] sm:$0xff]
    %v91 = vld [vmem:[#allocation5 + $0xe4] sm:$0xff]
    %v92 = vld [vmem:[#allocation5 + $0xec] sm:$0xff]
    %v93 = vld [vmem:[#allocation5 + $0xf4] sm:$0xff]
    %v94 = vld [vmem:[#allocation5 + $0xfc] sm:$0xff]
    %v95 = vld [vmem:[#allocation5 + $0x104] sm:$0xff]
    %v96 = vld [vmem:[#allocation5 + $0x10c] sm:$0xf]
    %v97 = vld [vmem:[#allocation5 + $0x110] sm:$0xff]
    %v98 = vld [vmem:[#allocation5 + $0x118] sm:$0xff]
    %v99 = vld [vmem:[#allocation5 + $0x120] sm:$0xff]
    %v100 = vld [vmem:[#allocation5 + $0x128] sm:$0xff]
    %v101 = vld [vmem:[#allocation5 + $0x130] sm:$0xff]
    %v102 = vld [vmem:[#allocation5 + $0x138] sm:$0xff]
    %v103 = vld [vmem:[#allocation5 + $0x140] sm:$0xff]
    %v104 = vld [vmem:[#allocation5 + $0x148] sm:$0xff]
    %v105 = vld [vmem:[#allocation5 + $0x150] sm:$0xf]
    %v106 = vld [vmem:[#allocation5 + $0x154] sm:$0xff]
    %v107 = vld [vmem:[#allocation5 + $0x15c] sm:$0xff]
    %v108 = vld [vmem:[#allocation5 + $0x164] sm:$0xff]
    %v109 = vld [vmem:[#allocation5 + $0x16c] sm:$0xff]
    %v110 = vld [vmem:[#allocation5 + $0x174] sm:$0xff]
    %v111 = vld [vmem:[#allocation5 + $0x17c] sm:$0xff]
    %v112 = vld [vmem:[#allocation5 + $0x184] sm:$0xff]
    %v113 = vld [vmem:[#allocation5 + $0x18c] sm:$0xff]
    %v114 = vld [vmem:[#allocation5 + $0x194] sm:$0xf]
    %v115 = vld [vmem:[#allocation5 + $0x198] sm:$0xff]
    %v116 = vld [vmem:[#allocation5 + $0x1a0] sm:$0xff]
    %v117 = vld [vmem:[#allocation5 + $0x1a8] sm:$0xff]
    %v118 = vld [vmem:[#allocation5 + $0x1b0] sm:$0xff]
    %v119 = vld [vmem:[#allocation5 + $0x1b8] sm:$0xff]
    %v120 = vld [vmem:[#allocation5 + $0x1c0] sm:$0xff]
    %v121 = vld [vmem:[#allocation5 + $0x1c8] sm:$0xff]
    %v122 = vld [vmem:[#allocation5 + $0x1d0] sm:$0xff]
    %v123 = vld [vmem:[#allocation5 + $0x1d8] sm:$0xf]
    %v124 = vld [vmem:[#allocation5 + $0x1dc] sm:$0xff]
    %v125 = vld [vmem:[#allocation5 + $0x1e4] sm:$0xff]
    %v126 = vld [vmem:[#allocation5 + $0x1ec] sm:$0xff]
    %v127 = vld [vmem:[#allocation5 + $0x1f4] sm:$0xff]
    %v128 = vld [vmem:[#allocation5 + $0x1fc] sm:$0xff]
    %v129 = vld [vmem:[#allocation5 + $0x204] sm:$0xff]
    %v130 = vld [vmem:[#allocation5 + $0x20c] sm:$0xff]
    %v131 = vld [vmem:[#allocation5 + $0x214] sm:$0xff]
    %v132 = vld [vmem:[#allocation5 + $0x21c] sm:$0xf]
    %v133 = vld [vmem:[#allocation5 + $0x220] sm:$0xff]
    %v134 = vld [vmem:[#allocation5 + $0x228] sm:$0xff]
    %v135 = vld [vmem:[#allocation5 + $0x230] sm:$0xff]
    %v136 = vld [vmem:[#allocation5 + $0x238] sm:$0xff]
    %v137 = vld [vmem:[#allocation5 + $0x240] sm:$0xff]
    %v138 = vld [vmem:[#allocation5 + $0x248] sm:$0xff]
    %v139 = vld [vmem:[#allocation5 + $0x250] sm:$0xff]
    %v140 = vld [vmem:[#allocation5 + $0x258] sm:$0xff]
    %v141 = vld [vmem:[#allocation5 + $0x260] sm:$0xf]
    %v142 = vld [vmem:[#allocation5 + $0x264] sm:$0xff]
    %v143 = vld [vmem:[#allocation5 + $0x26c] sm:$0xff]
    %v144 = vld [vmem:[#allocation5 + $0x274] sm:$0xff]
    %v145 = vld [vmem:[#allocation5 + $0x27c] sm:$0xff]
    %v146 = vld [vmem:[#allocation5 + $0x284] sm:$0xff]
    %v147 = vld [vmem:[#allocation5 + $0x28c] sm:$0xff]
    %v148 = vld [vmem:[#allocation5 + $0x294] sm:$0xff]
    %v149 = vld [vmem:[#allocation5 + $0x29c] sm:$0xff]
    %v150 = vld [vmem:[#allocation5 + $0x2a4] sm:$0xf]
    %v151 = vld [vmem:[#allocation5 + $0x2a8] sm:$0xff]
    %v152 = vld [vmem:[#allocation5 + $0x2b0] sm:$0xff]
    %v153 = vld [vmem:[#allocation5 + $0x2b8] sm:$0xff]
    %v154 = vld [vmem:[#allocation5 + $0x2c0] sm:$0xff]
    %v155 = vld [vmem:[#allocation5 + $0x2c8] sm:$0xff]
    %v156 = vld [vmem:[#allocation5 + $0x2d0] sm:$0xff]
    %v157 = vld [vmem:[#allocation5 + $0x2d8] sm:$0xff]
    %v158 = vld [vmem:[#allocation5 + $0x2e0] sm:$0xff]
    %v159 = vld [vmem:[#allocation5 + $0x2e8] sm:$0xf]
    %v160 = vld [vmem:[#allocation5 + $0x2ec] sm:$0xff]
    %v161 = vld [vmem:[#allocation5 + $0x2f4] sm:$0xff]
    %v162 = vld [vmem:[#allocation5 + $0x2fc] sm:$0xff]
    %v163 = vld [vmem:[#allocation5 + $0x304] sm:$0xff]
    %v164 = vld [vmem:[#allocation5 + $0x30c] sm:$0xff]
    %v165 = vld [vmem:[#allocation5 + $0x314] sm:$0xff]
    %v166 = vld [vmem:[#allocation5 + $0x31c] sm:$0xff]
    %v167 = vld [vmem:[#allocation5 + $0x324] sm:$0xff]
    %v168 = vld [vmem:[#allocation5 + $0x32c] sm:$0xf]
    %v169 = vld [vmem:[#allocation5 + $0x330] sm:$0xff]
    %v170 = vld [vmem:[#allocation5 + $0x338] sm:$0xff]
    %v171 = vld [vmem:[#allocation5 + $0x340] sm:$0xff]
    %v172 = vld [vmem:[#allocation5 + $0x348] sm:$0xff]
    %v173 = vld [vmem:[#allocation5 + $0x350] sm:$0xff]
    %v174 = vld [vmem:[#allocation5 + $0x358] sm:$0xff]
    %v175 = vld [vmem:[#allocation5 + $0x360] sm:$0xff]
    %v176 = vld [vmem:[#allocation5 + $0x368] sm:$0xff]
    %v177 = vld [vmem:[#allocation5 + $0x370] sm:$0xf]
    %v178 = vld [vmem:[#allocation5 + $0x374] sm:$0xff]
    %v179 = vld [vmem:[#allocation5 + $0x37c] sm:$0xff]
    %v180 = vld [vmem:[#allocation5 + $0x384] sm:$0xff]
    %v181 = vld [vmem:[#allocation5 + $0x38c] sm:$0xff]
    %v182 = vld [vmem:[#allocation5 + $0x394] sm:$0xff]
    %v183 = vld [vmem:[#allocation5 + $0x39c] sm:$0xff]
    %v184 = vld [vmem:[#allocation5 + $0x3a4] sm:$0xff]
    %v185 = vld [vmem:[#allocation5 + $0x3ac] sm:$0xff]
    %v186 = vld [vmem:[#allocation5 + $0x3b4] sm:$0xf]
    %v187 = vld [vmem:[#allocation5 + $0x3b8] sm:$0xff]
    %v188 = vld [vmem:[#allocation5 + $0x3c0] sm:$0xff]
    %v189 = vld [vmem:[#allocation5 + $0x3c8] sm:$0xff]
    %v190 = vld [vmem:[#allocation5 + $0x3d0] sm:$0xff]
    %v191 = vld [vmem:[#allocation5 + $0x3d8] sm:$0xff]
    %v192 = vld [vmem:[#allocation5 + $0x3e0] sm:$0xff]
    %v193 = vld [vmem:[#allocation5 + $0x3e8] sm:$0xff]
    %v194 = vld [vmem:[#allocation5 + $0x3f0] sm:$0xff]
    %v195 = vld [vmem:[#allocation5 + $0x3f8] sm:$0xf]
    %v196 = vld [vmem:[#allocation5 + $0x3fc] sm:$0xff]
    %v197 = vld [vmem:[#allocation5 + $0x404] sm:$0xff]
    %v198 = vld [vmem:[#allocation5 + $0x40c] sm:$0xff]
    %v199 = vld [vmem:[#allocation5 + $0x414] sm:$0xff]
    %v200 = vld [vmem:[#allocation5 + $0x41c] sm:$0xff]
    %v201 = vld [vmem:[#allocation5 + $0x424] sm:$0xff]
    %v202 = vld [vmem:[#allocation5 + $0x42c] sm:$0xff]
    %v203 = vld [vmem:[#allocation5 + $0x434] sm:$0xff]
    %v204 = vld [vmem:[#allocation5 + $0x43c] sm:$0xf]
    %v205 = vld [vmem:[#allocation5 + $0x440] sm:$0xff]
    %v206 = vld [vmem:[#allocation5 + $0x448] sm:$0xff]
    %v207 = vld [vmem:[#allocation5 + $0x450] sm:$0xff]
    %v208 = vld [vmem:[#allocation5 + $0x458] sm:$0xff]
    %v209 = vld [vmem:[#allocation5 + $0x460] sm:$0xff]
    %v210 = vld [vmem:[#allocation5 + $0x468] sm:$0xff]
    %v211 = vld [vmem:[#allocation5 + $0x470] sm:$0xff]
    %v212 = vld [vmem:[#allocation5 + $0x478] sm:$0xff]
    %v213 = vld [vmem:[#allocation5 + $0x480] sm:$0xf]
    %v214 = vld [vmem:[#allocation5 + $0x484] sm:$0xff]
    %v215 = vld [vmem:[#allocation5 + $0x48c] sm:$0xff]
    %v216 = vld [vmem:[#allocation5 + $0x494] sm:$0xff]
    %v217 = vld [vmem:[#allocation5 + $0x49c] sm:$0xff]
    %v218 = vld [vmem:[#allocation5 + $0x4a4] sm:$0xff]
    %v219 = vld [vmem:[#allocation5 + $0x4ac] sm:$0xff]
    %v220 = vld [vmem:[#allocation5 + $0x4b4] sm:$0xff]
    %v221 = vld [vmem:[#allocation5 + $0x4bc] sm:$0xff]
    %v222 = vld [vmem:[#allocation5 + $0x4c4] sm:$0xf]
    %v223 = vld [vmem:[#allocation5 + $0x4c8] sm:$0xff]
    %v224 = vld [vmem:[#allocation5 + $0x4d0] sm:$0xff]
    %v225 = vld [vmem:[#allocation5 + $0x4d8] sm:$0xff]
    %v226 = vld [vmem:[#allocation5 + $0x4e0] sm:$0xff]
    %v227 = vld [vmem:[#allocation5 + $0x4e8] sm:$0xff]
    %v228 = vld [vmem:[#allocation5 + $0x4f0] sm:$0xff]
    %v229 = vld [vmem:[#allocation5 + $0x4f8] sm:$0xff]
    %v230 = vld [vmem:[#allocation5 + $0x500] sm:$0xff]
    %v231 = vld [vmem:[#allocation5 + $0x508] sm:$0xf]
    %v232 = vld [vmem:[#allocation5 + $0x50c] sm:$0xff]
    %v233 = vld [vmem:[#allocation5 + $0x514] sm:$0xff]
    %v234 = vld [vmem:[#allocation5 + $0x51c] sm:$0xff]
    %v235 = vld [vmem:[#allocation5 + $0x524] sm:$0xff]
    %v236 = vld [vmem:[#allocation5 + $0x52c] sm:$0xff]
    %v237 = vld [vmem:[#allocation5 + $0x534] sm:$0xff]
    %v238 = vld [vmem:[#allocation5 + $0x53c] sm:$0xff]
    %v239 = vld [vmem:[#allocation5 + $0x544] sm:$0xff]
    %v240 = vld [vmem:[#allocation5 + $0x54c] sm:$0xf]
    %v241 = vld [vmem:[#allocation5 + $0x550] sm:$0xff]
    %v242 = vld [vmem:[#allocation5 + $0x558] sm:$0xff]
    %v243 = vld [vmem:[#allocation5 + $0x560] sm:$0xff]
    %v244 = vld [vmem:[#allocation5 + $0x568] sm:$0xff]
    %v245 = vld [vmem:[#allocation5 + $0x570] sm:$0xff]
    %v246 = vld [vmem:[#allocation5 + $0x578] sm:$0xff]
    %v247 = vld [vmem:[#allocation5 + $0x580] sm:$0xff]
    %v248 = vld [vmem:[#allocation5 + $0x588] sm:$0xff]
    %v249 = vld [vmem:[#allocation5 + $0x590] sm:$0xf]
    %v250 = vld [vmem:[#allocation5 + $0x594] sm:$0xff]
    %v251 = vld [vmem:[#allocation5 + $0x59c] sm:$0xff]
    %v252 = vld [vmem:[#allocation5 + $0x5a4] sm:$0xff]
    %v253 = vld [vmem:[#allocation5 + $0x5ac] sm:$0xff]
    %v254 = vld [vmem:[#allocation5 + $0x5b4] sm:$0xff]
    %v255 = vld [vmem:[#allocation5 + $0x5bc] sm:$0xff]
    %v256 = vld [vmem:[#allocation5 + $0x5c4] sm:$0xff]
    %v257 = vld [vmem:[#allocation5 + $0x5cc] sm:$0xff]
    %v258 = vld [vmem:[#allocation5 + $0x5d4] sm:$0xf]
    %v259 = vld [vmem:[#allocation5 + $0x5d8] sm:$0xff]
    %v260 = vld [vmem:[#allocation5 + $0x5e0] sm:$0xff]
    %v261 = vld [vmem:[#allocation5 + $0x5e8] sm:$0xff]
    %v262 = vld [vmem:[#allocation5 + $0x5f0] sm:$0xff]
    %v263 = vld [vmem:[#allocation5 + $0x5f8] sm:$0xff]
    %v264 = vld [vmem:[#allocation5 + $0x600] sm:$0xff]
    %v265 = vld [vmem:[#allocation5 + $0x608] sm:$0xff]
    %v266 = vld [vmem:[#allocation5 + $0x610] sm:$0xff]
    %v267 = vld [vmem:[#allocation5 + $0x618] sm:$0xf]
    %v268 = vld [vmem:[#allocation5 + $0x61c] sm:$0xff]
    %v269 = vld [vmem:[#allocation5 + $0x624] sm:$0xff]
    %v270 = vld [vmem:[#allocation5 + $0x62c] sm:$0xff]
    %v271 = vld [vmem:[#allocation5 + $0x634] sm:$0xff]
    %v272 = vld [vmem:[#allocation5 + $0x63c] sm:$0xff]
    %v273 = vld [vmem:[#allocation5 + $0x644] sm:$0xff]
    %v274 = vld [vmem:[#allocation5 + $0x64c] sm:$0xff]
    %v275 = vld [vmem:[#allocation5 + $0x654] sm:$0xff]
    %v276 = vld [vmem:[#allocation5 + $0x65c] sm:$0xf]
    %v277 = vld [vmem:[#allocation5 + $0x660] sm:$0xff]
    %v278 = vld [vmem:[#allocation5 + $0x668] sm:$0xff]
    %v279 = vld [vmem:[#allocation5 + $0x670] sm:$0xff]
    %v280 = vld [vmem:[#allocation5 + $0x678] sm:$0xff]
    %v281 = vld [vmem:[#allocation5 + $0x680] sm:$0xff]
    %v282 = vld [vmem:[#allocation5 + $0x688] sm:$0xff]
    %v283 = vld [vmem:[#allocation5 + $0x690] sm:$0xff]
    %v284 = vld [vmem:[#allocation5 + $0x698] sm:$0xff]
    %v285 = vld [vmem:[#allocation5 + $0x6a0] sm:$0xf]
    %v286 = vld [vmem:[#allocation5 + $0x6a4] sm:$0xff]
    %v287 = vld [vmem:[#allocation5 + $0x6ac] sm:$0xff]
    %v288 = vld [vmem:[#allocation5 + $0x6b4] sm:$0xff]
    %v289 = vld [vmem:[#allocation5 + $0x6bc] sm:$0xff]
    %v290 = vld [vmem:[#allocation5 + $0x6c4] sm:$0xff]
    %v291 = vld [vmem:[#allocation5 + $0x6cc] sm:$0xff]
    %v292 = vld [vmem:[#allocation5 + $0x6d4] sm:$0xff]
    %v293 = vld [vmem:[#allocation5 + $0x6dc] sm:$0xff]
    %v294 = vld [vmem:[#allocation5 + $0x6e4] sm:$0xf]
    %v295 = vld [vmem:[#allocation5 + $0x6e8] sm:$0xff]
    %v296 = vld [vmem:[#allocation5 + $0x6f0] sm:$0xff]
    %v297 = vld [vmem:[#allocation5 + $0x6f8] sm:$0xff]
    %v298 = vld [vmem:[#allocation5 + $0x700] sm:$0xff]
    %v299 = vld [vmem:[#allocation5 + $0x708] sm:$0xff]
    %v300 = vld [vmem:[#allocation5 + $0x710] sm:$0xff]
    %v301 = vld [vmem:[#allocation5 + $0x718] sm:$0xff]
    %v302 = vld [vmem:[#allocation5 + $0x720] sm:$0xff]
    %v303 = vld [vmem:[#allocation5 + $0x728] sm:$0xf]
    %v304 = vld [vmem:[#allocation5 + $0x72c] sm:$0xff]
    %v305 = vld [vmem:[#allocation5 + $0x734] sm:$0xff]
    %v306 = vld [vmem:[#allocation5 + $0x73c] sm:$0xff]
    %v307 = vld [vmem:[#allocation5 + $0x744] sm:$0xff]
    %v308 = vld [vmem:[#allocation5 + $0x74c] sm:$0xff]
    %v309 = vld [vmem:[#allocation5 + $0x754] sm:$0xff]
    %v310 = vld [vmem:[#allocation5 + $0x75c] sm:$0xff]
    %v311 = vld [vmem:[#allocation5 + $0x764] sm:$0xff]
    %v312 = vld [vmem:[#allocation5 + $0x76c] sm:$0xf]
    %v313 = vld [vmem:[#allocation5 + $0x770] sm:$0xff]
    %v314 = vld [vmem:[#allocation5 + $0x778] sm:$0xff]
    %v315 = vld [vmem:[#allocation5 + $0x780] sm:$0xff]
    %v316 = vld [vmem:[#allocation5 + $0x788] sm:$0xff]
    %v317 = vld [vmem:[#allocation5 + $0x790] sm:$0xff]
    %v318 = vld [vmem:[#allocation5 + $0x798] sm:$0xff]
    %v319 = vld [vmem:[#allocation5 + $0x7a0] sm:$0xff]
    %v320 = vld [vmem:[#allocation5 + $0x7a8] sm:$0xff]
    %v321 = vld [vmem:[#allocation5 + $0x7b0] sm:$0xf]
    %v322 = vld [vmem:[#allocation5 + $0x7b4] sm:$0xff]
    %v323 = vld [vmem:[#allocation5 + $0x7bc] sm:$0xff]
    %v324 = vld [vmem:[#allocation5 + $0x7c4] sm:$0xff]
    %v325 = vld [vmem:[#allocation5 + $0x7cc] sm:$0xff]
    %v326 = vld [vmem:[#allocation5 + $0x7d4] sm:$0xff]
    %v327 = vld [vmem:[#allocation5 + $0x7dc] sm:$0xff]
    %v328 = vld [vmem:[#allocation5 + $0x7e4] sm:$0xff]
    %v329 = vld [vmem:[#allocation5 + $0x7ec] sm:$0xff]
    %v330 = vld [vmem:[#allocation5 + $0x7f4] sm:$0xf]
    %v331 = vld [vmem:[#allocation5 + $0x7f8] sm:$0xff]
    %v332 = vld [vmem:[#allocation5 + $0x800] sm:$0xff]
    %v333 = vld [vmem:[#allocation5 + $0x808] sm:$0xff]
    %v334 = vld [vmem:[#allocation5 + $0x810] sm:$0xff]
    %v335 = vld [vmem:[#allocation5 + $0x818] sm:$0xff]
    %v336 = vld [vmem:[#allocation5 + $0x820] sm:$0xff]
    %v337 = vld [vmem:[#allocation5 + $0x828] sm:$0xff]
    %v338 = vld [vmem:[#allocation5 + $0x830] sm:$0xff]
    %v339 = vld [vmem:[#allocation5 + $0x838] sm:$0xf]
    %v340 = vld [vmem:[#allocation5 + $0x83c] sm:$0xff]
    %v341 = vld [vmem:[#allocation5 + $0x844] sm:$0xff]
    %v342 = vld [vmem:[#allocation5 + $0x84c] sm:$0xff]
    %v343 = vld [vmem:[#allocation5 + $0x854] sm:$0xff]
    %v344 = vld [vmem:[#allocation5 + $0x85c] sm:$0xff]
    %v345 = vld [vmem:[#allocation5 + $0x864] sm:$0xff]
    %v346 = vld [vmem:[#allocation5 + $0x86c] sm:$0xff]
    %v347 = vld [vmem:[#allocation5 + $0x874] sm:$0xff]
    %v348 = vld [vmem:[#allocation5 + $0x87c] sm:$0xf]
    %v349 = vld [vmem:[#allocation5 + $0x880] sm:$0xff]
    %v350 = vld [vmem:[#allocation5 + $0x888] sm:$0xff]
    %v351 = vld [vmem:[#allocation5 + $0x890] sm:$0xff]
    %v352 = vld [vmem:[#allocation5 + $0x898] sm:$0xff]
    %v353 = vld [vmem:[#allocation5 + $0x8a0] sm:$0xff]
    %v354 = vld [vmem:[#allocation5 + $0x8a8] sm:$0xff]
    %v355 = vld [vmem:[#allocation5 + $0x8b0] sm:$0xff]
    %v356 = vld [vmem:[#allocation5 + $0x8b8] sm:$0xff]
    %v357 = vld [vmem:[#allocation5 + $0x8c0] sm:$0xf]
    %v358 = vld [vmem:[#allocation5 + $0x8c4] sm:$0xff]
    %v359 = vld [vmem:[#allocation5 + $0x8cc] sm:$0xff]
    %v360 = vld [vmem:[#allocation5 + $0x8d4] sm:$0xff]
    %v361 = vld [vmem:[#allocation5 + $0x8dc] sm:$0xff]
    %v362 = vld [vmem:[#allocation5 + $0x8e4] sm:$0xff]
    %v363 = vld [vmem:[#allocation5 + $0x8ec] sm:$0xff]
    %v364 = vld [vmem:[#allocation5 + $0x8f4] sm:$0xff]
    %v365 = vld [vmem:[#allocation5 + $0x8fc] sm:$0xff]
    %v366 = vld [vmem:[#allocation5 + $0x904] sm:$0xf]
    %v367 = vld [vmem:[#allocation5 + $0x908] sm:$0xff]
    %v368 = vld [vmem:[#allocation5 + $0x910] sm:$0xff]
    %v369 = vld [vmem:[#allocation5 + $0x918] sm:$0xff]
    %v370 = vld [vmem:[#allocation5 + $0x920] sm:$0xff]
    %v371 = vld [vmem:[#allocation5 + $0x928] sm:$0xff]
    %v372 = vld [vmem:[#allocation5 + $0x930] sm:$0xff]
    %v373 = vld [vmem:[#allocation5 + $0x938] sm:$0xff]
    %v374 = vld [vmem:[#allocation5 + $0x940] sm:$0xff]
    %v375 = vld [vmem:[#allocation5 + $0x948] sm:$0xf]
    %v376 = vld [vmem:[#allocation5 + $0x94c] sm:$0xff]
    %v377 = vld [vmem:[#allocation5 + $0x954] sm:$0xff]
    %v378 = vld [vmem:[#allocation5 + $0x95c] sm:$0xff]
    %v379 = vld [vmem:[#allocation5 + $0x964] sm:$0xff]
    %v380 = vld [vmem:[#allocation5 + $0x96c] sm:$0xff]
    %v381 = vld [vmem:[#allocation5 + $0x974] sm:$0xff]
    %v382 = vld [vmem:[#allocation5 + $0x97c] sm:$0xff]
    %v383 = vld [vmem:[#allocation5 + $0x984] sm:$0xff]
    %v384 = vld [vmem:[#allocation5 + $0x98c] sm:$0xf]
    %v385 = vld [vmem:[#allocation5 + $0x990] sm:$0xff]
    %v386 = vld [vmem:[#allocation5 + $0x998] sm:$0xff]
    %v387 = vld [vmem:[#allocation5 + $0x9a0] sm:$0xff]
    %v388 = vld [vmem:[#allocation5 + $0x9a8] sm:$0xff]
    %v389 = vld [vmem:[#allocation5 + $0x9b0] sm:$0xff]
    %v390 = vld [vmem:[#allocation5 + $0x9b8] sm:$0xff]
    %v391 = vld [vmem:[#allocation5 + $0x9c0] sm:$0xff]
    %v392 = vld [vmem:[#allocation5 + $0x9c8] sm:$0xff]
    %v393 = vld [vmem:[#allocation5 + $0x9d0] sm:$0xf]
    %v394 = vld [vmem:[#allocation5 + $0x9d4] sm:$0xff]
    %v395 = vld [vmem:[#allocation5 + $0x9dc] sm:$0xff]
    %v396 = vld [vmem:[#allocation5 + $0x9e4] sm:$0xff]
    %v397 = vld [vmem:[#allocation5 + $0x9ec] sm:$0xff]
    %v398 = vld [vmem:[#allocation5 + $0x9f4] sm:$0xff]
    %v399 = vld [vmem:[#allocation5 + $0x9fc] sm:$0xff]
    %v400 = vld [vmem:[#allocation5 + $0xa04] sm:$0xff]
    %v401 = vld [vmem:[#allocation5 + $0xa0c] sm:$0xff]
    %v402 = vld [vmem:[#allocation5 + $0xa14] sm:$0xf]
    %v403 = vld [vmem:[#allocation5 + $0xa18] sm:$0xff]
    %v404 = vld [vmem:[#allocation5 + $0xa20] sm:$0xff]
    %v405 = vld [vmem:[#allocation5 + $0xa28] sm:$0xff]
    %v406 = vld [vmem:[#allocation5 + $0xa30] sm:$0xff]
    %v407 = vld [vmem:[#allocation5 + $0xa38] sm:$0xff]
    %v408 = vld [vmem:[#allocation5 + $0xa40] sm:$0xff]
    %v409 = vld [vmem:[#allocation5 + $0xa48] sm:$0xff]
    %v410 = vld [vmem:[#allocation5 + $0xa50] sm:$0xff]
    %v411 = vld [vmem:[#allocation5 + $0xa58] sm:$0xf]
    %v412 = vld [vmem:[#allocation5 + $0xa5c] sm:$0xff]
    %v413 = vld [vmem:[#allocation5 + $0xa64] sm:$0xff]
    %v414 = vld [vmem:[#allocation5 + $0xa6c] sm:$0xff]
    %v415 = vld [vmem:[#allocation5 + $0xa74] sm:$0xff]
    %v416 = vld [vmem:[#allocation5 + $0xa7c] sm:$0xff]
    %v417 = vld [vmem:[#allocation5 + $0xa84] sm:$0xff]
    %v418 = vld [vmem:[#allocation5 + $0xa8c] sm:$0xff]
    %v419 = vld [vmem:[#allocation5 + $0xa94] sm:$0xff]
    %v420 = vld [vmem:[#allocation5 + $0xa9c] sm:$0xf]
    %v421 = vld [vmem:[#allocation5 + $0xaa0] sm:$0xff]
    %v422 = vld [vmem:[#allocation5 + $0xaa8] sm:$0xff]
    %v423 = vld [vmem:[#allocation5 + $0xab0] sm:$0xff]
    %v424 = vld [vmem:[#allocation5 + $0xab8] sm:$0xff]
    %v425 = vld [vmem:[#allocation5 + $0xac0] sm:$0xff]
    %v426 = vld [vmem:[#allocation5 + $0xac8] sm:$0xff]
    %v427 = vld [vmem:[#allocation5 + $0xad0] sm:$0xff]
    %v428 = vld [vmem:[#allocation5 + $0xad8] sm:$0xff]
    %v429 = vld [vmem:[#allocation5 + $0xae0] sm:$0xf]
    %v430 = vld [vmem:[#allocation5 + $0xae4] sm:$0xff]
    %v431 = vld [vmem:[#allocation5 + $0xaec] sm:$0xff]
    %v432 = vld [vmem:[#allocation5 + $0xaf4] sm:$0xff]
    %v433 = vld [vmem:[#allocation5 + $0xafc] sm:$0xff]
    %v434 = vld [vmem:[#allocation5 + $0xb04] sm:$0xff]
    %v435 = vld [vmem:[#allocation5 + $0xb0c] sm:$0xff]
    %v436 = vld [vmem:[#allocation5 + $0xb14] sm:$0xff]
    %v437 = vld [vmem:[#allocation5 + $0xb1c] sm:$0xff]
    %v438 = vld [vmem:[#allocation5 + $0xb24] sm:$0xf]
    %v439 = vld [vmem:[#allocation5 + $0xb28] sm:$0xff]
    %v440 = vld [vmem:[#allocation5 + $0xb30] sm:$0xff]
    %v441 = vld [vmem:[#allocation5 + $0xb38] sm:$0xff]
    %v442 = vld [vmem:[#allocation5 + $0xb40] sm:$0xff]
    %v443 = vld [vmem:[#allocation5 + $0xb48] sm:$0xff]
    %v444 = vld [vmem:[#allocation5 + $0xb50] sm:$0xff]
    %v445 = vld [vmem:[#allocation5 + $0xb58] sm:$0xff]
    %v446 = vld [vmem:[#allocation5 + $0xb60] sm:$0xff]
    %v447 = vld [vmem:[#allocation5 + $0xb68] sm:$0xf]
    %v448 = vld [vmem:[#allocation5 + $0xb6c] sm:$0xff]
    %v449 = vld [vmem:[#allocation5 + $0xb74] sm:$0xff]
    %v450 = vld [vmem:[#allocation5 + $0xb7c] sm:$0xff]
    %v451 = vld [vmem:[#allocation5 + $0xb84] sm:$0xff]
    %v452 = vld [vmem:[#allocation5 + $0xb8c] sm:$0xff]
    %v453 = vld [vmem:[#allocation5 + $0xb94] sm:$0xff]
    %v454 = vld [vmem:[#allocation5 + $0xb9c] sm:$0xff]
    %v455 = vld [vmem:[#allocation5 + $0xba4] sm:$0xff]
    %v456 = vld [vmem:[#allocation5 + $0xbac] sm:$0xf]
    %v457 = vld [vmem:[#allocation5 + $0xbb0] sm:$0xff]
    %v458 = vld [vmem:[#allocation5 + $0xbb8] sm:$0xff]
    %v459 = vld [vmem:[#allocation5 + $0xbc0] sm:$0xff]
    %v460 = vld [vmem:[#allocation5 + $0xbc8] sm:$0xff]
    %v461 = vld [vmem:[#allocation5 + $0xbd0] sm:$0xff]
    %v462 = vld [vmem:[#allocation5 + $0xbd8] sm:$0xff]
    %v463 = vld [vmem:[#allocation5 + $0xbe0] sm:$0xff]
    %v464 = vld [vmem:[#allocation5 + $0xbe8] sm:$0xff]
    %v465 = vld [vmem:[#allocation5 + $0xbf0] sm:$0xf]
    %v466 = vld [vmem:[#allocation5 + $0xbf4] sm:$0xff]
    %v467 = vld [vmem:[#allocation5 + $0xbfc] sm:$0xff]
    %v468 = vld [vmem:[#allocation5 + $0xc04] sm:$0xff]
    %v469 = vld [vmem:[#allocation5 + $0xc0c] sm:$0xff]
    %v470 = vld [vmem:[#allocation5 + $0xc14] sm:$0xff]
    %v471 = vld [vmem:[#allocation5 + $0xc1c] sm:$0xff]
    %v472 = vld [vmem:[#allocation5 + $0xc24] sm:$0xff]
    %v473 = vld [vmem:[#allocation5 + $0xc2c] sm:$0xff]
    %v474 = vld [vmem:[#allocation5 + $0xc34] sm:$0xf]
    %v475 = vld [vmem:[#allocation5 + $0xc38] sm:$0xff]
    %v476 = vld [vmem:[#allocation5 + $0xc40] sm:$0xff]
    %v477 = vld [vmem:[#allocation5 + $0xc48] sm:$0xff]
    %v478 = vld [vmem:[#allocation5 + $0xc50] sm:$0xff]
    %v479 = vld [vmem:[#allocation5 + $0xc58] sm:$0xff]
    %v480 = vld [vmem:[#allocation5 + $0xc60] sm:$0xff]
    %v481 = vld [vmem:[#allocation5 + $0xc68] sm:$0xff]
    %v482 = vld [vmem:[#allocation5 + $0xc70] sm:$0xff]
    %v483 = vld [vmem:[#allocation5 + $0xc78] sm:$0xf]
    %v484 = vld [vmem:[#allocation5 + $0xc7c] sm:$0xff]
    %v485 = vld [vmem:[#allocation5 + $0xc84] sm:$0xff]
    %v486 = vld [vmem:[#allocation5 + $0xc8c] sm:$0xff]
    %v487 = vld [vmem:[#allocation5 + $0xc94] sm:$0xff]
    %v488 = vld [vmem:[#allocation5 + $0xc9c] sm:$0xff]
    %v489 = vld [vmem:[#allocation5 + $0xca4] sm:$0xff]
    %v490 = vld [vmem:[#allocation5 + $0xcac] sm:$0xff]
    %v491 = vld [vmem:[#allocation5 + $0xcb4] sm:$0xff]
    %v492 = vld [vmem:[#allocation5 + $0xcbc] sm:$0xf]
    %v493 = vld [vmem:[#allocation5 + $0xcc0] sm:$0xff]
    %v494 = vld [vmem:[#allocation5 + $0xcc8] sm:$0xff]
    %v495 = vld [vmem:[#allocation5 + $0xcd0] sm:$0xff]
    %v496 = vld [vmem:[#allocation5 + $0xcd8] sm:$0xff]
    %v497 = vld [vmem:[#allocation5 + $0xce0] sm:$0xff]
    %v498 = vld [vmem:[#allocation5 + $0xce8] sm:$0xff]
    %v499 = vld [vmem:[#allocation5 + $0xcf0] sm:$0xff]
    %v500 = vld [vmem:[#allocation5 + $0xcf8] sm:$0xff]
    %v501 = vld [vmem:[#allocation5 + $0xd00] sm:$0xf]
    %v502 = vld [vmem:[#allocation5 + $0xd04] sm:$0xff]
    %v503 = vld [vmem:[#allocation5 + $0xd0c] sm:$0xff]
    %v504 = vld [vmem:[#allocation5 + $0xd14] sm:$0xff]
    %v505 = vld [vmem:[#allocation5 + $0xd1c] sm:$0xff]
    %v506 = vld [vmem:[#allocation5 + $0xd24] sm:$0xff]
    %v507 = vld [vmem:[#allocation5 + $0xd2c] sm:$0xff]
    %v508 = vld [vmem:[#allocation5 + $0xd34] sm:$0xff]
    %v509 = vld [vmem:[#allocation5 + $0xd3c] sm:$0xff]
    %v510 = vld [vmem:[#allocation5 + $0xd44] sm:$0xf]
    %v511 = vld [vmem:[#allocation5 + $0xd48] sm:$0xff]
    %v512 = vld [vmem:[#allocation5 + $0xd50] sm:$0xff]
    %v513 = vld [vmem:[#allocation5 + $0xd58] sm:$0xff]
    %v514 = vld [vmem:[#allocation5 + $0xd60] sm:$0xff]
    %v515 = vld [vmem:[#allocation5 + $0xd68] sm:$0xff]
    %v516 = vld [vmem:[#allocation5 + $0xd70] sm:$0xff]
    %v517 = vld [vmem:[#allocation5 + $0xd78] sm:$0xff]
    %v518 = vld [vmem:[#allocation5 + $0xd80] sm:$0xff]
    %v519 = vld [vmem:[#allocation5 + $0xd88] sm:$0xf]
    %v520 = vld [vmem:[#allocation5 + $0xd8c] sm:$0xff]
    %v521 = vld [vmem:[#allocation5 + $0xd94] sm:$0xff]
    %v522 = vld [vmem:[#allocation5 + $0xd9c] sm:$0xff]
    %v523 = vld [vmem:[#allocation5 + $0xda4] sm:$0xff]
    %v524 = vld [vmem:[#allocation5 + $0xdac] sm:$0xff]
    %v525 = vld [vmem:[#allocation5 + $0xdb4] sm:$0xff]
    %v526 = vld [vmem:[#allocation5 + $0xdbc] sm:$0xff]
    %v527 = vld [vmem:[#allocation5 + $0xdc4] sm:$0xff]
    %v528 = vld [vmem:[#allocation5 + $0xdcc] sm:$0xf]
    %v529 = vld [vmem:[#allocation5 + $0xdd0] sm:$0xff]
    %v530 = vld [vmem:[#allocation5 + $0xdd8] sm:$0xff]
    %v531 = vld [vmem:[#allocation5 + $0xde0] sm:$0xff]
    %v532 = vld [vmem:[#allocation5 + $0xde8] sm:$0xff]
    %v533 = vld [vmem:[#allocation5 + $0xdf0] sm:$0xff]
    %v534 = vld [vmem:[#allocation5 + $0xdf8] sm:$0xff]
    %v535 = vld [vmem:[#allocation5 + $0xe00] sm:$0xff]
    %v536 = vld [vmem:[#allocation5 + $0xe08] sm:$0xff]
    %v537 = vld [vmem:[#allocation5 + $0xe10] sm:$0xf]
    %v538 = vld [vmem:[#allocation5 + $0xe14] sm:$0xff]
    %v539 = vld [vmem:[#allocation5 + $0xe1c] sm:$0xff]
    %v540 = vld [vmem:[#allocation5 + $0xe24] sm:$0xff]
    %v541 = vld [vmem:[#allocation5 + $0xe2c] sm:$0xff]
    %v542 = vld [vmem:[#allocation5 + $0xe34] sm:$0xff]
    %v543 = vld [vmem:[#allocation5 + $0xe3c] sm:$0xff]
    %v544 = vld [vmem:[#allocation5 + $0xe44] sm:$0xff]
    %v545 = vld [vmem:[#allocation5 + $0xe4c] sm:$0xff]
    %v546 = vld [vmem:[#allocation5 + $0xe54] sm:$0xf]
    %v547 = vld [vmem:[#allocation5 + $0xe58] sm:$0xff]
    %v548 = vld [vmem:[#allocation5 + $0xe60] sm:$0xff]
    %v549 = vld [vmem:[#allocation5 + $0xe68] sm:$0xff]
    %v550 = vld [vmem:[#allocation5 + $0xe70] sm:$0xff]
    %v551 = vld [vmem:[#allocation5 + $0xe78] sm:$0xff]
    %v552 = vld [vmem:[#allocation5 + $0xe80] sm:$0xff]
    %v553 = vld [vmem:[#allocation5 + $0xe88] sm:$0xff]
    %v554 = vld [vmem:[#allocation5 + $0xe90] sm:$0xff]
    %v555 = vld [vmem:[#allocation5 + $0xe98] sm:$0xf]
    %v556 = vld [vmem:[#allocation5 + $0xe9c] sm:$0xff]
    %v557 = vld [vmem:[#allocation5 + $0xea4] sm:$0xff]
    %v558 = vld [vmem:[#allocation5 + $0xeac] sm:$0xff]
    %v559 = vld [vmem:[#allocation5 + $0xeb4] sm:$0xff]
    %v560 = vld [vmem:[#allocation5 + $0xebc] sm:$0xff]
    %v561 = vld [vmem:[#allocation5 + $0xec4] sm:$0xff]
    %v562 = vld [vmem:[#allocation5 + $0xecc] sm:$0xff]
    %v563 = vld [vmem:[#allocation5 + $0xed4] sm:$0xff]
    %v564 = vld [vmem:[#allocation5 + $0xedc] sm:$0xf]
    %v565 = vld [vmem:[#allocation5 + $0xee0] sm:$0xff]
    %v566 = vld [vmem:[#allocation5 + $0xee8] sm:$0xff]
    %v567 = vld [vmem:[#allocation5 + $0xef0] sm:$0xff]
    %v568 = vld [vmem:[#allocation5 + $0xef8] sm:$0xff]
    %v569 = vld [vmem:[#allocation5 + $0xf00] sm:$0xff]
    %v570 = vld [vmem:[#allocation5 + $0xf08] sm:$0xff]
    %v571 = vld [vmem:[#allocation5 + $0xf10] sm:$0xff]
    %v572 = vld [vmem:[#allocation5 + $0xf18] sm:$0xff]
    %v573 = vld [vmem:[#allocation5 + $0xf20] sm:$0xf]
    %v574 = vld [vmem:[#allocation5 + $0xf24] sm:$0xff]
    %v575 = vld [vmem:[#allocation5 + $0xf2c] sm:$0xff]
    %v576 = vld [vmem:[#allocation5 + $0xf34] sm:$0xff]
    %v577 = vld [vmem:[#allocation5 + $0xf3c] sm:$0xff]
    %v578 = vld [vmem:[#allocation5 + $0xf44] sm:$0xff]
    %v579 = vld [vmem:[#allocation5 + $0xf4c] sm:$0xff]
    %v580 = vld [vmem:[#allocation5 + $0xf54] sm:$0xff]
    %v581 = vld [vmem:[#allocation5 + $0xf5c] sm:$0xff]
    %v582 = vld [vmem:[#allocation5 + $0xf64] sm:$0xf]
    %v583 = vld [vmem:[#allocation5 + $0xf68] sm:$0xff]
    %v584 = vld [vmem:[#allocation5 + $0xf70] sm:$0xff]
    %v585 = vld [vmem:[#allocation5 + $0xf78] sm:$0xff]
    %v586 = vld [vmem:[#allocation5 + $0xf80] sm:$0xff]
    %v587 = vld [vmem:[#allocation5 + $0xf88] sm:$0xff]
    %v588 = vld [vmem:[#allocation5 + $0xf90] sm:$0xff]
    %v589 = vld [vmem:[#allocation5 + $0xf98] sm:$0xff]
    %v590 = vld [vmem:[#allocation5 + $0xfa0] sm:$0xff]
    %v591 = vld [vmem:[#allocation5 + $0xfa8] sm:$0xf]
    %v592 = vld [vmem:[#allocation5 + $0xfac] sm:$0xff]
    %v593 = vld [vmem:[#allocation5 + $0xfb4] sm:$0xff]
    %v594 = vld [vmem:[#allocation5 + $0xfbc] sm:$0xff]
    %v595 = vld [vmem:[#allocation5 + $0xfc4] sm:$0xff]
    %v596 = vld [vmem:[#allocation5 + $0xfcc] sm:$0xff]
    %v597 = vld [vmem:[#allocation5 + $0xfd4] sm:$0xff]
    %v598 = vld [vmem:[#allocation5 + $0xfdc] sm:$0xff]
    %v599 = vld [vmem:[#allocation5 + $0xfe4] sm:$0xff]
    %v600 = vld [vmem:[#allocation5 + $0xfec] sm:$0xf]
    %v601 = vld [vmem:[#allocation5 + $0xff0] sm:$0xff]
    %v602 = vld [vmem:[#allocation5 + $0xff8] sm:$0xff]
    %v603 = vld [vmem:[#allocation5 + $0x1000] sm:$0xff]
    %v604 = vld [vmem:[#allocation5 + $0x1008] sm:$0xff]
    %v605 = vld [vmem:[#allocation5 + $0x1010] sm:$0xff]
    %v606 = vld [vmem:[#allocation5 + $0x1018] sm:$0xff]
    %v607 = vld [vmem:[#allocation5 + $0x1020] sm:$0xff]
    %v608 = vld [vmem:[#allocation5 + $0x1028] sm:$0xff]
    %v609 = vld [vmem:[#allocation5 + $0x1030] sm:$0xf]
    %v610 = vld [vmem:[#allocation5 + $0x1034] sm:$0xff]
    %v611 = vld [vmem:[#allocation5 + $0x103c] sm:$0xff]
    %v612 = vld [vmem:[#allocation5 + $0x1044] sm:$0xff]
    %v613 = vld [vmem:[#allocation5 + $0x104c] sm:$0xff]
    %v614 = vld [vmem:[#allocation5 + $0x1054] sm:$0xff]
    %v615 = vld [vmem:[#allocation5 + $0x105c] sm:$0xff]
    %v616 = vld [vmem:[#allocation5 + $0x1064] sm:$0xff]
    %v617 = vld [vmem:[#allocation5 + $0x106c] sm:$0xff]
    %v618 = vld [vmem:[#allocation5 + $0x1074] sm:$0xf]
    %v619 = vld [vmem:[#allocation5 + $0x1078] sm:$0xff]
    %v620 = vld [vmem:[#allocation5 + $0x1080] sm:$0xff]
    %v621 = vld [vmem:[#allocation5 + $0x1088] sm:$0xff]
    %v622 = vld [vmem:[#allocation5 + $0x1090] sm:$0xff]
    %v623 = vld [vmem:[#allocation5 + $0x1098] sm:$0xff]
    %v624 = vld [vmem:[#allocation5 + $0x10a0] sm:$0xff]
    %v625 = vld [vmem:[#allocation5 + $0x10a8] sm:$0xff]
    %v626 = vld [vmem:[#allocation5 + $0x10b0] sm:$0xff]
    %v627 = vld [vmem:[#allocation5 + $0x10b8] sm:$0xf]
    %v628 = vld [vmem:[#allocation5 + $0x10bc] sm:$0xff]
    %v629 = vld [vmem:[#allocation5 + $0x10c4] sm:$0xff]
    %v630 = vld [vmem:[#allocation5 + $0x10cc] sm:$0xff]
    %v631 = vld [vmem:[#allocation5 + $0x10d4] sm:$0xff]
    %v632 = vld [vmem:[#allocation5 + $0x10dc] sm:$0xff]
    %v633 = vld [vmem:[#allocation5 + $0x10e4] sm:$0xff]
    %v634 = vld [vmem:[#allocation5 + $0x10ec] sm:$0xff]
    %v635 = vld [vmem:[#allocation5 + $0x10f4] sm:$0xff]
    %v636 = vld [vmem:[#allocation5 + $0x10fc] sm:$0xf]
    %v637 = vld [vmem:[#allocation5 + $0x1100] sm:$0xff]
    %v638 = vld [vmem:[#allocation5 + $0x1108] sm:$0xff]
    %v639 = vld [vmem:[#allocation5 + $0x1110] sm:$0xff]
    %v640 = vld [vmem:[#allocation5 + $0x1118] sm:$0xff]
    %v641 = vld [vmem:[#allocation5 + $0x1120] sm:$0xff]
    %v642 = vld [vmem:[#allocation5 + $0x1128] sm:$0xff]
    %v643 = vld [vmem:[#allocation5 + $0x1130] sm:$0xff]
    %v644 = vld [vmem:[#allocation5 + $0x1138] sm:$0xff]
    %v645 = vld [vmem:[#allocation5 + $0x1140] sm:$0xf]
    %v646 = vld [vmem:[#allocation5 + $0x1144] sm:$0xff]
    %v647 = vld [vmem:[#allocation5 + $0x114c] sm:$0xff]
    %v648 = vld [vmem:[#allocation5 + $0x1154] sm:$0xff]
    %v649 = vld [vmem:[#allocation5 + $0x115c] sm:$0xff]
    %v650 = vld [vmem:[#allocation5 + $0x1164] sm:$0xff]
    %v651 = vld [vmem:[#allocation5 + $0x116c] sm:$0xff]
    %v652 = vld [vmem:[#allocation5 + $0x1174] sm:$0xff]
    %v653 = vld [vmem:[#allocation5 + $0x117c] sm:$0xff]
    %v654 = vld [vmem:[#allocation5 + $0x1184] sm:$0xf]
    %v655 = vld [vmem:[#allocation5 + $0x1188] sm:$0xff]
    %v656 = vld [vmem:[#allocation5 + $0x1190] sm:$0xff]
    %v657 = vld [vmem:[#allocation5 + $0x1198] sm:$0xff]
    %v658 = vld [vmem:[#allocation5 + $0x11a0] sm:$0xff]
    %v659 = vld [vmem:[#allocation5 + $0x11a8] sm:$0xff]
    %v660 = vld [vmem:[#allocation5 + $0x11b0] sm:$0xff]
    %v661 = vld [vmem:[#allocation5 + $0x11b8] sm:$0xff]
    %v662 = vld [vmem:[#allocation5 + $0x11c0] sm:$0xff]
    %v663 = vld [vmem:[#allocation5 + $0x11c8] sm:$0xf]
    %v664 = vld [vmem:[#allocation5 + $0x11cc] sm:$0xff]
    %v665 = vld [vmem:[#allocation5 + $0x11d4] sm:$0xff]
    %v666 = vld [vmem:[#allocation5 + $0x11dc] sm:$0xff]
    %v667 = vld [vmem:[#allocation5 + $0x11e4] sm:$0xff]
    %v668 = vld [vmem:[#allocation5 + $0x11ec] sm:$0xff]
    %v669 = vld [vmem:[#allocation5 + $0x11f4] sm:$0xff]
    %v670 = vld [vmem:[#allocation5 + $0x11fc] sm:$0xff]
    %v671 = vld [vmem:[#allocation5 + $0x1204] sm:$0xff]
    %v672 = vld [vmem:[#allocation5 + $0x120c] sm:$0xf]
    %v673 = vld [vmem:[#allocation5 + $0x1210] sm:$0xff]
    %v674 = vld [vmem:[#allocation5 + $0x1218] sm:$0xff]
    %v675 = vld [vmem:[#allocation5 + $0x1220] sm:$0xff]
    %v676 = vld [vmem:[#allocation5 + $0x1228] sm:$0xff]
    %v677 = vld [vmem:[#allocation5 + $0x1230] sm:$0xff]
    %v678 = vld [vmem:[#allocation5 + $0x1238] sm:$0xff]
    %v679 = vld [vmem:[#allocation5 + $0x1240] sm:$0xff]
    %v680 = vld [vmem:[#allocation5 + $0x1248] sm:$0xff]
    %v681 = vld [vmem:[#allocation5 + $0x1250] sm:$0xf]
    %v682 = vld [vmem:[#allocation5 + $0x1254] sm:$0xff]
    %v683 = vld [vmem:[#allocation5 + $0x125c] sm:$0xff]
    %v684 = vld [vmem:[#allocation5 + $0x1264] sm:$0xff]
    %v685 = vld [vmem:[#allocation5 + $0x126c] sm:$0xff]
    %v686 = vld [vmem:[#allocation5 + $0x1274] sm:$0xff]
    %v687 = vld [vmem:[#allocation5 + $0x127c] sm:$0xff]
    %v688 = vld [vmem:[#allocation5 + $0x1284] sm:$0xff]
    %v689 = vld [vmem:[#allocation5 + $0x128c] sm:$0xff]
    %v690 = vld [vmem:[#allocation5 + $0x1294] sm:$0xf]
    %v691 = vld [vmem:[#allocation5 + $0x1298] sm:$0xff]
    %v692 = vld [vmem:[#allocation5 + $0x12a0] sm:$0xff]
    %v693 = vld [vmem:[#allocation5 + $0x12a8] sm:$0xff]
    %v694 = vld [vmem:[#allocation5 + $0x12b0] sm:$0xff]
    %v695 = vld [vmem:[#allocation5 + $0x12b8] sm:$0xff]
    %v696 = vld [vmem:[#allocation5 + $0x12c0] sm:$0xff]
    %v697 = vld [vmem:[#allocation5 + $0x12c8] sm:$0xff]
    %v698 = vld [vmem:[#allocation5 + $0x12d0] sm:$0xff]
    %v699 = vld [vmem:[#allocation5 + $0x12d8] sm:$0xf]
    %v700 = vld [vmem:[#allocation5 + $0x12dc] sm:$0xff]
    %v701 = vld [vmem:[#allocation5 + $0x12e4] sm:$0xff]
    %v702 = vld [vmem:[#allocation5 + $0x12ec] sm:$0xff]
    %v703 = vld [vmem:[#allocation5 + $0x12f4] sm:$0xff]
    %v704 = vld [vmem:[#allocation5 + $0x12fc] sm:$0xff]
    %v705 = vld [vmem:[#allocation5 + $0x1304] sm:$0xff]
    %v706 = vld [vmem:[#allocation5 + $0x130c] sm:$0xff]
    %v707 = vld [vmem:[#allocation5 + $0x1314] sm:$0xff]
    %v708 = vld [vmem:[#allocation5 + $0x131c] sm:$0xf]
    %v709 = vld [vmem:[#allocation5 + $0x1320] sm:$0xff]
    %v710 = vld [vmem:[#allocation5 + $0x1328] sm:$0xff]
    %v711 = vld [vmem:[#allocation5 + $0x1330] sm:$0xff]
    %v712 = vld [vmem:[#allocation5 + $0x1338] sm:$0xff]
    %v713 = vld [vmem:[#allocation5 + $0x1340] sm:$0xff]
    %v714 = vld [vmem:[#allocation5 + $0x1348] sm:$0xff]
    %v715 = vld [vmem:[#allocation5 + $0x1350] sm:$0xff]
    %v716 = vld [vmem:[#allocation5 + $0x1358] sm:$0xff]
    %v717 = vld [vmem:[#allocation5 + $0x1360] sm:$0xf]
    %v718 = vld [vmem:[#allocation5 + $0x1364] sm:$0xff]
    %v719 = vld [vmem:[#allocation5 + $0x136c] sm:$0xff]
    %v720 = vld [vmem:[#allocation5 + $0x1374] sm:$0xff]
    %v721 = vld [vmem:[#allocation5 + $0x137c] sm:$0xff]
    %v722 = vld [vmem:[#allocation5 + $0x1384] sm:$0xff]
    %v723 = vld [vmem:[#allocation5 + $0x138c] sm:$0xff]
    %v724 = vld [vmem:[#allocation5 + $0x1394] sm:$0xff]
    %v725 = vld [vmem:[#allocation5 + $0x139c] sm:$0xff]
    %v726 = vld [vmem:[#allocation5 + $0x13a4] sm:$0xf]
    %v727 = vld [vmem:[#allocation5 + $0x13a8] sm:$0xff]
    %v728 = vld [vmem:[#allocation5 + $0x13b0] sm:$0xff]
    %v729 = vld [vmem:[#allocation5 + $0x13b8] sm:$0xff]
    %v730 = vld [vmem:[#allocation5 + $0x13c0] sm:$0xff]
    %v731 = vld [vmem:[#allocation5 + $0x13c8] sm:$0xff]
    %v732 = vld [vmem:[#allocation5 + $0x13d0] sm:$0xff]
    %v733 = vld [vmem:[#allocation5 + $0x13d8] sm:$0xff]
    %v734 = vld [vmem:[#allocation5 + $0x13e0] sm:$0xff]
    %v735 = vld [vmem:[#allocation5 + $0x13e8] sm:$0xf]
    %v736 = vld [vmem:[#allocation5 + $0x13ec] sm:$0xff]
    %v737 = vld [vmem:[#allocation5 + $0x13f4] sm:$0xff]
    %v738 = vld [vmem:[#allocation5 + $0x13fc] sm:$0xff]
    %v739 = vld [vmem:[#allocation5 + $0x1404] sm:$0xff]
    %v740 = vld [vmem:[#allocation5 + $0x140c] sm:$0xff]
    %v741 = vld [vmem:[#allocation5 + $0x1414] sm:$0xff]
    %v742 = vld [vmem:[#allocation5 + $0x141c] sm:$0xff]
    %v743 = vld [vmem:[#allocation5 + $0x1424] sm:$0xff]
    %v744 = vld [vmem:[#allocation5 + $0x142c] sm:$0xf]
    %v745 = vld [vmem:[#allocation5 + $0x1430] sm:$0xff]
    %v746 = vld [vmem:[#allocation5 + $0x1438] sm:$0xff]
    %v747 = vld [vmem:[#allocation5 + $0x1440] sm:$0xff]
    %v748 = vld [vmem:[#allocation5 + $0x1448] sm:$0xff]
    %v749 = vld [vmem:[#allocation5 + $0x1450] sm:$0xff]
    %v750 = vld [vmem:[#allocation5 + $0x1458] sm:$0xff]
    %v751 = vld [vmem:[#allocation5 + $0x1460] sm:$0xff]
    %v752 = vld [vmem:[#allocation5 + $0x1468] sm:$0xff]
    %v753 = vld [vmem:[#allocation5 + $0x1470] sm:$0xf]
    %v754 = vld [vmem:[#allocation5 + $0x1474] sm:$0xff]
    %v755 = vld [vmem:[#allocation5 + $0x147c] sm:$0xff]
    %v756 = vld [vmem:[#allocation5 + $0x1484] sm:$0xff]
    %v757 = vld [vmem:[#allocation5 + $0x148c] sm:$0xff]
    %v758 = vld [vmem:[#allocation5 + $0x1494] sm:$0xff]
    %v759 = vld [vmem:[#allocation5 + $0x149c] sm:$0xff]
    %v760 = vld [vmem:[#allocation5 + $0x14a4] sm:$0xff]
    %v761 = vld [vmem:[#allocation5 + $0x14ac] sm:$0xff]
    %v762 = vld [vmem:[#allocation5 + $0x14b4] sm:$0xf]
    %v763 = vld [vmem:[#allocation5 + $0x14b8] sm:$0xff]
    %v764 = vld [vmem:[#allocation5 + $0x14c0] sm:$0xff]
    %v765 = vld [vmem:[#allocation5 + $0x14c8] sm:$0xff]
    %v766 = vld [vmem:[#allocation5 + $0x14d0] sm:$0xff]
    %v767 = vld [vmem:[#allocation5 + $0x14d8] sm:$0xff]
    %v768 = vld [vmem:[#allocation5 + $0x14e0] sm:$0xff]
    %v769 = vld [vmem:[#allocation5 + $0x14e8] sm:$0xff]
    %v770 = vld [vmem:[#allocation5 + $0x14f0] sm:$0xff]
    %v771 = vld [vmem:[#allocation5 + $0x14f8] sm:$0xf]
    %v772 = vld [vmem:[#allocation5 + $0x14fc] sm:$0xff]
    %v773 = vld [vmem:[#allocation5 + $0x1504] sm:$0xff]
    %v774 = vld [vmem:[#allocation5 + $0x150c] sm:$0xff]
    %v775 = vld [vmem:[#allocation5 + $0x1514] sm:$0xff]
    %v776 = vld [vmem:[#allocation5 + $0x151c] sm:$0xff]
    %v777 = vld [vmem:[#allocation5 + $0x1524] sm:$0xff]
    %v778 = vld [vmem:[#allocation5 + $0x152c] sm:$0xff]
    %v779 = vld [vmem:[#allocation5 + $0x1534] sm:$0xff]
    %v780 = vld [vmem:[#allocation5 + $0x153c] sm:$0xf]
    %v781 = vld [vmem:[#allocation5 + $0x1540] sm:$0xff]
    %v782 = vld [vmem:[#allocation5 + $0x1548] sm:$0xff]
    %v783 = vld [vmem:[#allocation5 + $0x1550] sm:$0xff]
    %v784 = vld [vmem:[#allocation5 + $0x1558] sm:$0xff]
    %v785 = vld [vmem:[#allocation5 + $0x1560] sm:$0xff]
    %v786 = vld [vmem:[#allocation5 + $0x1568] sm:$0xff]
    %v787 = vld [vmem:[#allocation5 + $0x1570] sm:$0xff]
    %v788 = vld [vmem:[#allocation5 + $0x1578] sm:$0xff]
    %v789 = vld [vmem:[#allocation5 + $0x1580] sm:$0xf]
    %v790 = vld [vmem:[#allocation5 + $0x1584] sm:$0xff]
    %v791 = vld [vmem:[#allocation5 + $0x158c] sm:$0xff]
    %v792 = vld [vmem:[#allocation5 + $0x1594] sm:$0xff]
    %v793 = vld [vmem:[#allocation5 + $0x159c] sm:$0xff]
    %v794 = vld [vmem:[#allocation5 + $0x15a4] sm:$0xff]
    %v795 = vld [vmem:[#allocation5 + $0x15ac] sm:$0xff]
    %v796 = vld [vmem:[#allocation5 + $0x15b4] sm:$0xff]
    %v797 = vld [vmem:[#allocation5 + $0x15bc] sm:$0xff]
    %v798 = vld [vmem:[#allocation5 + $0x15c4] sm:$0xf]
    %v799 = vld [vmem:[#allocation5 + $0x15c8] sm:$0xff]
    %v800 = vld [vmem:[#allocation5 + $0x15d0] sm:$0xff]
    %v801 = vld [vmem:[#allocation5 + $0x15d8] sm:$0xff]
    %v802 = vld [vmem:[#allocation5 + $0x15e0] sm:$0xff]
    %v803 = vld [vmem:[#allocation5 + $0x15e8] sm:$0xff]
    %v804 = vld [vmem:[#allocation5 + $0x15f0] sm:$0xff]
    %v805 = vld [vmem:[#allocation5 + $0x15f8] sm:$0xff]
    %v806 = vld [vmem:[#allocation5 + $0x1600] sm:$0xff]
    %v807 = vld [vmem:[#allocation5 + $0x1608] sm:$0xf]
    %v808 = vld [vmem:[#allocation5 + $0x160c] sm:$0xff]
    %v809 = vld [vmem:[#allocation5 + $0x1614] sm:$0xff]
    %v810 = vld [vmem:[#allocation5 + $0x161c] sm:$0xff]
    %v811 = vld [vmem:[#allocation5 + $0x1624] sm:$0xff]
    %v812 = vld [vmem:[#allocation5 + $0x162c] sm:$0xff]
    %v813 = vld [vmem:[#allocation5 + $0x1634] sm:$0xff]
    %v814 = vld [vmem:[#allocation5 + $0x163c] sm:$0xff]
    %v815 = vld [vmem:[#allocation5 + $0x1644] sm:$0xff]
    %v816 = vld [vmem:[#allocation5 + $0x164c] sm:$0xf]
    %v817 = vld [vmem:[#allocation5 + $0x1650] sm:$0xff]
    %v818 = vld [vmem:[#allocation5 + $0x1658] sm:$0xff]
    %v819 = vld [vmem:[#allocation5 + $0x1660] sm:$0xff]
    %v820 = vld [vmem:[#allocation5 + $0x1668] sm:$0xff]
    %v821 = vld [vmem:[#allocation5 + $0x1670] sm:$0xff]
    %v822 = vld [vmem:[#allocation5 + $0x1678] sm:$0xff]
    %v823 = vld [vmem:[#allocation5 + $0x1680] sm:$0xff]
    %v824 = vld [vmem:[#allocation5 + $0x1688] sm:$0xff]
    %v825 = vld [vmem:[#allocation5 + $0x1690] sm:$0xf]
    %v826 = vld [vmem:[#allocation5 + $0x1694] sm:$0xff]
    %v827 = vld [vmem:[#allocation5 + $0x169c] sm:$0xff]
    %v828 = vld [vmem:[#allocation5 + $0x16a4] sm:$0xff]
    %v829 = vld [vmem:[#allocation5 + $0x16ac] sm:$0xff]
    %v830 = vld [vmem:[#allocation5 + $0x16b4] sm:$0xff]
    %v831 = vld [vmem:[#allocation5 + $0x16bc] sm:$0xff]
    %v832 = vld [vmem:[#allocation5 + $0x16c4] sm:$0xff]
    %v833 = vld [vmem:[#allocation5 + $0x16cc] sm:$0xff]
    %v834 = vld [vmem:[#allocation5 + $0x16d4] sm:$0xf]
    %v835 = vld [vmem:[#allocation5 + $0x16d8] sm:$0xff]
    %v836 = vld [vmem:[#allocation5 + $0x16e0] sm:$0xff]
    %v837 = vld [vmem:[#allocation5 + $0x16e8] sm:$0xff]
    %v838 = vld [vmem:[#allocation5 + $0x16f0] sm:$0xff]
    %v839 = vld [vmem:[#allocation5 + $0x16f8] sm:$0xff]
    %v840 = vld [vmem:[#allocation5 + $0x1700] sm:$0xff]
    %v841 = vld [vmem:[#allocation5 + $0x1708] sm:$0xff]
    %v842 = vld [vmem:[#allocation5 + $0x1710] sm:$0xff]
    %v843 = vld [vmem:[#allocation5 + $0x1718] sm:$0xf]
    %v844 = vld [vmem:[#allocation5 + $0x171c] sm:$0xff]
    %v845 = vld [vmem:[#allocation5 + $0x1724] sm:$0xff]
    %v846 = vld [vmem:[#allocation5 + $0x172c] sm:$0xff]
    %v847 = vld [vmem:[#allocation5 + $0x1734] sm:$0xff]
    %v848 = vld [vmem:[#allocation5 + $0x173c] sm:$0xff]
    %v849 = vld [vmem:[#allocation5 + $0x1744] sm:$0xff]
    %v850 = vld [vmem:[#allocation5 + $0x174c] sm:$0xff]
    %v851 = vld [vmem:[#allocation5 + $0x1754] sm:$0xff]
    %v852 = vld [vmem:[#allocation5 + $0x175c] sm:$0xf]
    %v853 = vld [vmem:[#allocation5 + $0x1760] sm:$0xff]
    %v854 = vld [vmem:[#allocation5 + $0x1768] sm:$0xff]
    %v855 = vld [vmem:[#allocation5 + $0x1770] sm:$0xff]
    %v856 = vld [vmem:[#allocation5 + $0x1778] sm:$0xff]
    %v857 = vld [vmem:[#allocation5 + $0x1780] sm:$0xff]
    %v858 = vld [vmem:[#allocation5 + $0x1788] sm:$0xff]
    %v859 = vld [vmem:[#allocation5 + $0x1790] sm:$0xff]
    %v860 = vld [vmem:[#allocation5 + $0x1798] sm:$0xff]
    %v861 = vld [vmem:[#allocation5 + $0x17a0] sm:$0xf]
    %v862 = vld [vmem:[#allocation5 + $0x17a4] sm:$0xff]
    %v863 = vld [vmem:[#allocation5 + $0x17ac] sm:$0xff]
    %v864 = vld [vmem:[#allocation5 + $0x17b4] sm:$0xff]
    %v865 = vld [vmem:[#allocation5 + $0x17bc] sm:$0xff]
    %v866 = vld [vmem:[#allocation5 + $0x17c4] sm:$0xff]
    %v867 = vld [vmem:[#allocation5 + $0x17cc] sm:$0xff]
    %v868 = vld [vmem:[#allocation5 + $0x17d4] sm:$0xff]
    %v869 = vld [vmem:[#allocation5 + $0x17dc] sm:$0xff]
    %v870 = vld [vmem:[#allocation5 + $0x17e4] sm:$0xf]
    %v871 = vld [vmem:[#allocation5 + $0x17e8] sm:$0xff]
    %v872 = vld [vmem:[#allocation5 + $0x17f0] sm:$0xff]
    %v873 = vld [vmem:[#allocation5 + $0x17f8] sm:$0xff]
    %v874 = vld [vmem:[#allocation5 + $0x1800] sm:$0xff]
    %v875 = vld [vmem:[#allocation5 + $0x1808] sm:$0xff]
    %v876 = vld [vmem:[#allocation5 + $0x1810] sm:$0xff]
    %v877 = vld [vmem:[#allocation5 + $0x1818] sm:$0xff]
    %v878 = vld [vmem:[#allocation5 + $0x1820] sm:$0xff]
    %v879 = vld [vmem:[#allocation5 + $0x1828] sm:$0xf]
    %v880 = vld [vmem:[#allocation5 + $0x182c] sm:$0xff]
    %v881 = vld [vmem:[#allocation5 + $0x1834] sm:$0xff]
    %v882 = vld [vmem:[#allocation5 + $0x183c] sm:$0xff]
    %v883 = vld [vmem:[#allocation5 + $0x1844] sm:$0xff]
    %v884 = vld [vmem:[#allocation5 + $0x184c] sm:$0xff]
    %v885 = vld [vmem:[#allocation5 + $0x1854] sm:$0xff]
    %v886 = vld [vmem:[#allocation5 + $0x185c] sm:$0xff]
    %v887 = vld [vmem:[#allocation5 + $0x1864] sm:$0xff]
    %v888 = vld [vmem:[#allocation5 + $0x186c] sm:$0xf]
    %v889 = vld [vmem:[#allocation5 + $0x1870] sm:$0xff]
    %v890 = vld [vmem:[#allocation5 + $0x1878] sm:$0xff]
    %v891 = vld [vmem:[#allocation5 + $0x1880] sm:$0xff]
    %v892 = vld [vmem:[#allocation5 + $0x1888] sm:$0xff]
    %v893 = vld [vmem:[#allocation5 + $0x1890] sm:$0xff]
    %v894 = vld [vmem:[#allocation5 + $0x1898] sm:$0xff]
    %v895 = vld [vmem:[#allocation5 + $0x18a0] sm:$0xff]
    %v896 = vld [vmem:[#allocation5 + $0x18a8] sm:$0xff]
    %v897 = vld [vmem:[#allocation5 + $0x18b0] sm:$0xf]
    %v898 = vld [vmem:[#allocation5 + $0x18b4] sm:$0xff]
    %v899 = vld [vmem:[#allocation5 + $0x18bc] sm:$0xff]
    %v900 = vld [vmem:[#allocation5 + $0x18c4] sm:$0xff]
    %v901 = vld [vmem:[#allocation5 + $0x18cc] sm:$0xff]
    %v902 = vld [vmem:[#allocation5 + $0x18d4] sm:$0xff]
    %v903 = vld [vmem:[#allocation5 + $0x18dc] sm:$0xff]
    %v904 = vld [vmem:[#allocation5 + $0x18e4] sm:$0xff]
    %v905 = vld [vmem:[#allocation5 + $0x18ec] sm:$0xff]
    %v906 = vld [vmem:[#allocation5 + $0x18f4] sm:$0xf]
    %v907 = vld [vmem:[#allocation5 + $0x18f8] sm:$0xff]
    %v908 = vld [vmem:[#allocation5 + $0x1900] sm:$0xff]
    %v909 = vld [vmem:[#allocation5 + $0x1908] sm:$0xff]
    %v910 = vld [vmem:[#allocation5 + $0x1910] sm:$0xff]
    %v911 = vld [vmem:[#allocation5 + $0x1918] sm:$0xff]
    %v912 = vld [vmem:[#allocation5 + $0x1920] sm:$0xff]
    %v913 = vld [vmem:[#allocation5 + $0x1928] sm:$0xff]
    %v914 = vld [vmem:[#allocation5 + $0x1930] sm:$0xff]
    %v915 = vld [vmem:[#allocation5 + $0x1938] sm:$0xf]
    %v916 = vld [vmem:[#allocation5 + $0x193c] sm:$0xff]
    %v917 = vld [vmem:[#allocation5 + $0x1944] sm:$0xff]
    %v918 = vld [vmem:[#allocation5 + $0x194c] sm:$0xff]
    %v919 = vld [vmem:[#allocation5 + $0x1954] sm:$0xff]
    %v920 = vld [vmem:[#allocation5 + $0x195c] sm:$0xff]
    %v921 = vld [vmem:[#allocation5 + $0x1964] sm:$0xff]
    %v922 = vld [vmem:[#allocation5 + $0x196c] sm:$0xff]
    %v923 = vld [vmem:[#allocation5 + $0x1974] sm:$0xff]
    %v924 = vld [vmem:[#allocation5 + $0x197c] sm:$0xf]
    %v925 = vld [vmem:[#allocation7] sm:$0xff]
    %v926 = vld [vmem:[#allocation7 + $0x8] sm:$0xff]
    %v927 = vld [vmem:[#allocation7 + $0x10] sm:$0x1]
    %v931 = vlaneseq
    %v932 = vshrl.u32 %v931, 7
    %v933 = vsub.s32 0, %v932
    %v934 = vrot.slane %v925, %v933
    %v935 = vlaneseq
    %v936 = vshrl.u32 %v935, 7
    %v937 = vsub.s32 1, %v936
    %v938 = vrot.slane %v925, %v937
    %v939 = vlaneseq
    %v940 = vshrl.u32 %v939, 7
    %v941 = vsub.s32 2, %v940
    %v942 = vrot.slane %v925, %v941
    %v943 = vlaneseq
    %v944 = vshrl.u32 %v943, 7
    %v945 = vsub.s32 3, %v944
    %v946 = vrot.slane %v925, %v945
    %v947 = vlaneseq
    %v948 = vshrl.u32 %v947, 7
    %v949 = vsub.s32 4, %v948
    %v950 = vrot.slane %v925, %v949
    %v951 = vlaneseq
    %v952 = vshrl.u32 %v951, 7
    %v953 = vsub.s32 5, %v952
    %v954 = vrot.slane %v925, %v953
    %v955 = vlaneseq
    %v956 = vshrl.u32 %v955, 7
    %v957 = vsub.s32 6, %v956
    %v958 = vrot.slane %v925, %v957
    %v959 = vlaneseq
    %v960 = vshrl.u32 %v959, 7
    %v961 = vsub.s32 7, %v960
    %v962 = vrot.slane %v925, %v961
    %v963 = vlaneseq
    %v964 = vshrl.u32 %v963, 7
    %v965 = vsub.s32 0, %v964
    %v966 = vrot.slane %v926, %v965
    %v967 = vlaneseq
    %v968 = vshrl.u32 %v967, 7
    %v969 = vsub.s32 1, %v968
    %v970 = vrot.slane %v926, %v969
    %v971 = vlaneseq
    %v972 = vshrl.u32 %v971, 7
    %v973 = vsub.s32 2, %v972
    %v974 = vrot.slane %v926, %v973
    %v975 = vlaneseq
    %v976 = vshrl.u32 %v975, 7
    %v977 = vsub.s32 3, %v976
    %v978 = vrot.slane %v926, %v977
    %v979 = vlaneseq
    %v980 = vshrl.u32 %v979, 7
    %v981 = vsub.s32 4, %v980
    %v982 = vrot.slane %v926, %v981
    %v983 = vlaneseq
    %v984 = vshrl.u32 %v983, 7
    %v985 = vsub.s32 5, %v984
    %v986 = vrot.slane %v926, %v985
    %v987 = vlaneseq
    %v988 = vshrl.u32 %v987, 7
    %v989 = vsub.s32 6, %v988
    %v990 = vrot.slane %v926, %v989
    %v991 = vlaneseq
    %v992 = vshrl.u32 %v991, 7
    %v993 = vsub.s32 7, %v992
    %v994 = vrot.slane %v926, %v993
    %v995 = vlaneseq
    %v996 = vshrl.u32 %v995, 7
    %v997 = vsub.s32 0, %v996
    %v998 = vrot.slane %v927, %v997
    %v1022 = vunpack.c.l.b16 %v55
    %v1023 = vunpack.c.h.b16 %v55
    %v1024 = vunpack.c.l.b16 %v56
    %v1025 = vunpack.c.h.b16 %v56
    %v1026 = vunpack.c.l.b16 %v57
    %v1027 = vunpack.c.h.b16 %v57
    %v1028 = vunpack.c.l.b16 %v58
    %v1029 = vunpack.c.h.b16 %v58
    %v1030 = vunpack.c.l.b16 %v59
    %v1031 = vunpack.c.h.b16 %v59
    %v1032 = vunpack.c.l.b16 %v60
    %v1033 = vunpack.c.h.b16 %v60
    %v1034 = vpack.c.b16 %v1028, %v1022
    %v1035 = vpack.c.b16 %v1029, %v1023
    %v1036 = vpack.c.b16 %v1030, %v1024
    %v1037 = vpack.c.b16 %v1031, %v1025
    %v1038 = vpack.c.b16 %v1032, %v1026
    %v1039 = vpack.c.b16 %v1033, %v1027
    %v1910 = vunpack.c.l.b16 %v61
    %v1911 = vunpack.c.h.b16 %v61
    %v1912 = vunpack.c.l.b16 %v62
    %v1913 = vunpack.c.h.b16 %v62
    %v1914 = vunpack.c.l.b16 %v63
    %v1915 = vunpack.c.h.b16 %v63
    %v1916 = vunpack.c.l.b16 %v64
    %v1917 = vunpack.c.h.b16 %v64
    %v1918 = vunpack.c.l.b16 %v65
    %v1919 = vunpack.c.h.b16 %v65
    %v1920 = vunpack.c.l.b16 %v66
    %v1921 = vunpack.c.h.b16 %v66
    %v1922 = vunpack.c.l.b16 %v67
    %v1923 = vunpack.c.h.b16 %v67
    %v1924 = vunpack.c.l.b16 %v68
    %v1925 = vunpack.c.h.b16 %v68
    %v1926 = vunpack.c.l.b16 %v69
    %v1927 = vunpack.c.l.b16 %v70
    %v1928 = vunpack.c.h.b16 %v70
    %v1929 = vunpack.c.l.b16 %v71
    %v1930 = vunpack.c.h.b16 %v71
    %v1931 = vunpack.c.l.b16 %v72
    %v1932 = vunpack.c.h.b16 %v72
    %v1933 = vunpack.c.l.b16 %v73
    %v1934 = vunpack.c.h.b16 %v73
    %v1935 = vunpack.c.l.b16 %v74
    %v1936 = vunpack.c.h.b16 %v74
    %v1937 = vunpack.c.l.b16 %v75
    %v1938 = vunpack.c.h.b16 %v75
    %v1939 = vunpack.c.l.b16 %v76
    %v1940 = vunpack.c.h.b16 %v76
    %v1941 = vunpack.c.l.b16 %v77
    %v1942 = vunpack.c.h.b16 %v77
    %v1943 = vunpack.c.l.b16 %v78
    %v1944 = vunpack.c.l.b16 %v79
    %v1945 = vunpack.c.h.b16 %v79
    %v1946 = vunpack.c.l.b16 %v80
    %v1947 = vunpack.c.h.b16 %v80
    %v1948 = vunpack.c.l.b16 %v81
    %v1949 = vunpack.c.h.b16 %v81
    %v1950 = vunpack.c.l.b16 %v82
    %v1951 = vunpack.c.h.b16 %v82
    %v1952 = vunpack.c.l.b16 %v83
    %v1953 = vunpack.c.h.b16 %v83
    %v1954 = vunpack.c.l.b16 %v84
    %v1955 = vunpack.c.h.b16 %v84
    %v1956 = vunpack.c.l.b16 %v85
    %v1957 = vunpack.c.h.b16 %v85
    %v1958 = vunpack.c.l.b16 %v86
    %v1959 = vunpack.c.h.b16 %v86
    %v1960 = vunpack.c.l.b16 %v87
    %v1961 = vunpack.c.l.b16 %v88
    %v1962 = vunpack.c.h.b16 %v88
    %v1963 = vunpack.c.l.b16 %v89
    %v1964 = vunpack.c.h.b16 %v89
    %v1965 = vunpack.c.l.b16 %v90
    %v1966 = vunpack.c.h.b16 %v90
    %v1967 = vunpack.c.l.b16 %v91
    %v1968 = vunpack.c.h.b16 %v91
    %v1969 = vunpack.c.l.b16 %v92
    %v1970 = vunpack.c.h.b16 %v92
    %v1971 = vunpack.c.l.b16 %v93
    %v1972 = vunpack.c.h.b16 %v93
    %v1973 = vunpack.c.l.b16 %v94
    %v1974 = vunpack.c.h.b16 %v94
    %v1975 = vunpack.c.l.b16 %v95
    %v1976 = vunpack.c.h.b16 %v95
    %v1977 = vunpack.c.l.b16 %v96
    %v1978 = vunpack.c.l.b16 %v97
    %v1979 = vunpack.c.h.b16 %v97
    %v1980 = vunpack.c.l.b16 %v98
    %v1981 = vunpack.c.h.b16 %v98
    %v1982 = vunpack.c.l.b16 %v99
    %v1983 = vunpack.c.h.b16 %v99
    %v1984 = vunpack.c.l.b16 %v100
    %v1985 = vunpack.c.h.b16 %v100
    %v1986 = vunpack.c.l.b16 %v101
    %v1987 = vunpack.c.h.b16 %v101
    %v1988 = vunpack.c.l.b16 %v102
    %v1989 = vunpack.c.h.b16 %v102
    %v1990 = vunpack.c.l.b16 %v103
    %v1991 = vunpack.c.h.b16 %v103
    %v1992 = vunpack.c.l.b16 %v104
    %v1993 = vunpack.c.h.b16 %v104
    %v1994 = vunpack.c.l.b16 %v105
    %v1995 = vunpack.c.l.b16 %v106
    %v1996 = vunpack.c.h.b16 %v106
    %v1997 = vunpack.c.l.b16 %v107
    %v1998 = vunpack.c.h.b16 %v107
    %v1999 = vunpack.c.l.b16 %v108
    %v2000 = vunpack.c.h.b16 %v108
    %v2001 = vunpack.c.l.b16 %v109
    %v2002 = vunpack.c.h.b16 %v109
    %v2003 = vunpack.c.l.b16 %v110
    %v2004 = vunpack.c.h.b16 %v110
    %v2005 = vunpack.c.l.b16 %v111
    %v2006 = vunpack.c.h.b16 %v111
    %v2007 = vunpack.c.l.b16 %v112
    %v2008 = vunpack.c.h.b16 %v112
    %v2009 = vunpack.c.l.b16 %v113
    %v2010 = vunpack.c.h.b16 %v113
    %v2011 = vunpack.c.l.b16 %v114
    %v2012 = vunpack.c.l.b16 %v115
    %v2013 = vunpack.c.h.b16 %v115
    %v2014 = vunpack.c.l.b16 %v116
    %v2015 = vunpack.c.h.b16 %v116
    %v2016 = vunpack.c.l.b16 %v117
    %v2017 = vunpack.c.h.b16 %v117
    %v2018 = vunpack.c.l.b16 %v118
    %v2019 = vunpack.c.h.b16 %v118
    %v2020 = vunpack.c.l.b16 %v119
    %v2021 = vunpack.c.h.b16 %v119
    %v2022 = vunpack.c.l.b16 %v120
    %v2023 = vunpack.c.h.b16 %v120
    %v2024 = vunpack.c.l.b16 %v121
    %v2025 = vunpack.c.h.b16 %v121
    %v2026 = vunpack.c.l.b16 %v122
    %v2027 = vunpack.c.h.b16 %v122
    %v2028 = vunpack.c.l.b16 %v123
    %v2029 = vunpack.c.l.b16 %v124
    %v2030 = vunpack.c.h.b16 %v124
    %v2031 = vunpack.c.l.b16 %v125
    %v2032 = vunpack.c.h.b16 %v125
    %v2033 = vunpack.c.l.b16 %v126
    %v2034 = vunpack.c.h.b16 %v126
    %v2035 = vunpack.c.l.b16 %v127
    %v2036 = vunpack.c.h.b16 %v127
    %v2037 = vunpack.c.l.b16 %v128
    %v2038 = vunpack.c.h.b16 %v128
    %v2039 = vunpack.c.l.b16 %v129
    %v2040 = vunpack.c.h.b16 %v129
    %v2041 = vunpack.c.l.b16 %v130
    %v2042 = vunpack.c.h.b16 %v130
    %v2043 = vunpack.c.l.b16 %v131
    %v2044 = vunpack.c.h.b16 %v131
    %v2045 = vunpack.c.l.b16 %v132
    %v2046 = vunpack.c.l.b16 %v133
    %v2047 = vunpack.c.h.b16 %v133
    %v2048 = vunpack.c.l.b16 %v134
    %v2049 = vunpack.c.h.b16 %v134
    %v2050 = vunpack.c.l.b16 %v135
    %v2051 = vunpack.c.h.b16 %v135
    %v2052 = vunpack.c.l.b16 %v136
    %v2053 = vunpack.c.h.b16 %v136
    %v2054 = vunpack.c.l.b16 %v137
    %v2055 = vunpack.c.h.b16 %v137
    %v2056 = vunpack.c.l.b16 %v138
    %v2057 = vunpack.c.h.b16 %v138
    %v2058 = vunpack.c.l.b16 %v139
    %v2059 = vunpack.c.h.b16 %v139
    %v2060 = vunpack.c.l.b16 %v140
    %v2061 = vunpack.c.h.b16 %v140
    %v2062 = vunpack.c.l.b16 %v141
    %v2063 = vunpack.c.l.b16 %v142
    %v2064 = vunpack.c.h.b16 %v142
    %v2065 = vunpack.c.l.b16 %v143
    %v2066 = vunpack.c.h.b16 %v143
    %v2067 = vunpack.c.l.b16 %v144
    %v2068 = vunpack.c.h.b16 %v144
    %v2069 = vunpack.c.l.b16 %v145
    %v2070 = vunpack.c.h.b16 %v145
    %v2071 = vunpack.c.l.b16 %v146
    %v2072 = vunpack.c.h.b16 %v146
    %v2073 = vunpack.c.l.b16 %v147
    %v2074 = vunpack.c.h.b16 %v147
    %v2075 = vunpack.c.l.b16 %v148
    %v2076 = vunpack.c.h.b16 %v148
    %v2077 = vunpack.c.l.b16 %v149
    %v2078 = vunpack.c.h.b16 %v149
    %v2079 = vunpack.c.l.b16 %v150
    %v2080 = vunpack.c.l.b16 %v151
    %v2081 = vunpack.c.h.b16 %v151
    %v2082 = vunpack.c.l.b16 %v152
    %v2083 = vunpack.c.h.b16 %v152
    %v2084 = vunpack.c.l.b16 %v153
    %v2085 = vunpack.c.h.b16 %v153
    %v2086 = vunpack.c.l.b16 %v154
    %v2087 = vunpack.c.h.b16 %v154
    %v2088 = vunpack.c.l.b16 %v155
    %v2089 = vunpack.c.h.b16 %v155
    %v2090 = vunpack.c.l.b16 %v156
    %v2091 = vunpack.c.h.b16 %v156
    %v2092 = vunpack.c.l.b16 %v157
    %v2093 = vunpack.c.h.b16 %v157
    %v2094 = vunpack.c.l.b16 %v158
    %v2095 = vunpack.c.h.b16 %v158
    %v2096 = vunpack.c.l.b16 %v159
    %v2097 = vunpack.c.l.b16 %v160
    %v2098 = vunpack.c.h.b16 %v160
    %v2099 = vunpack.c.l.b16 %v161
    %v2100 = vunpack.c.h.b16 %v161
    %v2101 = vunpack.c.l.b16 %v162
    %v2102 = vunpack.c.h.b16 %v162
    %v2103 = vunpack.c.l.b16 %v163
    %v2104 = vunpack.c.h.b16 %v163
    %v2105 = vunpack.c.l.b16 %v164
    %v2106 = vunpack.c.h.b16 %v164
    %v2107 = vunpack.c.l.b16 %v165
    %v2108 = vunpack.c.h.b16 %v165
    %v2109 = vunpack.c.l.b16 %v166
    %v2110 = vunpack.c.h.b16 %v166
    %v2111 = vunpack.c.l.b16 %v167
    %v2112 = vunpack.c.h.b16 %v167
    %v2113 = vunpack.c.l.b16 %v168
    %v2114 = vunpack.c.l.b16 %v169
    %v2115 = vunpack.c.h.b16 %v169
    %v2116 = vunpack.c.l.b16 %v170
    %v2117 = vunpack.c.h.b16 %v170
    %v2118 = vunpack.c.l.b16 %v171
    %v2119 = vunpack.c.h.b16 %v171
    %v2120 = vunpack.c.l.b16 %v172
    %v2121 = vunpack.c.h.b16 %v172
    %v2122 = vunpack.c.l.b16 %v173
    %v2123 = vunpack.c.h.b16 %v173
    %v2124 = vunpack.c.l.b16 %v174
    %v2125 = vunpack.c.h.b16 %v174
    %v2126 = vunpack.c.l.b16 %v175
    %v2127 = vunpack.c.h.b16 %v175
    %v2128 = vunpack.c.l.b16 %v176
    %v2129 = vunpack.c.h.b16 %v176
    %v2130 = vunpack.c.l.b16 %v177
    %v2131 = vunpack.c.l.b16 %v178
    %v2132 = vunpack.c.h.b16 %v178
    %v2133 = vunpack.c.l.b16 %v179
    %v2134 = vunpack.c.h.b16 %v179
    %v2135 = vunpack.c.l.b16 %v180
    %v2136 = vunpack.c.h.b16 %v180
    %v2137 = vunpack.c.l.b16 %v181
    %v2138 = vunpack.c.h.b16 %v181
    %v2139 = vunpack.c.l.b16 %v182
    %v2140 = vunpack.c.h.b16 %v182
    %v2141 = vunpack.c.l.b16 %v183
    %v2142 = vunpack.c.h.b16 %v183
    %v2143 = vunpack.c.l.b16 %v184
    %v2144 = vunpack.c.h.b16 %v184
    %v2145 = vunpack.c.l.b16 %v185
    %v2146 = vunpack.c.h.b16 %v185
    %v2147 = vunpack.c.l.b16 %v186
    %v2148 = vunpack.c.l.b16 %v187
    %v2149 = vunpack.c.h.b16 %v187
    %v2150 = vunpack.c.l.b16 %v188
    %v2151 = vunpack.c.h.b16 %v188
    %v2152 = vunpack.c.l.b16 %v189
    %v2153 = vunpack.c.h.b16 %v189
    %v2154 = vunpack.c.l.b16 %v190
    %v2155 = vunpack.c.h.b16 %v190
    %v2156 = vunpack.c.l.b16 %v191
    %v2157 = vunpack.c.h.b16 %v191
    %v2158 = vunpack.c.l.b16 %v192
    %v2159 = vunpack.c.h.b16 %v192
    %v2160 = vunpack.c.l.b16 %v193
    %v2161 = vunpack.c.h.b16 %v193
    %v2162 = vunpack.c.l.b16 %v194
    %v2163 = vunpack.c.h.b16 %v194
    %v2164 = vunpack.c.l.b16 %v195
    %v2165 = vunpack.c.l.b16 %v196
    %v2166 = vunpack.c.h.b16 %v196
    %v2167 = vunpack.c.l.b16 %v197
    %v2168 = vunpack.c.h.b16 %v197
    %v2169 = vunpack.c.l.b16 %v198
    %v2170 = vunpack.c.h.b16 %v198
    %v2171 = vunpack.c.l.b16 %v199
    %v2172 = vunpack.c.h.b16 %v199
    %v2173 = vunpack.c.l.b16 %v200
    %v2174 = vunpack.c.h.b16 %v200
    %v2175 = vunpack.c.l.b16 %v201
    %v2176 = vunpack.c.h.b16 %v201
    %v2177 = vunpack.c.l.b16 %v202
    %v2178 = vunpack.c.h.b16 %v202
    %v2179 = vunpack.c.l.b16 %v203
    %v2180 = vunpack.c.h.b16 %v203
    %v2181 = vunpack.c.l.b16 %v204
    %v2182 = vunpack.c.l.b16 %v205
    %v2183 = vunpack.c.h.b16 %v205
    %v2184 = vunpack.c.l.b16 %v206
    %v2185 = vunpack.c.h.b16 %v206
    %v2186 = vunpack.c.l.b16 %v207
    %v2187 = vunpack.c.h.b16 %v207
    %v2188 = vunpack.c.l.b16 %v208
    %v2189 = vunpack.c.h.b16 %v208
    %v2190 = vunpack.c.l.b16 %v209
    %v2191 = vunpack.c.h.b16 %v209
    %v2192 = vunpack.c.l.b16 %v210
    %v2193 = vunpack.c.h.b16 %v210
    %v2194 = vunpack.c.l.b16 %v211
    %v2195 = vunpack.c.h.b16 %v211
    %v2196 = vunpack.c.l.b16 %v212
    %v2197 = vunpack.c.h.b16 %v212
    %v2198 = vunpack.c.l.b16 %v213
    %v2199 = vunpack.c.l.b16 %v214
    %v2200 = vunpack.c.h.b16 %v214
    %v2201 = vunpack.c.l.b16 %v215
    %v2202 = vunpack.c.h.b16 %v215
    %v2203 = vunpack.c.l.b16 %v216
    %v2204 = vunpack.c.h.b16 %v216
    %v2205 = vunpack.c.l.b16 %v217
    %v2206 = vunpack.c.h.b16 %v217
    %v2207 = vunpack.c.l.b16 %v218
    %v2208 = vunpack.c.h.b16 %v218
    %v2209 = vunpack.c.l.b16 %v219
    %v2210 = vunpack.c.h.b16 %v219
    %v2211 = vunpack.c.l.b16 %v220
    %v2212 = vunpack.c.h.b16 %v220
    %v2213 = vunpack.c.l.b16 %v221
    %v2214 = vunpack.c.h.b16 %v221
    %v2215 = vunpack.c.l.b16 %v222
    %v2216 = vunpack.c.l.b16 %v223
    %v2217 = vunpack.c.h.b16 %v223
    %v2218 = vunpack.c.l.b16 %v224
    %v2219 = vunpack.c.h.b16 %v224
    %v2220 = vunpack.c.l.b16 %v225
    %v2221 = vunpack.c.h.b16 %v225
    %v2222 = vunpack.c.l.b16 %v226
    %v2223 = vunpack.c.h.b16 %v226
    %v2224 = vunpack.c.l.b16 %v227
    %v2225 = vunpack.c.h.b16 %v227
    %v2226 = vunpack.c.l.b16 %v228
    %v2227 = vunpack.c.h.b16 %v228
    %v2228 = vunpack.c.l.b16 %v229
    %v2229 = vunpack.c.h.b16 %v229
    %v2230 = vunpack.c.l.b16 %v230
    %v2231 = vunpack.c.h.b16 %v230
    %v2232 = vunpack.c.l.b16 %v231
    %v2233 = vunpack.c.l.b16 %v232
    %v2234 = vunpack.c.h.b16 %v232
    %v2235 = vunpack.c.l.b16 %v233
    %v2236 = vunpack.c.h.b16 %v233
    %v2237 = vunpack.c.l.b16 %v234
    %v2238 = vunpack.c.h.b16 %v234
    %v2239 = vunpack.c.l.b16 %v235
    %v2240 = vunpack.c.h.b16 %v235
    %v2241 = vunpack.c.l.b16 %v236
    %v2242 = vunpack.c.h.b16 %v236
    %v2243 = vunpack.c.l.b16 %v237
    %v2244 = vunpack.c.h.b16 %v237
    %v2245 = vunpack.c.l.b16 %v238
    %v2246 = vunpack.c.h.b16 %v238
    %v2247 = vunpack.c.l.b16 %v239
    %v2248 = vunpack.c.h.b16 %v239
    %v2249 = vunpack.c.l.b16 %v240
    %v2250 = vunpack.c.l.b16 %v241
    %v2251 = vunpack.c.h.b16 %v241
    %v2252 = vunpack.c.l.b16 %v242
    %v2253 = vunpack.c.h.b16 %v242
    %v2254 = vunpack.c.l.b16 %v243
    %v2255 = vunpack.c.h.b16 %v243
    %v2256 = vunpack.c.l.b16 %v244
    %v2257 = vunpack.c.h.b16 %v244
    %v2258 = vunpack.c.l.b16 %v245
    %v2259 = vunpack.c.h.b16 %v245
    %v2260 = vunpack.c.l.b16 %v246
    %v2261 = vunpack.c.h.b16 %v246
    %v2262 = vunpack.c.l.b16 %v247
    %v2263 = vunpack.c.h.b16 %v247
    %v2264 = vunpack.c.l.b16 %v248
    %v2265 = vunpack.c.h.b16 %v248
    %v2266 = vunpack.c.l.b16 %v249
    %v2267 = vunpack.c.l.b16 %v250
    %v2268 = vunpack.c.h.b16 %v250
    %v2269 = vunpack.c.l.b16 %v251
    %v2270 = vunpack.c.h.b16 %v251
    %v2271 = vunpack.c.l.b16 %v252
    %v2272 = vunpack.c.h.b16 %v252
    %v2273 = vunpack.c.l.b16 %v253
    %v2274 = vunpack.c.h.b16 %v253
    %v2275 = vunpack.c.l.b16 %v254
    %v2276 = vunpack.c.h.b16 %v254
    %v2277 = vunpack.c.l.b16 %v255
    %v2278 = vunpack.c.h.b16 %v255
    %v2279 = vunpack.c.l.b16 %v256
    %v2280 = vunpack.c.h.b16 %v256
    %v2281 = vunpack.c.l.b16 %v257
    %v2282 = vunpack.c.h.b16 %v257
    %v2283 = vunpack.c.l.b16 %v258
    %v2284 = vunpack.c.l.b16 %v259
    %v2285 = vunpack.c.h.b16 %v259
    %v2286 = vunpack.c.l.b16 %v260
    %v2287 = vunpack.c.h.b16 %v260
    %v2288 = vunpack.c.l.b16 %v261
    %v2289 = vunpack.c.h.b16 %v261
    %v2290 = vunpack.c.l.b16 %v262
    %v2291 = vunpack.c.h.b16 %v262
    %v2292 = vunpack.c.l.b16 %v263
    %v2293 = vunpack.c.h.b16 %v263
    %v2294 = vunpack.c.l.b16 %v264
    %v2295 = vunpack.c.h.b16 %v264
    %v2296 = vunpack.c.l.b16 %v265
    %v2297 = vunpack.c.h.b16 %v265
    %v2298 = vunpack.c.l.b16 %v266
    %v2299 = vunpack.c.h.b16 %v266
    %v2300 = vunpack.c.l.b16 %v267
    %v2301 = vunpack.c.l.b16 %v268
    %v2302 = vunpack.c.h.b16 %v268
    %v2303 = vunpack.c.l.b16 %v269
    %v2304 = vunpack.c.h.b16 %v269
    %v2305 = vunpack.c.l.b16 %v270
    %v2306 = vunpack.c.h.b16 %v270
    %v2307 = vunpack.c.l.b16 %v271
    %v2308 = vunpack.c.h.b16 %v271
    %v2309 = vunpack.c.l.b16 %v272
    %v2310 = vunpack.c.h.b16 %v272
    %v2311 = vunpack.c.l.b16 %v273
    %v2312 = vunpack.c.h.b16 %v273
    %v2313 = vunpack.c.l.b16 %v274
    %v2314 = vunpack.c.h.b16 %v274
    %v2315 = vunpack.c.l.b16 %v275
    %v2316 = vunpack.c.h.b16 %v275
    %v2317 = vunpack.c.l.b16 %v276
    %v2318 = vunpack.c.l.b16 %v277
    %v2319 = vunpack.c.h.b16 %v277
    %v2320 = vunpack.c.l.b16 %v278
    %v2321 = vunpack.c.h.b16 %v278
    %v2322 = vunpack.c.l.b16 %v279
    %v2323 = vunpack.c.h.b16 %v279
    %v2324 = vunpack.c.l.b16 %v280
    %v2325 = vunpack.c.h.b16 %v280
    %v2326 = vunpack.c.l.b16 %v281
    %v2327 = vunpack.c.h.b16 %v281
    %v2328 = vunpack.c.l.b16 %v282
    %v2329 = vunpack.c.h.b16 %v282
    %v2330 = vunpack.c.l.b16 %v283
    %v2331 = vunpack.c.h.b16 %v283
    %v2332 = vunpack.c.l.b16 %v284
    %v2333 = vunpack.c.h.b16 %v284
    %v2334 = vunpack.c.l.b16 %v285
    %v2335 = vunpack.c.l.b16 %v286
    %v2336 = vunpack.c.h.b16 %v286
    %v2337 = vunpack.c.l.b16 %v287
    %v2338 = vunpack.c.h.b16 %v287
    %v2339 = vunpack.c.l.b16 %v288
    %v2340 = vunpack.c.h.b16 %v288
    %v2341 = vunpack.c.l.b16 %v289
    %v2342 = vunpack.c.h.b16 %v289
    %v2343 = vunpack.c.l.b16 %v290
    %v2344 = vunpack.c.h.b16 %v290
    %v2345 = vunpack.c.l.b16 %v291
    %v2346 = vunpack.c.h.b16 %v291
    %v2347 = vunpack.c.l.b16 %v292
    %v2348 = vunpack.c.h.b16 %v292
    %v2349 = vunpack.c.l.b16 %v293
    %v2350 = vunpack.c.h.b16 %v293
    %v2351 = vunpack.c.l.b16 %v294
    %v2352 = vunpack.c.l.b16 %v295
    %v2353 = vunpack.c.h.b16 %v295
    %v2354 = vunpack.c.l.b16 %v296
    %v2355 = vunpack.c.h.b16 %v296
    %v2356 = vunpack.c.l.b16 %v297
    %v2357 = vunpack.c.h.b16 %v297
    %v2358 = vunpack.c.l.b16 %v298
    %v2359 = vunpack.c.h.b16 %v298
    %v2360 = vunpack.c.l.b16 %v299
    %v2361 = vunpack.c.h.b16 %v299
    %v2362 = vunpack.c.l.b16 %v300
    %v2363 = vunpack.c.h.b16 %v300
    %v2364 = vunpack.c.l.b16 %v301
    %v2365 = vunpack.c.h.b16 %v301
    %v2366 = vunpack.c.l.b16 %v302
    %v2367 = vunpack.c.h.b16 %v302
    %v2368 = vunpack.c.l.b16 %v303
    %v2369 = vunpack.c.l.b16 %v304
    %v2370 = vunpack.c.h.b16 %v304
    %v2371 = vunpack.c.l.b16 %v305
    %v2372 = vunpack.c.h.b16 %v305
    %v2373 = vunpack.c.l.b16 %v306
    %v2374 = vunpack.c.h.b16 %v306
    %v2375 = vunpack.c.l.b16 %v307
    %v2376 = vunpack.c.h.b16 %v307
    %v2377 = vunpack.c.l.b16 %v308
    %v2378 = vunpack.c.h.b16 %v308
    %v2379 = vunpack.c.l.b16 %v309
    %v2380 = vunpack.c.h.b16 %v309
    %v2381 = vunpack.c.l.b16 %v310
    %v2382 = vunpack.c.h.b16 %v310
    %v2383 = vunpack.c.l.b16 %v311
    %v2384 = vunpack.c.h.b16 %v311
    %v2385 = vunpack.c.l.b16 %v312
    %v2386 = vunpack.c.l.b16 %v313
    %v2387 = vunpack.c.h.b16 %v313
    %v2388 = vunpack.c.l.b16 %v314
    %v2389 = vunpack.c.h.b16 %v314
    %v2390 = vunpack.c.l.b16 %v315
    %v2391 = vunpack.c.h.b16 %v315
    %v2392 = vunpack.c.l.b16 %v316
    %v2393 = vunpack.c.h.b16 %v316
    %v2394 = vunpack.c.l.b16 %v317
    %v2395 = vunpack.c.h.b16 %v317
    %v2396 = vunpack.c.l.b16 %v318
    %v2397 = vunpack.c.h.b16 %v318
    %v2398 = vunpack.c.l.b16 %v319
    %v2399 = vunpack.c.h.b16 %v319
    %v2400 = vunpack.c.l.b16 %v320
    %v2401 = vunpack.c.h.b16 %v320
    %v2402 = vunpack.c.l.b16 %v321
    %v2403 = vunpack.c.l.b16 %v322
    %v2404 = vunpack.c.h.b16 %v322
    %v2405 = vunpack.c.l.b16 %v323
    %v2406 = vunpack.c.h.b16 %v323
    %v2407 = vunpack.c.l.b16 %v324
    %v2408 = vunpack.c.h.b16 %v324
    %v2409 = vunpack.c.l.b16 %v325
    %v2410 = vunpack.c.h.b16 %v325
    %v2411 = vunpack.c.l.b16 %v326
    %v2412 = vunpack.c.h.b16 %v326
    %v2413 = vunpack.c.l.b16 %v327
    %v2414 = vunpack.c.h.b16 %v327
    %v2415 = vunpack.c.l.b16 %v328
    %v2416 = vunpack.c.h.b16 %v328
    %v2417 = vunpack.c.l.b16 %v329
    %v2418 = vunpack.c.h.b16 %v329
    %v2419 = vunpack.c.l.b16 %v330
    %v2420 = vunpack.c.l.b16 %v331
    %v2421 = vunpack.c.h.b16 %v331
    %v2422 = vunpack.c.l.b16 %v332
    %v2423 = vunpack.c.h.b16 %v332
    %v2424 = vunpack.c.l.b16 %v333
    %v2425 = vunpack.c.h.b16 %v333
    %v2426 = vunpack.c.l.b16 %v334
    %v2427 = vunpack.c.h.b16 %v334
    %v2428 = vunpack.c.l.b16 %v335
    %v2429 = vunpack.c.h.b16 %v335
    %v2430 = vunpack.c.l.b16 %v336
    %v2431 = vunpack.c.h.b16 %v336
    %v2432 = vunpack.c.l.b16 %v337
    %v2433 = vunpack.c.h.b16 %v337
    %v2434 = vunpack.c.l.b16 %v338
    %v2435 = vunpack.c.h.b16 %v338
    %v2436 = vunpack.c.l.b16 %v339
    %v2437 = vunpack.c.l.b16 %v340
    %v2438 = vunpack.c.h.b16 %v340
    %v2439 = vunpack.c.l.b16 %v341
    %v2440 = vunpack.c.h.b16 %v341
    %v2441 = vunpack.c.l.b16 %v342
    %v2442 = vunpack.c.h.b16 %v342
    %v2443 = vunpack.c.l.b16 %v343
    %v2444 = vunpack.c.h.b16 %v343
    %v2445 = vunpack.c.l.b16 %v344
    %v2446 = vunpack.c.h.b16 %v344
    %v2447 = vunpack.c.l.b16 %v345
    %v2448 = vunpack.c.h.b16 %v345
    %v2449 = vunpack.c.l.b16 %v346
    %v2450 = vunpack.c.h.b16 %v346
    %v2451 = vunpack.c.l.b16 %v347
    %v2452 = vunpack.c.h.b16 %v347
    %v2453 = vunpack.c.l.b16 %v348
    %v2454 = vunpack.c.l.b16 %v349
    %v2455 = vunpack.c.h.b16 %v349
    %v2456 = vunpack.c.l.b16 %v350
    %v2457 = vunpack.c.h.b16 %v350
    %v2458 = vunpack.c.l.b16 %v351
    %v2459 = vunpack.c.h.b16 %v351
    %v2460 = vunpack.c.l.b16 %v352
    %v2461 = vunpack.c.h.b16 %v352
    %v2462 = vunpack.c.l.b16 %v353
    %v2463 = vunpack.c.h.b16 %v353
    %v2464 = vunpack.c.l.b16 %v354
    %v2465 = vunpack.c.h.b16 %v354
    %v2466 = vunpack.c.l.b16 %v355
    %v2467 = vunpack.c.h.b16 %v355
    %v2468 = vunpack.c.l.b16 %v356
    %v2469 = vunpack.c.h.b16 %v356
    %v2470 = vunpack.c.l.b16 %v357
    %v2471 = vunpack.c.l.b16 %v358
    %v2472 = vunpack.c.h.b16 %v358
    %v2473 = vunpack.c.l.b16 %v359
    %v2474 = vunpack.c.h.b16 %v359
    %v2475 = vunpack.c.l.b16 %v360
    %v2476 = vunpack.c.h.b16 %v360
    %v2477 = vunpack.c.l.b16 %v361
    %v2478 = vunpack.c.h.b16 %v361
    %v2479 = vunpack.c.l.b16 %v362
    %v2480 = vunpack.c.h.b16 %v362
    %v2481 = vunpack.c.l.b16 %v363
    %v2482 = vunpack.c.h.b16 %v363
    %v2483 = vunpack.c.l.b16 %v364
    %v2484 = vunpack.c.h.b16 %v364
    %v2485 = vunpack.c.l.b16 %v365
    %v2486 = vunpack.c.h.b16 %v365
    %v2487 = vunpack.c.l.b16 %v366
    %v2488 = vunpack.c.l.b16 %v367
    %v2489 = vunpack.c.h.b16 %v367
    %v2490 = vunpack.c.l.b16 %v368
    %v2491 = vunpack.c.h.b16 %v368
    %v2492 = vunpack.c.l.b16 %v369
    %v2493 = vunpack.c.h.b16 %v369
    %v2494 = vunpack.c.l.b16 %v370
    %v2495 = vunpack.c.h.b16 %v370
    %v2496 = vunpack.c.l.b16 %v371
    %v2497 = vunpack.c.h.b16 %v371
    %v2498 = vunpack.c.l.b16 %v372
    %v2499 = vunpack.c.h.b16 %v372
    %v2500 = vunpack.c.l.b16 %v373
    %v2501 = vunpack.c.h.b16 %v373
    %v2502 = vunpack.c.l.b16 %v374
    %v2503 = vunpack.c.h.b16 %v374
    %v2504 = vunpack.c.l.b16 %v375
    %v2505 = vunpack.c.l.b16 %v376
    %v2506 = vunpack.c.h.b16 %v376
    %v2507 = vunpack.c.l.b16 %v377
    %v2508 = vunpack.c.h.b16 %v377
    %v2509 = vunpack.c.l.b16 %v378
    %v2510 = vunpack.c.h.b16 %v378
    %v2511 = vunpack.c.l.b16 %v379
    %v2512 = vunpack.c.h.b16 %v379
    %v2513 = vunpack.c.l.b16 %v380
    %v2514 = vunpack.c.h.b16 %v380
    %v2515 = vunpack.c.l.b16 %v381
    %v2516 = vunpack.c.h.b16 %v381
    %v2517 = vunpack.c.l.b16 %v382
    %v2518 = vunpack.c.h.b16 %v382
    %v2519 = vunpack.c.l.b16 %v383
    %v2520 = vunpack.c.h.b16 %v383
    %v2521 = vunpack.c.l.b16 %v384
    %v2522 = vunpack.c.l.b16 %v385
    %v2523 = vunpack.c.h.b16 %v385
    %v2524 = vunpack.c.l.b16 %v386
    %v2525 = vunpack.c.h.b16 %v386
    %v2526 = vunpack.c.l.b16 %v387
    %v2527 = vunpack.c.h.b16 %v387
    %v2528 = vunpack.c.l.b16 %v388
    %v2529 = vunpack.c.h.b16 %v388
    %v2530 = vunpack.c.l.b16 %v389
    %v2531 = vunpack.c.h.b16 %v389
    %v2532 = vunpack.c.l.b16 %v390
    %v2533 = vunpack.c.h.b16 %v390
    %v2534 = vunpack.c.l.b16 %v391
    %v2535 = vunpack.c.h.b16 %v391
    %v2536 = vunpack.c.l.b16 %v392
    %v2537 = vunpack.c.h.b16 %v392
    %v2538 = vunpack.c.l.b16 %v393
    %v2539 = vunpack.c.l.b16 %v394
    %v2540 = vunpack.c.h.b16 %v394
    %v2541 = vunpack.c.l.b16 %v395
    %v2542 = vunpack.c.h.b16 %v395
    %v2543 = vunpack.c.l.b16 %v396
    %v2544 = vunpack.c.h.b16 %v396
    %v2545 = vunpack.c.l.b16 %v397
    %v2546 = vunpack.c.h.b16 %v397
    %v2547 = vunpack.c.l.b16 %v398
    %v2548 = vunpack.c.h.b16 %v398
    %v2549 = vunpack.c.l.b16 %v399
    %v2550 = vunpack.c.h.b16 %v399
    %v2551 = vunpack.c.l.b16 %v400
    %v2552 = vunpack.c.h.b16 %v400
    %v2553 = vunpack.c.l.b16 %v401
    %v2554 = vunpack.c.h.b16 %v401
    %v2555 = vunpack.c.l.b16 %v402
    %v2556 = vunpack.c.l.b16 %v403
    %v2557 = vunpack.c.h.b16 %v403
    %v2558 = vunpack.c.l.b16 %v404
    %v2559 = vunpack.c.h.b16 %v404
    %v2560 = vunpack.c.l.b16 %v405
    %v2561 = vunpack.c.h.b16 %v405
    %v2562 = vunpack.c.l.b16 %v406
    %v2563 = vunpack.c.h.b16 %v406
    %v2564 = vunpack.c.l.b16 %v407
    %v2565 = vunpack.c.h.b16 %v407
    %v2566 = vunpack.c.l.b16 %v408
    %v2567 = vunpack.c.h.b16 %v408
    %v2568 = vunpack.c.l.b16 %v409
    %v2569 = vunpack.c.h.b16 %v409
    %v2570 = vunpack.c.l.b16 %v410
    %v2571 = vunpack.c.h.b16 %v410
    %v2572 = vunpack.c.l.b16 %v411
    %v2573 = vunpack.c.l.b16 %v412
    %v2574 = vunpack.c.h.b16 %v412
    %v2575 = vunpack.c.l.b16 %v413
    %v2576 = vunpack.c.h.b16 %v413
    %v2577 = vunpack.c.l.b16 %v414
    %v2578 = vunpack.c.h.b16 %v414
    %v2579 = vunpack.c.l.b16 %v415
    %v2580 = vunpack.c.h.b16 %v415
    %v2581 = vunpack.c.l.b16 %v416
    %v2582 = vunpack.c.h.b16 %v416
    %v2583 = vunpack.c.l.b16 %v417
    %v2584 = vunpack.c.h.b16 %v417
    %v2585 = vunpack.c.l.b16 %v418
    %v2586 = vunpack.c.h.b16 %v418
    %v2587 = vunpack.c.l.b16 %v419
    %v2588 = vunpack.c.h.b16 %v419
    %v2589 = vunpack.c.l.b16 %v420
    %v2590 = vunpack.c.l.b16 %v421
    %v2591 = vunpack.c.h.b16 %v421
    %v2592 = vunpack.c.l.b16 %v422
    %v2593 = vunpack.c.h.b16 %v422
    %v2594 = vunpack.c.l.b16 %v423
    %v2595 = vunpack.c.h.b16 %v423
    %v2596 = vunpack.c.l.b16 %v424
    %v2597 = vunpack.c.h.b16 %v424
    %v2598 = vunpack.c.l.b16 %v425
    %v2599 = vunpack.c.h.b16 %v425
    %v2600 = vunpack.c.l.b16 %v426
    %v2601 = vunpack.c.h.b16 %v426
    %v2602 = vunpack.c.l.b16 %v427
    %v2603 = vunpack.c.h.b16 %v427
    %v2604 = vunpack.c.l.b16 %v428
    %v2605 = vunpack.c.h.b16 %v428
    %v2606 = vunpack.c.l.b16 %v429
    %v2607 = vunpack.c.l.b16 %v430
    %v2608 = vunpack.c.h.b16 %v430
    %v2609 = vunpack.c.l.b16 %v431
    %v2610 = vunpack.c.h.b16 %v431
    %v2611 = vunpack.c.l.b16 %v432
    %v2612 = vunpack.c.h.b16 %v432
    %v2613 = vunpack.c.l.b16 %v433
    %v2614 = vunpack.c.h.b16 %v433
    %v2615 = vunpack.c.l.b16 %v434
    %v2616 = vunpack.c.h.b16 %v434
    %v2617 = vunpack.c.l.b16 %v435
    %v2618 = vunpack.c.h.b16 %v435
    %v2619 = vunpack.c.l.b16 %v436
    %v2620 = vunpack.c.h.b16 %v436
    %v2621 = vunpack.c.l.b16 %v437
    %v2622 = vunpack.c.h.b16 %v437
    %v2623 = vunpack.c.l.b16 %v438
    %v2624 = vunpack.c.l.b16 %v439
    %v2625 = vunpack.c.h.b16 %v439
    %v2626 = vunpack.c.l.b16 %v440
    %v2627 = vunpack.c.h.b16 %v440
    %v2628 = vunpack.c.l.b16 %v441
    %v2629 = vunpack.c.h.b16 %v441
    %v2630 = vunpack.c.l.b16 %v442
    %v2631 = vunpack.c.h.b16 %v442
    %v2632 = vunpack.c.l.b16 %v443
    %v2633 = vunpack.c.h.b16 %v443
    %v2634 = vunpack.c.l.b16 %v444
    %v2635 = vunpack.c.h.b16 %v444
    %v2636 = vunpack.c.l.b16 %v445
    %v2637 = vunpack.c.h.b16 %v445
    %v2638 = vunpack.c.l.b16 %v446
    %v2639 = vunpack.c.h.b16 %v446
    %v2640 = vunpack.c.l.b16 %v447
    %v2641 = vunpack.c.l.b16 %v448
    %v2642 = vunpack.c.h.b16 %v448
    %v2643 = vunpack.c.l.b16 %v449
    %v2644 = vunpack.c.h.b16 %v449
    %v2645 = vunpack.c.l.b16 %v450
    %v2646 = vunpack.c.h.b16 %v450
    %v2647 = vunpack.c.l.b16 %v451
    %v2648 = vunpack.c.h.b16 %v451
    %v2649 = vunpack.c.l.b16 %v452
    %v2650 = vunpack.c.h.b16 %v452
    %v2651 = vunpack.c.l.b16 %v453
    %v2652 = vunpack.c.h.b16 %v453
    %v2653 = vunpack.c.l.b16 %v454
    %v2654 = vunpack.c.h.b16 %v454
    %v2655 = vunpack.c.l.b16 %v455
    %v2656 = vunpack.c.h.b16 %v455
    %v2657 = vunpack.c.l.b16 %v456
    %v2658 = vunpack.c.l.b16 %v457
    %v2659 = vunpack.c.h.b16 %v457
    %v2660 = vunpack.c.l.b16 %v458
    %v2661 = vunpack.c.h.b16 %v458
    %v2662 = vunpack.c.l.b16 %v459
    %v2663 = vunpack.c.h.b16 %v459
    %v2664 = vunpack.c.l.b16 %v460
    %v2665 = vunpack.c.h.b16 %v460
    %v2666 = vunpack.c.l.b16 %v461
    %v2667 = vunpack.c.h.b16 %v461
    %v2668 = vunpack.c.l.b16 %v462
    %v2669 = vunpack.c.h.b16 %v462
    %v2670 = vunpack.c.l.b16 %v463
    %v2671 = vunpack.c.h.b16 %v463
    %v2672 = vunpack.c.l.b16 %v464
    %v2673 = vunpack.c.h.b16 %v464
    %v2674 = vunpack.c.l.b16 %v465
    %v2675 = vunpack.c.l.b16 %v466
    %v2676 = vunpack.c.h.b16 %v466
    %v2677 = vunpack.c.l.b16 %v467
    %v2678 = vunpack.c.h.b16 %v467
    %v2679 = vunpack.c.l.b16 %v468
    %v2680 = vunpack.c.h.b16 %v468
    %v2681 = vunpack.c.l.b16 %v469
    %v2682 = vunpack.c.h.b16 %v469
    %v2683 = vunpack.c.l.b16 %v470
    %v2684 = vunpack.c.h.b16 %v470
    %v2685 = vunpack.c.l.b16 %v471
    %v2686 = vunpack.c.h.b16 %v471
    %v2687 = vunpack.c.l.b16 %v472
    %v2688 = vunpack.c.h.b16 %v472
    %v2689 = vunpack.c.l.b16 %v473
    %v2690 = vunpack.c.h.b16 %v473
    %v2691 = vunpack.c.l.b16 %v474
    %v2692 = vunpack.c.l.b16 %v475
    %v2693 = vunpack.c.h.b16 %v475
    %v2694 = vunpack.c.l.b16 %v476
    %v2695 = vunpack.c.h.b16 %v476
    %v2696 = vunpack.c.l.b16 %v477
    %v2697 = vunpack.c.h.b16 %v477
    %v2698 = vunpack.c.l.b16 %v478
    %v2699 = vunpack.c.h.b16 %v478
    %v2700 = vunpack.c.l.b16 %v479
    %v2701 = vunpack.c.h.b16 %v479
    %v2702 = vunpack.c.l.b16 %v480
    %v2703 = vunpack.c.h.b16 %v480
    %v2704 = vunpack.c.l.b16 %v481
    %v2705 = vunpack.c.h.b16 %v481
    %v2706 = vunpack.c.l.b16 %v482
    %v2707 = vunpack.c.h.b16 %v482
    %v2708 = vunpack.c.l.b16 %v483
    %v2709 = vunpack.c.l.b16 %v484
    %v2710 = vunpack.c.h.b16 %v484
    %v2711 = vunpack.c.l.b16 %v485
    %v2712 = vunpack.c.h.b16 %v485
    %v2713 = vunpack.c.l.b16 %v486
    %v2714 = vunpack.c.h.b16 %v486
    %v2715 = vunpack.c.l.b16 %v487
    %v2716 = vunpack.c.h.b16 %v487
    %v2717 = vunpack.c.l.b16 %v488
    %v2718 = vunpack.c.h.b16 %v488
    %v2719 = vunpack.c.l.b16 %v489
    %v2720 = vunpack.c.h.b16 %v489
    %v2721 = vunpack.c.l.b16 %v490
    %v2722 = vunpack.c.h.b16 %v490
    %v2723 = vunpack.c.l.b16 %v491
    %v2724 = vunpack.c.h.b16 %v491
    %v2725 = vunpack.c.l.b16 %v492
    %v2726 = vunpack.c.l.b16 %v493
    %v2727 = vunpack.c.h.b16 %v493
    %v2728 = vunpack.c.l.b16 %v494
    %v2729 = vunpack.c.h.b16 %v494
    %v2730 = vunpack.c.l.b16 %v495
    %v2731 = vunpack.c.h.b16 %v495
    %v2732 = vunpack.c.l.b16 %v496
    %v2733 = vunpack.c.h.b16 %v496
    %v2734 = vunpack.c.l.b16 %v497
    %v2735 = vunpack.c.h.b16 %v497
    %v2736 = vunpack.c.l.b16 %v498
    %v2737 = vunpack.c.h.b16 %v498
    %v2738 = vunpack.c.l.b16 %v499
    %v2739 = vunpack.c.h.b16 %v499
    %v2740 = vunpack.c.l.b16 %v500
    %v2741 = vunpack.c.h.b16 %v500
    %v2742 = vunpack.c.l.b16 %v501
    %v2743 = vunpack.c.l.b16 %v502
    %v2744 = vunpack.c.h.b16 %v502
    %v2745 = vunpack.c.l.b16 %v503
    %v2746 = vunpack.c.h.b16 %v503
    %v2747 = vunpack.c.l.b16 %v504
    %v2748 = vunpack.c.h.b16 %v504
    %v2749 = vunpack.c.l.b16 %v505
    %v2750 = vunpack.c.h.b16 %v505
    %v2751 = vunpack.c.l.b16 %v506
    %v2752 = vunpack.c.h.b16 %v506
    %v2753 = vunpack.c.l.b16 %v507
    %v2754 = vunpack.c.h.b16 %v507
    %v2755 = vunpack.c.l.b16 %v508
    %v2756 = vunpack.c.h.b16 %v508
    %v2757 = vunpack.c.l.b16 %v509
    %v2758 = vunpack.c.h.b16 %v509
    %v2759 = vunpack.c.l.b16 %v510
    %v2760 = vunpack.c.l.b16 %v511
    %v2761 = vunpack.c.h.b16 %v511
    %v2762 = vunpack.c.l.b16 %v512
    %v2763 = vunpack.c.h.b16 %v512
    %v2764 = vunpack.c.l.b16 %v513
    %v2765 = vunpack.c.h.b16 %v513
    %v2766 = vunpack.c.l.b16 %v514
    %v2767 = vunpack.c.h.b16 %v514
    %v2768 = vunpack.c.l.b16 %v515
    %v2769 = vunpack.c.h.b16 %v515
    %v2770 = vunpack.c.l.b16 %v516
    %v2771 = vunpack.c.h.b16 %v516
    %v2772 = vunpack.c.l.b16 %v517
    %v2773 = vunpack.c.h.b16 %v517
    %v2774 = vunpack.c.l.b16 %v518
    %v2775 = vunpack.c.h.b16 %v518
    %v2776 = vunpack.c.l.b16 %v519
    %v2777 = vunpack.c.l.b16 %v520
    %v2778 = vunpack.c.h.b16 %v520
    %v2779 = vunpack.c.l.b16 %v521
    %v2780 = vunpack.c.h.b16 %v521
    %v2781 = vunpack.c.l.b16 %v522
    %v2782 = vunpack.c.h.b16 %v522
    %v2783 = vunpack.c.l.b16 %v523
    %v2784 = vunpack.c.h.b16 %v523
    %v2785 = vunpack.c.l.b16 %v524
    %v2786 = vunpack.c.h.b16 %v524
    %v2787 = vunpack.c.l.b16 %v525
    %v2788 = vunpack.c.h.b16 %v525
    %v2789 = vunpack.c.l.b16 %v526
    %v2790 = vunpack.c.h.b16 %v526
    %v2791 = vunpack.c.l.b16 %v527
    %v2792 = vunpack.c.h.b16 %v527
    %v2793 = vunpack.c.l.b16 %v528
    %v2794 = vunpack.c.l.b16 %v529
    %v2795 = vunpack.c.h.b16 %v529
    %v2796 = vunpack.c.l.b16 %v530
    %v2797 = vunpack.c.h.b16 %v530
    %v2798 = vunpack.c.l.b16 %v531
    %v2799 = vunpack.c.h.b16 %v531
    %v2800 = vunpack.c.l.b16 %v532
    %v2801 = vunpack.c.h.b16 %v532
    %v2802 = vunpack.c.l.b16 %v533
    %v2803 = vunpack.c.h.b16 %v533
    %v2804 = vunpack.c.l.b16 %v534
    %v2805 = vunpack.c.h.b16 %v534
    %v2806 = vunpack.c.l.b16 %v535
    %v2807 = vunpack.c.h.b16 %v535
    %v2808 = vunpack.c.l.b16 %v536
    %v2809 = vunpack.c.h.b16 %v536
    %v2810 = vunpack.c.l.b16 %v537
    %v2811 = vunpack.c.l.b16 %v538
    %v2812 = vunpack.c.h.b16 %v538
    %v2813 = vunpack.c.l.b16 %v539
    %v2814 = vunpack.c.h.b16 %v539
    %v2815 = vunpack.c.l.b16 %v540
    %v2816 = vunpack.c.h.b16 %v540
    %v2817 = vunpack.c.l.b16 %v541
    %v2818 = vunpack.c.h.b16 %v541
    %v2819 = vunpack.c.l.b16 %v542
    %v2820 = vunpack.c.h.b16 %v542
    %v2821 = vunpack.c.l.b16 %v543
    %v2822 = vunpack.c.h.b16 %v543
    %v2823 = vunpack.c.l.b16 %v544
    %v2824 = vunpack.c.h.b16 %v544
    %v2825 = vunpack.c.l.b16 %v545
    %v2826 = vunpack.c.h.b16 %v545
    %v2827 = vunpack.c.l.b16 %v546
    %v2828 = vunpack.c.l.b16 %v547
    %v2829 = vunpack.c.h.b16 %v547
    %v2830 = vunpack.c.l.b16 %v548
    %v2831 = vunpack.c.h.b16 %v548
    %v2832 = vunpack.c.l.b16 %v549
    %v2833 = vunpack.c.h.b16 %v549
    %v2834 = vunpack.c.l.b16 %v550
    %v2835 = vunpack.c.h.b16 %v550
    %v2836 = vunpack.c.l.b16 %v551
    %v2837 = vunpack.c.h.b16 %v551
    %v2838 = vunpack.c.l.b16 %v552
    %v2839 = vunpack.c.h.b16 %v552
    %v2840 = vunpack.c.l.b16 %v553
    %v2841 = vunpack.c.h.b16 %v553
    %v2842 = vunpack.c.l.b16 %v554
    %v2843 = vunpack.c.h.b16 %v554
    %v2844 = vunpack.c.l.b16 %v555
    %v2845 = vunpack.c.l.b16 %v556
    %v2846 = vunpack.c.h.b16 %v556
    %v2847 = vunpack.c.l.b16 %v557
    %v2848 = vunpack.c.h.b16 %v557
    %v2849 = vunpack.c.l.b16 %v558
    %v2850 = vunpack.c.h.b16 %v558
    %v2851 = vunpack.c.l.b16 %v559
    %v2852 = vunpack.c.h.b16 %v559
    %v2853 = vunpack.c.l.b16 %v560
    %v2854 = vunpack.c.h.b16 %v560
    %v2855 = vunpack.c.l.b16 %v561
    %v2856 = vunpack.c.h.b16 %v561
    %v2857 = vunpack.c.l.b16 %v562
    %v2858 = vunpack.c.h.b16 %v562
    %v2859 = vunpack.c.l.b16 %v563
    %v2860 = vunpack.c.h.b16 %v563
    %v2861 = vunpack.c.l.b16 %v564
    %v2862 = vunpack.c.l.b16 %v565
    %v2863 = vunpack.c.h.b16 %v565
    %v2864 = vunpack.c.l.b16 %v566
    %v2865 = vunpack.c.h.b16 %v566
    %v2866 = vunpack.c.l.b16 %v567
    %v2867 = vunpack.c.h.b16 %v567
    %v2868 = vunpack.c.l.b16 %v568
    %v2869 = vunpack.c.h.b16 %v568
    %v2870 = vunpack.c.l.b16 %v569
    %v2871 = vunpack.c.h.b16 %v569
    %v2872 = vunpack.c.l.b16 %v570
    %v2873 = vunpack.c.h.b16 %v570
    %v2874 = vunpack.c.l.b16 %v571
    %v2875 = vunpack.c.h.b16 %v571
    %v2876 = vunpack.c.l.b16 %v572
    %v2877 = vunpack.c.h.b16 %v572
    %v2878 = vunpack.c.l.b16 %v573
    %v2879 = vunpack.c.l.b16 %v574
    %v2880 = vunpack.c.h.b16 %v574
    %v2881 = vunpack.c.l.b16 %v575
    %v2882 = vunpack.c.h.b16 %v575
    %v2883 = vunpack.c.l.b16 %v576
    %v2884 = vunpack.c.h.b16 %v576
    %v2885 = vunpack.c.l.b16 %v577
    %v2886 = vunpack.c.h.b16 %v577
    %v2887 = vunpack.c.l.b16 %v578
    %v2888 = vunpack.c.h.b16 %v578
    %v2889 = vunpack.c.l.b16 %v579
    %v2890 = vunpack.c.h.b16 %v579
    %v2891 = vunpack.c.l.b16 %v580
    %v2892 = vunpack.c.h.b16 %v580
    %v2893 = vunpack.c.l.b16 %v581
    %v2894 = vunpack.c.h.b16 %v581
    %v2895 = vunpack.c.l.b16 %v582
    %v2896 = vunpack.c.l.b16 %v583
    %v2897 = vunpack.c.h.b16 %v583
    %v2898 = vunpack.c.l.b16 %v584
    %v2899 = vunpack.c.h.b16 %v584
    %v2900 = vunpack.c.l.b16 %v585
    %v2901 = vunpack.c.h.b16 %v585
    %v2902 = vunpack.c.l.b16 %v586
    %v2903 = vunpack.c.h.b16 %v586
    %v2904 = vunpack.c.l.b16 %v587
    %v2905 = vunpack.c.h.b16 %v587
    %v2906 = vunpack.c.l.b16 %v588
    %v2907 = vunpack.c.h.b16 %v588
    %v2908 = vunpack.c.l.b16 %v589
    %v2909 = vunpack.c.h.b16 %v589
    %v2910 = vunpack.c.l.b16 %v590
    %v2911 = vunpack.c.h.b16 %v590
    %v2912 = vunpack.c.l.b16 %v591
    %v2913 = vunpack.c.l.b16 %v592
    %v2914 = vunpack.c.h.b16 %v592
    %v2915 = vunpack.c.l.b16 %v593
    %v2916 = vunpack.c.h.b16 %v593
    %v2917 = vunpack.c.l.b16 %v594
    %v2918 = vunpack.c.h.b16 %v594
    %v2919 = vunpack.c.l.b16 %v595
    %v2920 = vunpack.c.h.b16 %v595
    %v2921 = vunpack.c.l.b16 %v596
    %v2922 = vunpack.c.h.b16 %v596
    %v2923 = vunpack.c.l.b16 %v597
    %v2924 = vunpack.c.h.b16 %v597
    %v2925 = vunpack.c.l.b16 %v598
    %v2926 = vunpack.c.h.b16 %v598
    %v2927 = vunpack.c.l.b16 %v599
    %v2928 = vunpack.c.h.b16 %v599
    %v2929 = vunpack.c.l.b16 %v600
    %v2930 = vunpack.c.l.b16 %v601
    %v2931 = vunpack.c.h.b16 %v601
    %v2932 = vunpack.c.l.b16 %v602
    %v2933 = vunpack.c.h.b16 %v602
    %v2934 = vunpack.c.l.b16 %v603
    %v2935 = vunpack.c.h.b16 %v603
    %v2936 = vunpack.c.l.b16 %v604
    %v2937 = vunpack.c.h.b16 %v604
    %v2938 = vunpack.c.l.b16 %v605
    %v2939 = vunpack.c.h.b16 %v605
    %v2940 = vunpack.c.l.b16 %v606
    %v2941 = vunpack.c.h.b16 %v606
    %v2942 = vunpack.c.l.b16 %v607
    %v2943 = vunpack.c.h.b16 %v607
    %v2944 = vunpack.c.l.b16 %v608
    %v2945 = vunpack.c.h.b16 %v608
    %v2946 = vunpack.c.l.b16 %v609
    %v2947 = vunpack.c.l.b16 %v610
    %v2948 = vunpack.c.h.b16 %v610
    %v2949 = vunpack.c.l.b16 %v611
    %v2950 = vunpack.c.h.b16 %v611
    %v2951 = vunpack.c.l.b16 %v612
    %v2952 = vunpack.c.h.b16 %v612
    %v2953 = vunpack.c.l.b16 %v613
    %v2954 = vunpack.c.h.b16 %v613
    %v2955 = vunpack.c.l.b16 %v614
    %v2956 = vunpack.c.h.b16 %v614
    %v2957 = vunpack.c.l.b16 %v615
    %v2958 = vunpack.c.h.b16 %v615
    %v2959 = vunpack.c.l.b16 %v616
    %v2960 = vunpack.c.h.b16 %v616
    %v2961 = vunpack.c.l.b16 %v617
    %v2962 = vunpack.c.h.b16 %v617
    %v2963 = vunpack.c.l.b16 %v618
    %v2964 = vunpack.c.l.b16 %v619
    %v2965 = vunpack.c.h.b16 %v619
    %v2966 = vunpack.c.l.b16 %v620
    %v2967 = vunpack.c.h.b16 %v620
    %v2968 = vunpack.c.l.b16 %v621
    %v2969 = vunpack.c.h.b16 %v621
    %v2970 = vunpack.c.l.b16 %v622
    %v2971 = vunpack.c.h.b16 %v622
    %v2972 = vunpack.c.l.b16 %v623
    %v2973 = vunpack.c.h.b16 %v623
    %v2974 = vunpack.c.l.b16 %v624
    %v2975 = vunpack.c.h.b16 %v624
    %v2976 = vunpack.c.l.b16 %v625
    %v2977 = vunpack.c.h.b16 %v625
    %v2978 = vunpack.c.l.b16 %v626
    %v2979 = vunpack.c.h.b16 %v626
    %v2980 = vunpack.c.l.b16 %v627
    %v2981 = vunpack.c.l.b16 %v628
    %v2982 = vunpack.c.h.b16 %v628
    %v2983 = vunpack.c.l.b16 %v629
    %v2984 = vunpack.c.h.b16 %v629
    %v2985 = vunpack.c.l.b16 %v630
    %v2986 = vunpack.c.h.b16 %v630
    %v2987 = vunpack.c.l.b16 %v631
    %v2988 = vunpack.c.h.b16 %v631
    %v2989 = vunpack.c.l.b16 %v632
    %v2990 = vunpack.c.h.b16 %v632
    %v2991 = vunpack.c.l.b16 %v633
    %v2992 = vunpack.c.h.b16 %v633
    %v2993 = vunpack.c.l.b16 %v634
    %v2994 = vunpack.c.h.b16 %v634
    %v2995 = vunpack.c.l.b16 %v635
    %v2996 = vunpack.c.h.b16 %v635
    %v2997 = vunpack.c.l.b16 %v636
    %v2998 = vunpack.c.l.b16 %v637
    %v2999 = vunpack.c.h.b16 %v637
    %v3000 = vunpack.c.l.b16 %v638
    %v3001 = vunpack.c.h.b16 %v638
    %v3002 = vunpack.c.l.b16 %v639
    %v3003 = vunpack.c.h.b16 %v639
    %v3004 = vunpack.c.l.b16 %v640
    %v3005 = vunpack.c.h.b16 %v640
    %v3006 = vunpack.c.l.b16 %v641
    %v3007 = vunpack.c.h.b16 %v641
    %v3008 = vunpack.c.l.b16 %v642
    %v3009 = vunpack.c.h.b16 %v642
    %v3010 = vunpack.c.l.b16 %v643
    %v3011 = vunpack.c.h.b16 %v643
    %v3012 = vunpack.c.l.b16 %v644
    %v3013 = vunpack.c.h.b16 %v644
    %v3014 = vunpack.c.l.b16 %v645
    %v3015 = vunpack.c.l.b16 %v646
    %v3016 = vunpack.c.h.b16 %v646
    %v3017 = vunpack.c.l.b16 %v647
    %v3018 = vunpack.c.h.b16 %v647
    %v3019 = vunpack.c.l.b16 %v648
    %v3020 = vunpack.c.h.b16 %v648
    %v3021 = vunpack.c.l.b16 %v649
    %v3022 = vunpack.c.h.b16 %v649
    %v3023 = vunpack.c.l.b16 %v650
    %v3024 = vunpack.c.h.b16 %v650
    %v3025 = vunpack.c.l.b16 %v651
    %v3026 = vunpack.c.h.b16 %v651
    %v3027 = vunpack.c.l.b16 %v652
    %v3028 = vunpack.c.h.b16 %v652
    %v3029 = vunpack.c.l.b16 %v653
    %v3030 = vunpack.c.h.b16 %v653
    %v3031 = vunpack.c.l.b16 %v654
    %v3032 = vunpack.c.l.b16 %v655
    %v3033 = vunpack.c.h.b16 %v655
    %v3034 = vunpack.c.l.b16 %v656
    %v3035 = vunpack.c.h.b16 %v656
    %v3036 = vunpack.c.l.b16 %v657
    %v3037 = vunpack.c.h.b16 %v657
    %v3038 = vunpack.c.l.b16 %v658
    %v3039 = vunpack.c.h.b16 %v658
    %v3040 = vunpack.c.l.b16 %v659
    %v3041 = vunpack.c.h.b16 %v659
    %v3042 = vunpack.c.l.b16 %v660
    %v3043 = vunpack.c.h.b16 %v660
    %v3044 = vunpack.c.l.b16 %v661
    %v3045 = vunpack.c.h.b16 %v661
    %v3046 = vunpack.c.l.b16 %v662
    %v3047 = vunpack.c.h.b16 %v662
    %v3048 = vunpack.c.l.b16 %v663
    %v3049 = vunpack.c.l.b16 %v664
    %v3050 = vunpack.c.h.b16 %v664
    %v3051 = vunpack.c.l.b16 %v665
    %v3052 = vunpack.c.h.b16 %v665
    %v3053 = vunpack.c.l.b16 %v666
    %v3054 = vunpack.c.h.b16 %v666
    %v3055 = vunpack.c.l.b16 %v667
    %v3056 = vunpack.c.h.b16 %v667
    %v3057 = vunpack.c.l.b16 %v668
    %v3058 = vunpack.c.h.b16 %v668
    %v3059 = vunpack.c.l.b16 %v669
    %v3060 = vunpack.c.h.b16 %v669
    %v3061 = vunpack.c.l.b16 %v670
    %v3062 = vunpack.c.h.b16 %v670
    %v3063 = vunpack.c.l.b16 %v671
    %v3064 = vunpack.c.h.b16 %v671
    %v3065 = vunpack.c.l.b16 %v672
    %v3066 = vunpack.c.l.b16 %v673
    %v3067 = vunpack.c.h.b16 %v673
    %v3068 = vunpack.c.l.b16 %v674
    %v3069 = vunpack.c.h.b16 %v674
    %v3070 = vunpack.c.l.b16 %v675
    %v3071 = vunpack.c.h.b16 %v675
    %v3072 = vunpack.c.l.b16 %v676
    %v3073 = vunpack.c.h.b16 %v676
    %v3074 = vunpack.c.l.b16 %v677
    %v3075 = vunpack.c.h.b16 %v677
    %v3076 = vunpack.c.l.b16 %v678
    %v3077 = vunpack.c.h.b16 %v678
    %v3078 = vunpack.c.l.b16 %v679
    %v3079 = vunpack.c.h.b16 %v679
    %v3080 = vunpack.c.l.b16 %v680
    %v3081 = vunpack.c.h.b16 %v680
    %v3082 = vunpack.c.l.b16 %v681
    %v3083 = vunpack.c.l.b16 %v682
    %v3084 = vunpack.c.h.b16 %v682
    %v3085 = vunpack.c.l.b16 %v683
    %v3086 = vunpack.c.h.b16 %v683
    %v3087 = vunpack.c.l.b16 %v684
    %v3088 = vunpack.c.h.b16 %v684
    %v3089 = vunpack.c.l.b16 %v685
    %v3090 = vunpack.c.h.b16 %v685
    %v3091 = vunpack.c.l.b16 %v686
    %v3092 = vunpack.c.h.b16 %v686
    %v3093 = vunpack.c.l.b16 %v687
    %v3094 = vunpack.c.h.b16 %v687
    %v3095 = vunpack.c.l.b16 %v688
    %v3096 = vunpack.c.h.b16 %v688
    %v3097 = vunpack.c.l.b16 %v689
    %v3098 = vunpack.c.h.b16 %v689
    %v3099 = vunpack.c.l.b16 %v690
    %v3100 = vunpack.c.l.b16 %v691
    %v3101 = vunpack.c.h.b16 %v691
    %v3102 = vunpack.c.l.b16 %v692
    %v3103 = vunpack.c.h.b16 %v692
    %v3104 = vunpack.c.l.b16 %v693
    %v3105 = vunpack.c.h.b16 %v693
    %v3106 = vunpack.c.l.b16 %v694
    %v3107 = vunpack.c.h.b16 %v694
    %v3108 = vunpack.c.l.b16 %v695
    %v3109 = vunpack.c.h.b16 %v695
    %v3110 = vunpack.c.l.b16 %v696
    %v3111 = vunpack.c.h.b16 %v696
    %v3112 = vunpack.c.l.b16 %v697
    %v3113 = vunpack.c.h.b16 %v697
    %v3114 = vunpack.c.l.b16 %v698
    %v3115 = vunpack.c.h.b16 %v698
    %v3116 = vunpack.c.l.b16 %v699
    %v3117 = vunpack.c.l.b16 %v700
    %v3118 = vunpack.c.h.b16 %v700
    %v3119 = vunpack.c.l.b16 %v701
    %v3120 = vunpack.c.h.b16 %v701
    %v3121 = vunpack.c.l.b16 %v702
    %v3122 = vunpack.c.h.b16 %v702
    %v3123 = vunpack.c.l.b16 %v703
    %v3124 = vunpack.c.h.b16 %v703
    %v3125 = vunpack.c.l.b16 %v704
    %v3126 = vunpack.c.h.b16 %v704
    %v3127 = vunpack.c.l.b16 %v705
    %v3128 = vunpack.c.h.b16 %v705
    %v3129 = vunpack.c.l.b16 %v706
    %v3130 = vunpack.c.h.b16 %v706
    %v3131 = vunpack.c.l.b16 %v707
    %v3132 = vunpack.c.h.b16 %v707
    %v3133 = vunpack.c.l.b16 %v708
    %v3134 = vunpack.c.l.b16 %v709
    %v3135 = vunpack.c.h.b16 %v709
    %v3136 = vunpack.c.l.b16 %v710
    %v3137 = vunpack.c.h.b16 %v710
    %v3138 = vunpack.c.l.b16 %v711
    %v3139 = vunpack.c.h.b16 %v711
    %v3140 = vunpack.c.l.b16 %v712
    %v3141 = vunpack.c.h.b16 %v712
    %v3142 = vunpack.c.l.b16 %v713
    %v3143 = vunpack.c.h.b16 %v713
    %v3144 = vunpack.c.l.b16 %v714
    %v3145 = vunpack.c.h.b16 %v714
    %v3146 = vunpack.c.l.b16 %v715
    %v3147 = vunpack.c.h.b16 %v715
    %v3148 = vunpack.c.l.b16 %v716
    %v3149 = vunpack.c.h.b16 %v716
    %v3150 = vunpack.c.l.b16 %v717
    %v3151 = vunpack.c.l.b16 %v718
    %v3152 = vunpack.c.h.b16 %v718
    %v3153 = vunpack.c.l.b16 %v719
    %v3154 = vunpack.c.h.b16 %v719
    %v3155 = vunpack.c.l.b16 %v720
    %v3156 = vunpack.c.h.b16 %v720
    %v3157 = vunpack.c.l.b16 %v721
    %v3158 = vunpack.c.h.b16 %v721
    %v3159 = vunpack.c.l.b16 %v722
    %v3160 = vunpack.c.h.b16 %v722
    %v3161 = vunpack.c.l.b16 %v723
    %v3162 = vunpack.c.h.b16 %v723
    %v3163 = vunpack.c.l.b16 %v724
    %v3164 = vunpack.c.h.b16 %v724
    %v3165 = vunpack.c.l.b16 %v725
    %v3166 = vunpack.c.h.b16 %v725
    %v3167 = vunpack.c.l.b16 %v726
    %v3168 = vunpack.c.l.b16 %v727
    %v3169 = vunpack.c.h.b16 %v727
    %v3170 = vunpack.c.l.b16 %v728
    %v3171 = vunpack.c.h.b16 %v728
    %v3172 = vunpack.c.l.b16 %v729
    %v3173 = vunpack.c.h.b16 %v729
    %v3174 = vunpack.c.l.b16 %v730
    %v3175 = vunpack.c.h.b16 %v730
    %v3176 = vunpack.c.l.b16 %v731
    %v3177 = vunpack.c.h.b16 %v731
    %v3178 = vunpack.c.l.b16 %v732
    %v3179 = vunpack.c.h.b16 %v732
    %v3180 = vunpack.c.l.b16 %v733
    %v3181 = vunpack.c.h.b16 %v733
    %v3182 = vunpack.c.l.b16 %v734
    %v3183 = vunpack.c.h.b16 %v734
    %v3184 = vunpack.c.l.b16 %v735
    %v3185 = vunpack.c.l.b16 %v736
    %v3186 = vunpack.c.h.b16 %v736
    %v3187 = vunpack.c.l.b16 %v737
    %v3188 = vunpack.c.h.b16 %v737
    %v3189 = vunpack.c.l.b16 %v738
    %v3190 = vunpack.c.h.b16 %v738
    %v3191 = vunpack.c.l.b16 %v739
    %v3192 = vunpack.c.h.b16 %v739
    %v3193 = vunpack.c.l.b16 %v740
    %v3194 = vunpack.c.h.b16 %v740
    %v3195 = vunpack.c.l.b16 %v741
    %v3196 = vunpack.c.h.b16 %v741
    %v3197 = vunpack.c.l.b16 %v742
    %v3198 = vunpack.c.h.b16 %v742
    %v3199 = vunpack.c.l.b16 %v743
    %v3200 = vunpack.c.h.b16 %v743
    %v3201 = vunpack.c.l.b16 %v744
    %v3202 = vunpack.c.l.b16 %v745
    %v3203 = vunpack.c.h.b16 %v745
    %v3204 = vunpack.c.l.b16 %v746
    %v3205 = vunpack.c.h.b16 %v746
    %v3206 = vunpack.c.l.b16 %v747
    %v3207 = vunpack.c.h.b16 %v747
    %v3208 = vunpack.c.l.b16 %v748
    %v3209 = vunpack.c.h.b16 %v748
    %v3210 = vunpack.c.l.b16 %v749
    %v3211 = vunpack.c.h.b16 %v749
    %v3212 = vunpack.c.l.b16 %v750
    %v3213 = vunpack.c.h.b16 %v750
    %v3214 = vunpack.c.l.b16 %v751
    %v3215 = vunpack.c.h.b16 %v751
    %v3216 = vunpack.c.l.b16 %v752
    %v3217 = vunpack.c.h.b16 %v752
    %v3218 = vunpack.c.l.b16 %v753
    %v3219 = vunpack.c.l.b16 %v754
    %v3220 = vunpack.c.h.b16 %v754
    %v3221 = vunpack.c.l.b16 %v755
    %v3222 = vunpack.c.h.b16 %v755
    %v3223 = vunpack.c.l.b16 %v756
    %v3224 = vunpack.c.h.b16 %v756
    %v3225 = vunpack.c.l.b16 %v757
    %v3226 = vunpack.c.h.b16 %v757
    %v3227 = vunpack.c.l.b16 %v758
    %v3228 = vunpack.c.h.b16 %v758
    %v3229 = vunpack.c.l.b16 %v759
    %v3230 = vunpack.c.h.b16 %v759
    %v3231 = vunpack.c.l.b16 %v760
    %v3232 = vunpack.c.h.b16 %v760
    %v3233 = vunpack.c.l.b16 %v761
    %v3234 = vunpack.c.h.b16 %v761
    %v3235 = vunpack.c.l.b16 %v762
    %v3236 = vunpack.c.l.b16 %v763
    %v3237 = vunpack.c.h.b16 %v763
    %v3238 = vunpack.c.l.b16 %v764
    %v3239 = vunpack.c.h.b16 %v764
    %v3240 = vunpack.c.l.b16 %v765
    %v3241 = vunpack.c.h.b16 %v765
    %v3242 = vunpack.c.l.b16 %v766
    %v3243 = vunpack.c.h.b16 %v766
    %v3244 = vunpack.c.l.b16 %v767
    %v3245 = vunpack.c.h.b16 %v767
    %v3246 = vunpack.c.l.b16 %v768
    %v3247 = vunpack.c.h.b16 %v768
    %v3248 = vunpack.c.l.b16 %v769
    %v3249 = vunpack.c.h.b16 %v769
    %v3250 = vunpack.c.l.b16 %v770
    %v3251 = vunpack.c.h.b16 %v770
    %v3252 = vunpack.c.l.b16 %v771
    %v3253 = vunpack.c.l.b16 %v772
    %v3254 = vunpack.c.h.b16 %v772
    %v3255 = vunpack.c.l.b16 %v773
    %v3256 = vunpack.c.h.b16 %v773
    %v3257 = vunpack.c.l.b16 %v774
    %v3258 = vunpack.c.h.b16 %v774
    %v3259 = vunpack.c.l.b16 %v775
    %v3260 = vunpack.c.h.b16 %v775
    %v3261 = vunpack.c.l.b16 %v776
    %v3262 = vunpack.c.h.b16 %v776
    %v3263 = vunpack.c.l.b16 %v777
    %v3264 = vunpack.c.h.b16 %v777
    %v3265 = vunpack.c.l.b16 %v778
    %v3266 = vunpack.c.h.b16 %v778
    %v3267 = vunpack.c.l.b16 %v779
    %v3268 = vunpack.c.h.b16 %v779
    %v3269 = vunpack.c.l.b16 %v780
    %v3270 = vunpack.c.l.b16 %v781
    %v3271 = vunpack.c.h.b16 %v781
    %v3272 = vunpack.c.l.b16 %v782
    %v3273 = vunpack.c.h.b16 %v782
    %v3274 = vunpack.c.l.b16 %v783
    %v3275 = vunpack.c.h.b16 %v783
    %v3276 = vunpack.c.l.b16 %v784
    %v3277 = vunpack.c.h.b16 %v784
    %v3278 = vunpack.c.l.b16 %v785
    %v3279 = vunpack.c.h.b16 %v785
    %v3280 = vunpack.c.l.b16 %v786
    %v3281 = vunpack.c.h.b16 %v786
    %v3282 = vunpack.c.l.b16 %v787
    %v3283 = vunpack.c.h.b16 %v787
    %v3284 = vunpack.c.l.b16 %v788
    %v3285 = vunpack.c.h.b16 %v788
    %v3286 = vunpack.c.l.b16 %v789
    %v3287 = vunpack.c.l.b16 %v790
    %v3288 = vunpack.c.h.b16 %v790
    %v3289 = vunpack.c.l.b16 %v791
    %v3290 = vunpack.c.h.b16 %v791
    %v3291 = vunpack.c.l.b16 %v792
    %v3292 = vunpack.c.h.b16 %v792
    %v3293 = vunpack.c.l.b16 %v793
    %v3294 = vunpack.c.h.b16 %v793
    %v3295 = vunpack.c.l.b16 %v794
    %v3296 = vunpack.c.h.b16 %v794
    %v3297 = vunpack.c.l.b16 %v795
    %v3298 = vunpack.c.h.b16 %v795
    %v3299 = vunpack.c.l.b16 %v796
    %v3300 = vunpack.c.h.b16 %v796
    %v3301 = vunpack.c.l.b16 %v797
    %v3302 = vunpack.c.h.b16 %v797
    %v3303 = vunpack.c.l.b16 %v798
    %v3304 = vunpack.c.l.b16 %v799
    %v3305 = vunpack.c.h.b16 %v799
    %v3306 = vunpack.c.l.b16 %v800
    %v3307 = vunpack.c.h.b16 %v800
    %v3308 = vunpack.c.l.b16 %v801
    %v3309 = vunpack.c.h.b16 %v801
    %v3310 = vunpack.c.l.b16 %v802
    %v3311 = vunpack.c.h.b16 %v802
    %v3312 = vunpack.c.l.b16 %v803
    %v3313 = vunpack.c.h.b16 %v803
    %v3314 = vunpack.c.l.b16 %v804
    %v3315 = vunpack.c.h.b16 %v804
    %v3316 = vunpack.c.l.b16 %v805
    %v3317 = vunpack.c.h.b16 %v805
    %v3318 = vunpack.c.l.b16 %v806
    %v3319 = vunpack.c.h.b16 %v806
    %v3320 = vunpack.c.l.b16 %v807
    %v3321 = vunpack.c.l.b16 %v808
    %v3322 = vunpack.c.h.b16 %v808
    %v3323 = vunpack.c.l.b16 %v809
    %v3324 = vunpack.c.h.b16 %v809
    %v3325 = vunpack.c.l.b16 %v810
    %v3326 = vunpack.c.h.b16 %v810
    %v3327 = vunpack.c.l.b16 %v811
    %v3328 = vunpack.c.h.b16 %v811
    %v3329 = vunpack.c.l.b16 %v812
    %v3330 = vunpack.c.h.b16 %v812
    %v3331 = vunpack.c.l.b16 %v813
    %v3332 = vunpack.c.h.b16 %v813
    %v3333 = vunpack.c.l.b16 %v814
    %v3334 = vunpack.c.h.b16 %v814
    %v3335 = vunpack.c.l.b16 %v815
    %v3336 = vunpack.c.h.b16 %v815
    %v3337 = vunpack.c.l.b16 %v816
    %v3338 = vunpack.c.l.b16 %v817
    %v3339 = vunpack.c.h.b16 %v817
    %v3340 = vunpack.c.l.b16 %v818
    %v3341 = vunpack.c.h.b16 %v818
    %v3342 = vunpack.c.l.b16 %v819
    %v3343 = vunpack.c.h.b16 %v819
    %v3344 = vunpack.c.l.b16 %v820
    %v3345 = vunpack.c.h.b16 %v820
    %v3346 = vunpack.c.l.b16 %v821
    %v3347 = vunpack.c.h.b16 %v821
    %v3348 = vunpack.c.l.b16 %v822
    %v3349 = vunpack.c.h.b16 %v822
    %v3350 = vunpack.c.l.b16 %v823
    %v3351 = vunpack.c.h.b16 %v823
    %v3352 = vunpack.c.l.b16 %v824
    %v3353 = vunpack.c.h.b16 %v824
    %v3354 = vunpack.c.l.b16 %v825
    %v3355 = vunpack.c.l.b16 %v826
    %v3356 = vunpack.c.h.b16 %v826
    %v3357 = vunpack.c.l.b16 %v827
    %v3358 = vunpack.c.h.b16 %v827
    %v3359 = vunpack.c.l.b16 %v828
    %v3360 = vunpack.c.h.b16 %v828
    %v3361 = vunpack.c.l.b16 %v829
    %v3362 = vunpack.c.h.b16 %v829
    %v3363 = vunpack.c.l.b16 %v830
    %v3364 = vunpack.c.h.b16 %v830
    %v3365 = vunpack.c.l.b16 %v831
    %v3366 = vunpack.c.h.b16 %v831
    %v3367 = vunpack.c.l.b16 %v832
    %v3368 = vunpack.c.h.b16 %v832
    %v3369 = vunpack.c.l.b16 %v833
    %v3370 = vunpack.c.h.b16 %v833
    %v3371 = vunpack.c.l.b16 %v834
    %v3372 = vunpack.c.l.b16 %v835
    %v3373 = vunpack.c.h.b16 %v835
    %v3374 = vunpack.c.l.b16 %v836
    %v3375 = vunpack.c.h.b16 %v836
    %v3376 = vunpack.c.l.b16 %v837
    %v3377 = vunpack.c.h.b16 %v837
    %v3378 = vunpack.c.l.b16 %v838
    %v3379 = vunpack.c.h.b16 %v838
    %v3380 = vunpack.c.l.b16 %v839
    %v3381 = vunpack.c.h.b16 %v839
    %v3382 = vunpack.c.l.b16 %v840
    %v3383 = vunpack.c.h.b16 %v840
    %v3384 = vunpack.c.l.b16 %v841
    %v3385 = vunpack.c.h.b16 %v841
    %v3386 = vunpack.c.l.b16 %v842
    %v3387 = vunpack.c.h.b16 %v842
    %v3388 = vunpack.c.l.b16 %v843
    %v3389 = vunpack.c.l.b16 %v844
    %v3390 = vunpack.c.h.b16 %v844
    %v3391 = vunpack.c.l.b16 %v845
    %v3392 = vunpack.c.h.b16 %v845
    %v3393 = vunpack.c.l.b16 %v846
    %v3394 = vunpack.c.h.b16 %v846
    %v3395 = vunpack.c.l.b16 %v847
    %v3396 = vunpack.c.h.b16 %v847
    %v3397 = vunpack.c.l.b16 %v848
    %v3398 = vunpack.c.h.b16 %v848
    %v3399 = vunpack.c.l.b16 %v849
    %v3400 = vunpack.c.h.b16 %v849
    %v3401 = vunpack.c.l.b16 %v850
    %v3402 = vunpack.c.h.b16 %v850
    %v3403 = vunpack.c.l.b16 %v851
    %v3404 = vunpack.c.h.b16 %v851
    %v3405 = vunpack.c.l.b16 %v852
    %v3406 = vunpack.c.l.b16 %v853
    %v3407 = vunpack.c.h.b16 %v853
    %v3408 = vunpack.c.l.b16 %v854
    %v3409 = vunpack.c.h.b16 %v854
    %v3410 = vunpack.c.l.b16 %v855
    %v3411 = vunpack.c.h.b16 %v855
    %v3412 = vunpack.c.l.b16 %v856
    %v3413 = vunpack.c.h.b16 %v856
    %v3414 = vunpack.c.l.b16 %v857
    %v3415 = vunpack.c.h.b16 %v857
    %v3416 = vunpack.c.l.b16 %v858
    %v3417 = vunpack.c.h.b16 %v858
    %v3418 = vunpack.c.l.b16 %v859
    %v3419 = vunpack.c.h.b16 %v859
    %v3420 = vunpack.c.l.b16 %v860
    %v3421 = vunpack.c.h.b16 %v860
    %v3422 = vunpack.c.l.b16 %v861
    %v3423 = vunpack.c.l.b16 %v862
    %v3424 = vunpack.c.h.b16 %v862
    %v3425 = vunpack.c.l.b16 %v863
    %v3426 = vunpack.c.h.b16 %v863
    %v3427 = vunpack.c.l.b16 %v864
    %v3428 = vunpack.c.h.b16 %v864
    %v3429 = vunpack.c.l.b16 %v865
    %v3430 = vunpack.c.h.b16 %v865
    %v3431 = vunpack.c.l.b16 %v866
    %v3432 = vunpack.c.h.b16 %v866
    %v3433 = vunpack.c.l.b16 %v867
    %v3434 = vunpack.c.h.b16 %v867
    %v3435 = vunpack.c.l.b16 %v868
    %v3436 = vunpack.c.h.b16 %v868
    %v3437 = vunpack.c.l.b16 %v869
    %v3438 = vunpack.c.h.b16 %v869
    %v3439 = vunpack.c.l.b16 %v870
    %v3440 = vunpack.c.l.b16 %v871
    %v3441 = vunpack.c.h.b16 %v871
    %v3442 = vunpack.c.l.b16 %v872
    %v3443 = vunpack.c.h.b16 %v872
    %v3444 = vunpack.c.l.b16 %v873
    %v3445 = vunpack.c.h.b16 %v873
    %v3446 = vunpack.c.l.b16 %v874
    %v3447 = vunpack.c.h.b16 %v874
    %v3448 = vunpack.c.l.b16 %v875
    %v3449 = vunpack.c.h.b16 %v875
    %v3450 = vunpack.c.l.b16 %v876
    %v3451 = vunpack.c.h.b16 %v876
    %v3452 = vunpack.c.l.b16 %v877
    %v3453 = vunpack.c.h.b16 %v877
    %v3454 = vunpack.c.l.b16 %v878
    %v3455 = vunpack.c.h.b16 %v878
    %v3456 = vunpack.c.l.b16 %v879
    %v3457 = vunpack.c.l.b16 %v880
    %v3458 = vunpack.c.h.b16 %v880
    %v3459 = vunpack.c.l.b16 %v881
    %v3460 = vunpack.c.h.b16 %v881
    %v3461 = vunpack.c.l.b16 %v882
    %v3462 = vunpack.c.h.b16 %v882
    %v3463 = vunpack.c.l.b16 %v883
    %v3464 = vunpack.c.h.b16 %v883
    %v3465 = vunpack.c.l.b16 %v884
    %v3466 = vunpack.c.h.b16 %v884
    %v3467 = vunpack.c.l.b16 %v885
    %v3468 = vunpack.c.h.b16 %v885
    %v3469 = vunpack.c.l.b16 %v886
    %v3470 = vunpack.c.h.b16 %v886
    %v3471 = vunpack.c.l.b16 %v887
    %v3472 = vunpack.c.h.b16 %v887
    %v3473 = vunpack.c.l.b16 %v888
    %v3474 = vunpack.c.l.b16 %v889
    %v3475 = vunpack.c.h.b16 %v889
    %v3476 = vunpack.c.l.b16 %v890
    %v3477 = vunpack.c.h.b16 %v890
    %v3478 = vunpack.c.l.b16 %v891
    %v3479 = vunpack.c.h.b16 %v891
    %v3480 = vunpack.c.l.b16 %v892
    %v3481 = vunpack.c.h.b16 %v892
    %v3482 = vunpack.c.l.b16 %v893
    %v3483 = vunpack.c.h.b16 %v893
    %v3484 = vunpack.c.l.b16 %v894
    %v3485 = vunpack.c.h.b16 %v894
    %v3486 = vunpack.c.l.b16 %v895
    %v3487 = vunpack.c.h.b16 %v895
    %v3488 = vunpack.c.l.b16 %v896
    %v3489 = vunpack.c.h.b16 %v896
    %v3490 = vunpack.c.l.b16 %v897
    %v3491 = vunpack.c.l.b16 %v898
    %v3492 = vunpack.c.h.b16 %v898
    %v3493 = vunpack.c.l.b16 %v899
    %v3494 = vunpack.c.h.b16 %v899
    %v3495 = vunpack.c.l.b16 %v900
    %v3496 = vunpack.c.h.b16 %v900
    %v3497 = vunpack.c.l.b16 %v901
    %v3498 = vunpack.c.h.b16 %v901
    %v3499 = vunpack.c.l.b16 %v902
    %v3500 = vunpack.c.h.b16 %v902
    %v3501 = vunpack.c.l.b16 %v903
    %v3502 = vunpack.c.h.b16 %v903
    %v3503 = vunpack.c.l.b16 %v904
    %v3504 = vunpack.c.h.b16 %v904
    %v3505 = vunpack.c.l.b16 %v905
    %v3506 = vunpack.c.h.b16 %v905
    %v3507 = vunpack.c.l.b16 %v906
    %v3508 = vunpack.c.l.b16 %v907
    %v3509 = vunpack.c.h.b16 %v907
    %v3510 = vunpack.c.l.b16 %v908
    %v3511 = vunpack.c.h.b16 %v908
    %v3512 = vunpack.c.l.b16 %v909
    %v3513 = vunpack.c.h.b16 %v909
    %v3514 = vunpack.c.l.b16 %v910
    %v3515 = vunpack.c.h.b16 %v910
    %v3516 = vunpack.c.l.b16 %v911
    %v3517 = vunpack.c.h.b16 %v911
    %v3518 = vunpack.c.l.b16 %v912
    %v3519 = vunpack.c.h.b16 %v912
    %v3520 = vunpack.c.l.b16 %v913
    %v3521 = vunpack.c.h.b16 %v913
    %v3522 = vunpack.c.l.b16 %v914
    %v3523 = vunpack.c.h.b16 %v914
    %v3524 = vunpack.c.l.b16 %v915
    %v3525 = vunpack.c.l.b16 %v916
    %v3526 = vunpack.c.h.b16 %v916
    %v3527 = vunpack.c.l.b16 %v917
    %v3528 = vunpack.c.h.b16 %v917
    %v3529 = vunpack.c.l.b16 %v918
    %v3530 = vunpack.c.h.b16 %v918
    %v3531 = vunpack.c.l.b16 %v919
    %v3532 = vunpack.c.h.b16 %v919
    %v3533 = vunpack.c.l.b16 %v920
    %v3534 = vunpack.c.h.b16 %v920
    %v3535 = vunpack.c.l.b16 %v921
    %v3536 = vunpack.c.h.b16 %v921
    %v3537 = vunpack.c.l.b16 %v922
    %v3538 = vunpack.c.h.b16 %v922
    %v3539 = vunpack.c.l.b16 %v923
    %v3540 = vunpack.c.h.b16 %v923
    %v3541 = vunpack.c.l.b16 %v924
    %v3542 = vpack.c.b16 %v1927, %v1910
    %v3543 = vpack.c.b16 %v1928, %v1911
    %v3544 = vpack.c.b16 %v1929, %v1912
    %v3545 = vpack.c.b16 %v1930, %v1913
    %v3546 = vpack.c.b16 %v1931, %v1914
    %v3547 = vpack.c.b16 %v1932, %v1915
    %v3548 = vpack.c.b16 %v1933, %v1916
    %v3549 = vpack.c.b16 %v1934, %v1917
    %v3550 = vpack.c.b16 %v1935, %v1918
    %v3551 = vpack.c.b16 %v1936, %v1919
    %v3552 = vpack.c.b16 %v1937, %v1920
    %v3553 = vpack.c.b16 %v1938, %v1921
    %v3554 = vpack.c.b16 %v1939, %v1922
    %v3555 = vpack.c.b16 %v1940, %v1923
    %v3556 = vpack.c.b16 %v1941, %v1924
    %v3557 = vpack.c.b16 %v1942, %v1925
    %v3558 = vpack.c.b16 %v1943, %v1926
    %v3559 = vpack.c.b16 %v1961, %v1944
    %v3560 = vpack.c.b16 %v1962, %v1945
    %v3561 = vpack.c.b16 %v1963, %v1946
    %v3562 = vpack.c.b16 %v1964, %v1947
    %v3563 = vpack.c.b16 %v1965, %v1948
    %v3564 = vpack.c.b16 %v1966, %v1949
    %v3565 = vpack.c.b16 %v1967, %v1950
    %v3566 = vpack.c.b16 %v1968, %v1951
    %v3567 = vpack.c.b16 %v1969, %v1952
    %v3568 = vpack.c.b16 %v1970, %v1953
    %v3569 = vpack.c.b16 %v1971, %v1954
    %v3570 = vpack.c.b16 %v1972, %v1955
    %v3571 = vpack.c.b16 %v1973, %v1956
    %v3572 = vpack.c.b16 %v1974, %v1957
    %v3573 = vpack.c.b16 %v1975, %v1958
    %v3574 = vpack.c.b16 %v1976, %v1959
    %v3575 = vpack.c.b16 %v1977, %v1960
    %v3576 = vpack.c.b16 %v1995, %v1978
    %v3577 = vpack.c.b16 %v1996, %v1979
    %v3578 = vpack.c.b16 %v1997, %v1980
    %v3579 = vpack.c.b16 %v1998, %v1981
    %v3580 = vpack.c.b16 %v1999, %v1982
    %v3581 = vpack.c.b16 %v2000, %v1983
    %v3582 = vpack.c.b16 %v2001, %v1984
    %v3583 = vpack.c.b16 %v2002, %v1985
    %v3584 = vpack.c.b16 %v2003, %v1986
    %v3585 = vpack.c.b16 %v2004, %v1987
    %v3586 = vpack.c.b16 %v2005, %v1988
    %v3587 = vpack.c.b16 %v2006, %v1989
    %v3588 = vpack.c.b16 %v2007, %v1990
    %v3589 = vpack.c.b16 %v2008, %v1991
    %v3590 = vpack.c.b16 %v2009, %v1992
    %v3591 = vpack.c.b16 %v2010, %v1993
    %v3592 = vpack.c.b16 %v2011, %v1994
    %v3593 = vpack.c.b16 %v2029, %v2012
    %v3594 = vpack.c.b16 %v2030, %v2013
    %v3595 = vpack.c.b16 %v2031, %v2014
    %v3596 = vpack.c.b16 %v2032, %v2015
    %v3597 = vpack.c.b16 %v2033, %v2016
    %v3598 = vpack.c.b16 %v2034, %v2017
    %v3599 = vpack.c.b16 %v2035, %v2018
    %v3600 = vpack.c.b16 %v2036, %v2019
    %v3601 = vpack.c.b16 %v2037, %v2020
    %v3602 = vpack.c.b16 %v2038, %v2021
    %v3603 = vpack.c.b16 %v2039, %v2022
    %v3604 = vpack.c.b16 %v2040, %v2023
    %v3605 = vpack.c.b16 %v2041, %v2024
    %v3606 = vpack.c.b16 %v2042, %v2025
    %v3607 = vpack.c.b16 %v2043, %v2026
    %v3608 = vpack.c.b16 %v2044, %v2027
    %v3609 = vpack.c.b16 %v2045, %v2028
    %v3610 = vpack.c.b16 %v2063, %v2046
    %v3611 = vpack.c.b16 %v2064, %v2047
    %v3612 = vpack.c.b16 %v2065, %v2048
    %v3613 = vpack.c.b16 %v2066, %v2049
    %v3614 = vpack.c.b16 %v2067, %v2050
    %v3615 = vpack.c.b16 %v2068, %v2051
    %v3616 = vpack.c.b16 %v2069, %v2052
    %v3617 = vpack.c.b16 %v2070, %v2053
    %v3618 = vpack.c.b16 %v2071, %v2054
    %v3619 = vpack.c.b16 %v2072, %v2055
    %v3620 = vpack.c.b16 %v2073, %v2056
    %v3621 = vpack.c.b16 %v2074, %v2057
    %v3622 = vpack.c.b16 %v2075, %v2058
    %v3623 = vpack.c.b16 %v2076, %v2059
    %v3624 = vpack.c.b16 %v2077, %v2060
    %v3625 = vpack.c.b16 %v2078, %v2061
    %v3626 = vpack.c.b16 %v2079, %v2062
    %v3627 = vpack.c.b16 %v2097, %v2080
    %v3628 = vpack.c.b16 %v2098, %v2081
    %v3629 = vpack.c.b16 %v2099, %v2082
    %v3630 = vpack.c.b16 %v2100, %v2083
    %v3631 = vpack.c.b16 %v2101, %v2084
    %v3632 = vpack.c.b16 %v2102, %v2085
    %v3633 = vpack.c.b16 %v2103, %v2086
    %v3634 = vpack.c.b16 %v2104, %v2087
    %v3635 = vpack.c.b16 %v2105, %v2088
    %v3636 = vpack.c.b16 %v2106, %v2089
    %v3637 = vpack.c.b16 %v2107, %v2090
    %v3638 = vpack.c.b16 %v2108, %v2091
    %v3639 = vpack.c.b16 %v2109, %v2092
    %v3640 = vpack.c.b16 %v2110, %v2093
    %v3641 = vpack.c.b16 %v2111, %v2094
    %v3642 = vpack.c.b16 %v2112, %v2095
    %v3643 = vpack.c.b16 %v2113, %v2096
    %v3644 = vpack.c.b16 %v2131, %v2114
    %v3645 = vpack.c.b16 %v2132, %v2115
    %v3646 = vpack.c.b16 %v2133, %v2116
    %v3647 = vpack.c.b16 %v2134, %v2117
    %v3648 = vpack.c.b16 %v2135, %v2118
    %v3649 = vpack.c.b16 %v2136, %v2119
    %v3650 = vpack.c.b16 %v2137, %v2120
    %v3651 = vpack.c.b16 %v2138, %v2121
    %v3652 = vpack.c.b16 %v2139, %v2122
    %v3653 = vpack.c.b16 %v2140, %v2123
    %v3654 = vpack.c.b16 %v2141, %v2124
    %v3655 = vpack.c.b16 %v2142, %v2125
    %v3656 = vpack.c.b16 %v2143, %v2126
    %v3657 = vpack.c.b16 %v2144, %v2127
    %v3658 = vpack.c.b16 %v2145, %v2128
    %v3659 = vpack.c.b16 %v2146, %v2129
    %v3660 = vpack.c.b16 %v2147, %v2130
    %v3661 = vpack.c.b16 %v2165, %v2148
    %v3662 = vpack.c.b16 %v2166, %v2149
    %v3663 = vpack.c.b16 %v2167, %v2150
    %v3664 = vpack.c.b16 %v2168, %v2151
    %v3665 = vpack.c.b16 %v2169, %v2152
    %v3666 = vpack.c.b16 %v2170, %v2153
    %v3667 = vpack.c.b16 %v2171, %v2154
    %v3668 = vpack.c.b16 %v2172, %v2155
    %v3669 = vpack.c.b16 %v2173, %v2156
    %v3670 = vpack.c.b16 %v2174, %v2157
    %v3671 = vpack.c.b16 %v2175, %v2158
    %v3672 = vpack.c.b16 %v2176, %v2159
    %v3673 = vpack.c.b16 %v2177, %v2160
    %v3674 = vpack.c.b16 %v2178, %v2161
    %v3675 = vpack.c.b16 %v2179, %v2162
    %v3676 = vpack.c.b16 %v2180, %v2163
    %v3677 = vpack.c.b16 %v2181, %v2164
    %v3678 = vpack.c.b16 %v2199, %v2182
    %v3679 = vpack.c.b16 %v2200, %v2183
    %v3680 = vpack.c.b16 %v2201, %v2184
    %v3681 = vpack.c.b16 %v2202, %v2185
    %v3682 = vpack.c.b16 %v2203, %v2186
    %v3683 = vpack.c.b16 %v2204, %v2187
    %v3684 = vpack.c.b16 %v2205, %v2188
    %v3685 = vpack.c.b16 %v2206, %v2189
    %v3686 = vpack.c.b16 %v2207, %v2190
    %v3687 = vpack.c.b16 %v2208, %v2191
    %v3688 = vpack.c.b16 %v2209, %v2192
    %v3689 = vpack.c.b16 %v2210, %v2193
    %v3690 = vpack.c.b16 %v2211, %v2194
    %v3691 = vpack.c.b16 %v2212, %v2195
    %v3692 = vpack.c.b16 %v2213, %v2196
    %v3693 = vpack.c.b16 %v2214, %v2197
    %v3694 = vpack.c.b16 %v2215, %v2198
    %v3695 = vpack.c.b16 %v2233, %v2216
    %v3696 = vpack.c.b16 %v2234, %v2217
    %v3697 = vpack.c.b16 %v2235, %v2218
    %v3698 = vpack.c.b16 %v2236, %v2219
    %v3699 = vpack.c.b16 %v2237, %v2220
    %v3700 = vpack.c.b16 %v2238, %v2221
    %v3701 = vpack.c.b16 %v2239, %v2222
    %v3702 = vpack.c.b16 %v2240, %v2223
    %v3703 = vpack.c.b16 %v2241, %v2224
    %v3704 = vpack.c.b16 %v2242, %v2225
    %v3705 = vpack.c.b16 %v2243, %v2226
    %v3706 = vpack.c.b16 %v2244, %v2227
    %v3707 = vpack.c.b16 %v2245, %v2228
    %v3708 = vpack.c.b16 %v2246, %v2229
    %v3709 = vpack.c.b16 %v2247, %v2230
    %v3710 = vpack.c.b16 %v2248, %v2231
    %v3711 = vpack.c.b16 %v2249, %v2232
    %v3712 = vpack.c.b16 %v2267, %v2250
    %v3713 = vpack.c.b16 %v2268, %v2251
    %v3714 = vpack.c.b16 %v2269, %v2252
    %v3715 = vpack.c.b16 %v2270, %v2253
    %v3716 = vpack.c.b16 %v2271, %v2254
    %v3717 = vpack.c.b16 %v2272, %v2255
    %v3718 = vpack.c.b16 %v2273, %v2256
    %v3719 = vpack.c.b16 %v2274, %v2257
    %v3720 = vpack.c.b16 %v2275, %v2258
    %v3721 = vpack.c.b16 %v2276, %v2259
    %v3722 = vpack.c.b16 %v2277, %v2260
    %v3723 = vpack.c.b16 %v2278, %v2261
    %v3724 = vpack.c.b16 %v2279, %v2262
    %v3725 = vpack.c.b16 %v2280, %v2263
    %v3726 = vpack.c.b16 %v2281, %v2264
    %v3727 = vpack.c.b16 %v2282, %v2265
    %v3728 = vpack.c.b16 %v2283, %v2266
    %v3729 = vpack.c.b16 %v2301, %v2284
    %v3730 = vpack.c.b16 %v2302, %v2285
    %v3731 = vpack.c.b16 %v2303, %v2286
    %v3732 = vpack.c.b16 %v2304, %v2287
    %v3733 = vpack.c.b16 %v2305, %v2288
    %v3734 = vpack.c.b16 %v2306, %v2289
    %v3735 = vpack.c.b16 %v2307, %v2290
    %v3736 = vpack.c.b16 %v2308, %v2291
    %v3737 = vpack.c.b16 %v2309, %v2292
    %v3738 = vpack.c.b16 %v2310, %v2293
    %v3739 = vpack.c.b16 %v2311, %v2294
    %v3740 = vpack.c.b16 %v2312, %v2295
    %v3741 = vpack.c.b16 %v2313, %v2296
    %v3742 = vpack.c.b16 %v2314, %v2297
    %v3743 = vpack.c.b16 %v2315, %v2298
    %v3744 = vpack.c.b16 %v2316, %v2299
    %v3745 = vpack.c.b16 %v2317, %v2300
    %v3746 = vpack.c.b16 %v2335, %v2318
    %v3747 = vpack.c.b16 %v2336, %v2319
    %v3748 = vpack.c.b16 %v2337, %v2320
    %v3749 = vpack.c.b16 %v2338, %v2321
    %v3750 = vpack.c.b16 %v2339, %v2322
    %v3751 = vpack.c.b16 %v2340, %v2323
    %v3752 = vpack.c.b16 %v2341, %v2324
    %v3753 = vpack.c.b16 %v2342, %v2325
    %v3754 = vpack.c.b16 %v2343, %v2326
    %v3755 = vpack.c.b16 %v2344, %v2327
    %v3756 = vpack.c.b16 %v2345, %v2328
    %v3757 = vpack.c.b16 %v2346, %v2329
    %v3758 = vpack.c.b16 %v2347, %v2330
    %v3759 = vpack.c.b16 %v2348, %v2331
    %v3760 = vpack.c.b16 %v2349, %v2332
    %v3761 = vpack.c.b16 %v2350, %v2333
    %v3762 = vpack.c.b16 %v2351, %v2334
    %v3763 = vpack.c.b16 %v2369, %v2352
    %v3764 = vpack.c.b16 %v2370, %v2353
    %v3765 = vpack.c.b16 %v2371, %v2354
    %v3766 = vpack.c.b16 %v2372, %v2355
    %v3767 = vpack.c.b16 %v2373, %v2356
    %v3768 = vpack.c.b16 %v2374, %v2357
    %v3769 = vpack.c.b16 %v2375, %v2358
    %v3770 = vpack.c.b16 %v2376, %v2359
    %v3771 = vpack.c.b16 %v2377, %v2360
    %v3772 = vpack.c.b16 %v2378, %v2361
    %v3773 = vpack.c.b16 %v2379, %v2362
    %v3774 = vpack.c.b16 %v2380, %v2363
    %v3775 = vpack.c.b16 %v2381, %v2364
    %v3776 = vpack.c.b16 %v2382, %v2365
    %v3777 = vpack.c.b16 %v2383, %v2366
    %v3778 = vpack.c.b16 %v2384, %v2367
    %v3779 = vpack.c.b16 %v2385, %v2368
    %v3780 = vpack.c.b16 %v2403, %v2386
    %v3781 = vpack.c.b16 %v2404, %v2387
    %v3782 = vpack.c.b16 %v2405, %v2388
    %v3783 = vpack.c.b16 %v2406, %v2389
    %v3784 = vpack.c.b16 %v2407, %v2390
    %v3785 = vpack.c.b16 %v2408, %v2391
    %v3786 = vpack.c.b16 %v2409, %v2392
    %v3787 = vpack.c.b16 %v2410, %v2393
    %v3788 = vpack.c.b16 %v2411, %v2394
    %v3789 = vpack.c.b16 %v2412, %v2395
    %v3790 = vpack.c.b16 %v2413, %v2396
    %v3791 = vpack.c.b16 %v2414, %v2397
    %v3792 = vpack.c.b16 %v2415, %v2398
    %v3793 = vpack.c.b16 %v2416, %v2399
    %v3794 = vpack.c.b16 %v2417, %v2400
    %v3795 = vpack.c.b16 %v2418, %v2401
    %v3796 = vpack.c.b16 %v2419, %v2402
    %v3797 = vpack.c.b16 %v2437, %v2420
    %v3798 = vpack.c.b16 %v2438, %v2421
    %v3799 = vpack.c.b16 %v2439, %v2422
    %v3800 = vpack.c.b16 %v2440, %v2423
    %v3801 = vpack.c.b16 %v2441, %v2424
    %v3802 = vpack.c.b16 %v2442, %v2425
    %v3803 = vpack.c.b16 %v2443, %v2426
    %v3804 = vpack.c.b16 %v2444, %v2427
    %v3805 = vpack.c.b16 %v2445, %v2428
    %v3806 = vpack.c.b16 %v2446, %v2429
    %v3807 = vpack.c.b16 %v2447, %v2430
    %v3808 = vpack.c.b16 %v2448, %v2431
    %v3809 = vpack.c.b16 %v2449, %v2432
    %v3810 = vpack.c.b16 %v2450, %v2433
    %v3811 = vpack.c.b16 %v2451, %v2434
    %v3812 = vpack.c.b16 %v2452, %v2435
    %v3813 = vpack.c.b16 %v2453, %v2436
    %v3814 = vpack.c.b16 %v2471, %v2454
    %v3815 = vpack.c.b16 %v2472, %v2455
    %v3816 = vpack.c.b16 %v2473, %v2456
    %v3817 = vpack.c.b16 %v2474, %v2457
    %v3818 = vpack.c.b16 %v2475, %v2458
    %v3819 = vpack.c.b16 %v2476, %v2459
    %v3820 = vpack.c.b16 %v2477, %v2460
    %v3821 = vpack.c.b16 %v2478, %v2461
    %v3822 = vpack.c.b16 %v2479, %v2462
    %v3823 = vpack.c.b16 %v2480, %v2463
    %v3824 = vpack.c.b16 %v2481, %v2464
    %v3825 = vpack.c.b16 %v2482, %v2465
    %v3826 = vpack.c.b16 %v2483, %v2466
    %v3827 = vpack.c.b16 %v2484, %v2467
    %v3828 = vpack.c.b16 %v2485, %v2468
    %v3829 = vpack.c.b16 %v2486, %v2469
    %v3830 = vpack.c.b16 %v2487, %v2470
    %v3831 = vpack.c.b16 %v2505, %v2488
    %v3832 = vpack.c.b16 %v2506, %v2489
    %v3833 = vpack.c.b16 %v2507, %v2490
    %v3834 = vpack.c.b16 %v2508, %v2491
    %v3835 = vpack.c.b16 %v2509, %v2492
    %v3836 = vpack.c.b16 %v2510, %v2493
    %v3837 = vpack.c.b16 %v2511, %v2494
    %v3838 = vpack.c.b16 %v2512, %v2495
    %v3839 = vpack.c.b16 %v2513, %v2496
    %v3840 = vpack.c.b16 %v2514, %v2497
    %v3841 = vpack.c.b16 %v2515, %v2498
    %v3842 = vpack.c.b16 %v2516, %v2499
    %v3843 = vpack.c.b16 %v2517, %v2500
    %v3844 = vpack.c.b16 %v2518, %v2501
    %v3845 = vpack.c.b16 %v2519, %v2502
    %v3846 = vpack.c.b16 %v2520, %v2503
    %v3847 = vpack.c.b16 %v2521, %v2504
    %v3848 = vpack.c.b16 %v2539, %v2522
    %v3849 = vpack.c.b16 %v2540, %v2523
    %v3850 = vpack.c.b16 %v2541, %v2524
    %v3851 = vpack.c.b16 %v2542, %v2525
    %v3852 = vpack.c.b16 %v2543, %v2526
    %v3853 = vpack.c.b16 %v2544, %v2527
    %v3854 = vpack.c.b16 %v2545, %v2528
    %v3855 = vpack.c.b16 %v2546, %v2529
    %v3856 = vpack.c.b16 %v2547, %v2530
    %v3857 = vpack.c.b16 %v2548, %v2531
    %v3858 = vpack.c.b16 %v2549, %v2532
    %v3859 = vpack.c.b16 %v2550, %v2533
    %v3860 = vpack.c.b16 %v2551, %v2534
    %v3861 = vpack.c.b16 %v2552, %v2535
    %v3862 = vpack.c.b16 %v2553, %v2536
    %v3863 = vpack.c.b16 %v2554, %v2537
    %v3864 = vpack.c.b16 %v2555, %v2538
    %v3865 = vpack.c.b16 %v2573, %v2556
    %v3866 = vpack.c.b16 %v2574, %v2557
    %v3867 = vpack.c.b16 %v2575, %v2558
    %v3868 = vpack.c.b16 %v2576, %v2559
    %v3869 = vpack.c.b16 %v2577, %v2560
    %v3870 = vpack.c.b16 %v2578, %v2561
    %v3871 = vpack.c.b16 %v2579, %v2562
    %v3872 = vpack.c.b16 %v2580, %v2563
    %v3873 = vpack.c.b16 %v2581, %v2564
    %v3874 = vpack.c.b16 %v2582, %v2565
    %v3875 = vpack.c.b16 %v2583, %v2566
    %v3876 = vpack.c.b16 %v2584, %v2567
    %v3877 = vpack.c.b16 %v2585, %v2568
    %v3878 = vpack.c.b16 %v2586, %v2569
    %v3879 = vpack.c.b16 %v2587, %v2570
    %v3880 = vpack.c.b16 %v2588, %v2571
    %v3881 = vpack.c.b16 %v2589, %v2572
    %v3882 = vpack.c.b16 %v2607, %v2590
    %v3883 = vpack.c.b16 %v2608, %v2591
    %v3884 = vpack.c.b16 %v2609, %v2592
    %v3885 = vpack.c.b16 %v2610, %v2593
    %v3886 = vpack.c.b16 %v2611, %v2594
    %v3887 = vpack.c.b16 %v2612, %v2595
    %v3888 = vpack.c.b16 %v2613, %v2596
    %v3889 = vpack.c.b16 %v2614, %v2597
    %v3890 = vpack.c.b16 %v2615, %v2598
    %v3891 = vpack.c.b16 %v2616, %v2599
    %v3892 = vpack.c.b16 %v2617, %v2600
    %v3893 = vpack.c.b16 %v2618, %v2601
    %v3894 = vpack.c.b16 %v2619, %v2602
    %v3895 = vpack.c.b16 %v2620, %v2603
    %v3896 = vpack.c.b16 %v2621, %v2604
    %v3897 = vpack.c.b16 %v2622, %v2605
    %v3898 = vpack.c.b16 %v2623, %v2606
    %v3899 = vpack.c.b16 %v2641, %v2624
    %v3900 = vpack.c.b16 %v2642, %v2625
    %v3901 = vpack.c.b16 %v2643, %v2626
    %v3902 = vpack.c.b16 %v2644, %v2627
    %v3903 = vpack.c.b16 %v2645, %v2628
    %v3904 = vpack.c.b16 %v2646, %v2629
    %v3905 = vpack.c.b16 %v2647, %v2630
    %v3906 = vpack.c.b16 %v2648, %v2631
    %v3907 = vpack.c.b16 %v2649, %v2632
    %v3908 = vpack.c.b16 %v2650, %v2633
    %v3909 = vpack.c.b16 %v2651, %v2634
    %v3910 = vpack.c.b16 %v2652, %v2635
    %v3911 = vpack.c.b16 %v2653, %v2636
    %v3912 = vpack.c.b16 %v2654, %v2637
    %v3913 = vpack.c.b16 %v2655, %v2638
    %v3914 = vpack.c.b16 %v2656, %v2639
    %v3915 = vpack.c.b16 %v2657, %v2640
    %v3916 = vpack.c.b16 %v2675, %v2658
    %v3917 = vpack.c.b16 %v2676, %v2659
    %v3918 = vpack.c.b16 %v2677, %v2660
    %v3919 = vpack.c.b16 %v2678, %v2661
    %v3920 = vpack.c.b16 %v2679, %v2662
    %v3921 = vpack.c.b16 %v2680, %v2663
    %v3922 = vpack.c.b16 %v2681, %v2664
    %v3923 = vpack.c.b16 %v2682, %v2665
    %v3924 = vpack.c.b16 %v2683, %v2666
    %v3925 = vpack.c.b16 %v2684, %v2667
    %v3926 = vpack.c.b16 %v2685, %v2668
    %v3927 = vpack.c.b16 %v2686, %v2669
    %v3928 = vpack.c.b16 %v2687, %v2670
    %v3929 = vpack.c.b16 %v2688, %v2671
    %v3930 = vpack.c.b16 %v2689, %v2672
    %v3931 = vpack.c.b16 %v2690, %v2673
    %v3932 = vpack.c.b16 %v2691, %v2674
    %v3933 = vpack.c.b16 %v2709, %v2692
    %v3934 = vpack.c.b16 %v2710, %v2693
    %v3935 = vpack.c.b16 %v2711, %v2694
    %v3936 = vpack.c.b16 %v2712, %v2695
    %v3937 = vpack.c.b16 %v2713, %v2696
    %v3938 = vpack.c.b16 %v2714, %v2697
    %v3939 = vpack.c.b16 %v2715, %v2698
    %v3940 = vpack.c.b16 %v2716, %v2699
    %v3941 = vpack.c.b16 %v2717, %v2700
    %v3942 = vpack.c.b16 %v2718, %v2701
    %v3943 = vpack.c.b16 %v2719, %v2702
    %v3944 = vpack.c.b16 %v2720, %v2703
    %v3945 = vpack.c.b16 %v2721, %v2704
    %v3946 = vpack.c.b16 %v2722, %v2705
    %v3947 = vpack.c.b16 %v2723, %v2706
    %v3948 = vpack.c.b16 %v2724, %v2707
    %v3949 = vpack.c.b16 %v2725, %v2708
    %v3950 = vpack.c.b16 %v2743, %v2726
    %v3951 = vpack.c.b16 %v2744, %v2727
    %v3952 = vpack.c.b16 %v2745, %v2728
    %v3953 = vpack.c.b16 %v2746, %v2729
    %v3954 = vpack.c.b16 %v2747, %v2730
    %v3955 = vpack.c.b16 %v2748, %v2731
    %v3956 = vpack.c.b16 %v2749, %v2732
    %v3957 = vpack.c.b16 %v2750, %v2733
    %v3958 = vpack.c.b16 %v2751, %v2734
    %v3959 = vpack.c.b16 %v2752, %v2735
    %v3960 = vpack.c.b16 %v2753, %v2736
    %v3961 = vpack.c.b16 %v2754, %v2737
    %v3962 = vpack.c.b16 %v2755, %v2738
    %v3963 = vpack.c.b16 %v2756, %v2739
    %v3964 = vpack.c.b16 %v2757, %v2740
    %v3965 = vpack.c.b16 %v2758, %v2741
    %v3966 = vpack.c.b16 %v2759, %v2742
    %v3967 = vpack.c.b16 %v2777, %v2760
    %v3968 = vpack.c.b16 %v2778, %v2761
    %v3969 = vpack.c.b16 %v2779, %v2762
    %v3970 = vpack.c.b16 %v2780, %v2763
    %v3971 = vpack.c.b16 %v2781, %v2764
    %v3972 = vpack.c.b16 %v2782, %v2765
    %v3973 = vpack.c.b16 %v2783, %v2766
    %v3974 = vpack.c.b16 %v2784, %v2767
    %v3975 = vpack.c.b16 %v2785, %v2768
    %v3976 = vpack.c.b16 %v2786, %v2769
    %v3977 = vpack.c.b16 %v2787, %v2770
    %v3978 = vpack.c.b16 %v2788, %v2771
    %v3979 = vpack.c.b16 %v2789, %v2772
    %v3980 = vpack.c.b16 %v2790, %v2773
    %v3981 = vpack.c.b16 %v2791, %v2774
    %v3982 = vpack.c.b16 %v2792, %v2775
    %v3983 = vpack.c.b16 %v2793, %v2776
    %v3984 = vpack.c.b16 %v2811, %v2794
    %v3985 = vpack.c.b16 %v2812, %v2795
    %v3986 = vpack.c.b16 %v2813, %v2796
    %v3987 = vpack.c.b16 %v2814, %v2797
    %v3988 = vpack.c.b16 %v2815, %v2798
    %v3989 = vpack.c.b16 %v2816, %v2799
    %v3990 = vpack.c.b16 %v2817, %v2800
    %v3991 = vpack.c.b16 %v2818, %v2801
    %v3992 = vpack.c.b16 %v2819, %v2802
    %v3993 = vpack.c.b16 %v2820, %v2803
    %v3994 = vpack.c.b16 %v2821, %v2804
    %v3995 = vpack.c.b16 %v2822, %v2805
    %v3996 = vpack.c.b16 %v2823, %v2806
    %v3997 = vpack.c.b16 %v2824, %v2807
    %v3998 = vpack.c.b16 %v2825, %v2808
    %v3999 = vpack.c.b16 %v2826, %v2809
    %v4000 = vpack.c.b16 %v2827, %v2810
    %v4001 = vpack.c.b16 %v2845, %v2828
    %v4002 = vpack.c.b16 %v2846, %v2829
    %v4003 = vpack.c.b16 %v2847, %v2830
    %v4004 = vpack.c.b16 %v2848, %v2831
    %v4005 = vpack.c.b16 %v2849, %v2832
    %v4006 = vpack.c.b16 %v2850, %v2833
    %v4007 = vpack.c.b16 %v2851, %v2834
    %v4008 = vpack.c.b16 %v2852, %v2835
    %v4009 = vpack.c.b16 %v2853, %v2836
    %v4010 = vpack.c.b16 %v2854, %v2837
    %v4011 = vpack.c.b16 %v2855, %v2838
    %v4012 = vpack.c.b16 %v2856, %v2839
    %v4013 = vpack.c.b16 %v2857, %v2840
    %v4014 = vpack.c.b16 %v2858, %v2841
    %v4015 = vpack.c.b16 %v2859, %v2842
    %v4016 = vpack.c.b16 %v2860, %v2843
    %v4017 = vpack.c.b16 %v2861, %v2844
    %v4018 = vpack.c.b16 %v2879, %v2862
    %v4019 = vpack.c.b16 %v2880, %v2863
    %v4020 = vpack.c.b16 %v2881, %v2864
    %v4021 = vpack.c.b16 %v2882, %v2865
    %v4022 = vpack.c.b16 %v2883, %v2866
    %v4023 = vpack.c.b16 %v2884, %v2867
    %v4024 = vpack.c.b16 %v2885, %v2868
    %v4025 = vpack.c.b16 %v2886, %v2869
    %v4026 = vpack.c.b16 %v2887, %v2870
    %v4027 = vpack.c.b16 %v2888, %v2871
    %v4028 = vpack.c.b16 %v2889, %v2872
    %v4029 = vpack.c.b16 %v2890, %v2873
    %v4030 = vpack.c.b16 %v2891, %v2874
    %v4031 = vpack.c.b16 %v2892, %v2875
    %v4032 = vpack.c.b16 %v2893, %v2876
    %v4033 = vpack.c.b16 %v2894, %v2877
    %v4034 = vpack.c.b16 %v2895, %v2878
    %v4035 = vpack.c.b16 %v2913, %v2896
    %v4036 = vpack.c.b16 %v2914, %v2897
    %v4037 = vpack.c.b16 %v2915, %v2898
    %v4038 = vpack.c.b16 %v2916, %v2899
    %v4039 = vpack.c.b16 %v2917, %v2900
    %v4040 = vpack.c.b16 %v2918, %v2901
    %v4041 = vpack.c.b16 %v2919, %v2902
    %v4042 = vpack.c.b16 %v2920, %v2903
    %v4043 = vpack.c.b16 %v2921, %v2904
    %v4044 = vpack.c.b16 %v2922, %v2905
    %v4045 = vpack.c.b16 %v2923, %v2906
    %v4046 = vpack.c.b16 %v2924, %v2907
    %v4047 = vpack.c.b16 %v2925, %v2908
    %v4048 = vpack.c.b16 %v2926, %v2909
    %v4049 = vpack.c.b16 %v2927, %v2910
    %v4050 = vpack.c.b16 %v2928, %v2911
    %v4051 = vpack.c.b16 %v2929, %v2912
    %v4052 = vpack.c.b16 %v2947, %v2930
    %v4053 = vpack.c.b16 %v2948, %v2931
    %v4054 = vpack.c.b16 %v2949, %v2932
    %v4055 = vpack.c.b16 %v2950, %v2933
    %v4056 = vpack.c.b16 %v2951, %v2934
    %v4057 = vpack.c.b16 %v2952, %v2935
    %v4058 = vpack.c.b16 %v2953, %v2936
    %v4059 = vpack.c.b16 %v2954, %v2937
    %v4060 = vpack.c.b16 %v2955, %v2938
    %v4061 = vpack.c.b16 %v2956, %v2939
    %v4062 = vpack.c.b16 %v2957, %v2940
    %v4063 = vpack.c.b16 %v2958, %v2941
    %v4064 = vpack.c.b16 %v2959, %v2942
    %v4065 = vpack.c.b16 %v2960, %v2943
    %v4066 = vpack.c.b16 %v2961, %v2944
    %v4067 = vpack.c.b16 %v2962, %v2945
    %v4068 = vpack.c.b16 %v2963, %v2946
    %v4069 = vpack.c.b16 %v2981, %v2964
    %v4070 = vpack.c.b16 %v2982, %v2965
    %v4071 = vpack.c.b16 %v2983, %v2966
    %v4072 = vpack.c.b16 %v2984, %v2967
    %v4073 = vpack.c.b16 %v2985, %v2968
    %v4074 = vpack.c.b16 %v2986, %v2969
    %v4075 = vpack.c.b16 %v2987, %v2970
    %v4076 = vpack.c.b16 %v2988, %v2971
    %v4077 = vpack.c.b16 %v2989, %v2972
    %v4078 = vpack.c.b16 %v2990, %v2973
    %v4079 = vpack.c.b16 %v2991, %v2974
    %v4080 = vpack.c.b16 %v2992, %v2975
    %v4081 = vpack.c.b16 %v2993, %v2976
    %v4082 = vpack.c.b16 %v2994, %v2977
    %v4083 = vpack.c.b16 %v2995, %v2978
    %v4084 = vpack.c.b16 %v2996, %v2979
    %v4085 = vpack.c.b16 %v2997, %v2980
    %v4086 = vpack.c.b16 %v3015, %v2998
    %v4087 = vpack.c.b16 %v3016, %v2999
    %v4088 = vpack.c.b16 %v3017, %v3000
    %v4089 = vpack.c.b16 %v3018, %v3001
    %v4090 = vpack.c.b16 %v3019, %v3002
    %v4091 = vpack.c.b16 %v3020, %v3003
    %v4092 = vpack.c.b16 %v3021, %v3004
    %v4093 = vpack.c.b16 %v3022, %v3005
    %v4094 = vpack.c.b16 %v3023, %v3006
    %v4095 = vpack.c.b16 %v3024, %v3007
    %v4096 = vpack.c.b16 %v3025, %v3008
    %v4097 = vpack.c.b16 %v3026, %v3009
    %v4098 = vpack.c.b16 %v3027, %v3010
    %v4099 = vpack.c.b16 %v3028, %v3011
    %v4100 = vpack.c.b16 %v3029, %v3012
    %v4101 = vpack.c.b16 %v3030, %v3013
    %v4102 = vpack.c.b16 %v3031, %v3014
    %v4103 = vpack.c.b16 %v3049, %v3032
    %v4104 = vpack.c.b16 %v3050, %v3033
    %v4105 = vpack.c.b16 %v3051, %v3034
    %v4106 = vpack.c.b16 %v3052, %v3035
    %v4107 = vpack.c.b16 %v3053, %v3036
    %v4108 = vpack.c.b16 %v3054, %v3037
    %v4109 = vpack.c.b16 %v3055, %v3038
    %v4110 = vpack.c.b16 %v3056, %v3039
    %v4111 = vpack.c.b16 %v3057, %v3040
    %v4112 = vpack.c.b16 %v3058, %v3041
    %v4113 = vpack.c.b16 %v3059, %v3042
    %v4114 = vpack.c.b16 %v3060, %v3043
    %v4115 = vpack.c.b16 %v3061, %v3044
    %v4116 = vpack.c.b16 %v3062, %v3045
    %v4117 = vpack.c.b16 %v3063, %v3046
    %v4118 = vpack.c.b16 %v3064, %v3047
    %v4119 = vpack.c.b16 %v3065, %v3048
    %v4120 = vpack.c.b16 %v3083, %v3066
    %v4121 = vpack.c.b16 %v3084, %v3067
    %v4122 = vpack.c.b16 %v3085, %v3068
    %v4123 = vpack.c.b16 %v3086, %v3069
    %v4124 = vpack.c.b16 %v3087, %v3070
    %v4125 = vpack.c.b16 %v3088, %v3071
    %v4126 = vpack.c.b16 %v3089, %v3072
    %v4127 = vpack.c.b16 %v3090, %v3073
    %v4128 = vpack.c.b16 %v3091, %v3074
    %v4129 = vpack.c.b16 %v3092, %v3075
    %v4130 = vpack.c.b16 %v3093, %v3076
    %v4131 = vpack.c.b16 %v3094, %v3077
    %v4132 = vpack.c.b16 %v3095, %v3078
    %v4133 = vpack.c.b16 %v3096, %v3079
    %v4134 = vpack.c.b16 %v3097, %v3080
    %v4135 = vpack.c.b16 %v3098, %v3081
    %v4136 = vpack.c.b16 %v3099, %v3082
    %v4137 = vpack.c.b16 %v3117, %v3100
    %v4138 = vpack.c.b16 %v3118, %v3101
    %v4139 = vpack.c.b16 %v3119, %v3102
    %v4140 = vpack.c.b16 %v3120, %v3103
    %v4141 = vpack.c.b16 %v3121, %v3104
    %v4142 = vpack.c.b16 %v3122, %v3105
    %v4143 = vpack.c.b16 %v3123, %v3106
    %v4144 = vpack.c.b16 %v3124, %v3107
    %v4145 = vpack.c.b16 %v3125, %v3108
    %v4146 = vpack.c.b16 %v3126, %v3109
    %v4147 = vpack.c.b16 %v3127, %v3110
    %v4148 = vpack.c.b16 %v3128, %v3111
    %v4149 = vpack.c.b16 %v3129, %v3112
    %v4150 = vpack.c.b16 %v3130, %v3113
    %v4151 = vpack.c.b16 %v3131, %v3114
    %v4152 = vpack.c.b16 %v3132, %v3115
    %v4153 = vpack.c.b16 %v3133, %v3116
    %v4154 = vpack.c.b16 %v3151, %v3134
    %v4155 = vpack.c.b16 %v3152, %v3135
    %v4156 = vpack.c.b16 %v3153, %v3136
    %v4157 = vpack.c.b16 %v3154, %v3137
    %v4158 = vpack.c.b16 %v3155, %v3138
    %v4159 = vpack.c.b16 %v3156, %v3139
    %v4160 = vpack.c.b16 %v3157, %v3140
    %v4161 = vpack.c.b16 %v3158, %v3141
    %v4162 = vpack.c.b16 %v3159, %v3142
    %v4163 = vpack.c.b16 %v3160, %v3143
    %v4164 = vpack.c.b16 %v3161, %v3144
    %v4165 = vpack.c.b16 %v3162, %v3145
    %v4166 = vpack.c.b16 %v3163, %v3146
    %v4167 = vpack.c.b16 %v3164, %v3147
    %v4168 = vpack.c.b16 %v3165, %v3148
    %v4169 = vpack.c.b16 %v3166, %v3149
    %v4170 = vpack.c.b16 %v3167, %v3150
    %v4171 = vpack.c.b16 %v3185, %v3168
    %v4172 = vpack.c.b16 %v3186, %v3169
    %v4173 = vpack.c.b16 %v3187, %v3170
    %v4174 = vpack.c.b16 %v3188, %v3171
    %v4175 = vpack.c.b16 %v3189, %v3172
    %v4176 = vpack.c.b16 %v3190, %v3173
    %v4177 = vpack.c.b16 %v3191, %v3174
    %v4178 = vpack.c.b16 %v3192, %v3175
    %v4179 = vpack.c.b16 %v3193, %v3176
    %v4180 = vpack.c.b16 %v3194, %v3177
    %v4181 = vpack.c.b16 %v3195, %v3178
    %v4182 = vpack.c.b16 %v3196, %v3179
    %v4183 = vpack.c.b16 %v3197, %v3180
    %v4184 = vpack.c.b16 %v3198, %v3181
    %v4185 = vpack.c.b16 %v3199, %v3182
    %v4186 = vpack.c.b16 %v3200, %v3183
    %v4187 = vpack.c.b16 %v3201, %v3184
    %v4188 = vpack.c.b16 %v3219, %v3202
    %v4189 = vpack.c.b16 %v3220, %v3203
    %v4190 = vpack.c.b16 %v3221, %v3204
    %v4191 = vpack.c.b16 %v3222, %v3205
    %v4192 = vpack.c.b16 %v3223, %v3206
    %v4193 = vpack.c.b16 %v3224, %v3207
    %v4194 = vpack.c.b16 %v3225, %v3208
    %v4195 = vpack.c.b16 %v3226, %v3209
    %v4196 = vpack.c.b16 %v3227, %v3210
    %v4197 = vpack.c.b16 %v3228, %v3211
    %v4198 = vpack.c.b16 %v3229, %v3212
    %v4199 = vpack.c.b16 %v3230, %v3213
    %v4200 = vpack.c.b16 %v3231, %v3214
    %v4201 = vpack.c.b16 %v3232, %v3215
    %v4202 = vpack.c.b16 %v3233, %v3216
    %v4203 = vpack.c.b16 %v3234, %v3217
    %v4204 = vpack.c.b16 %v3235, %v3218
    %v4205 = vpack.c.b16 %v3253, %v3236
    %v4206 = vpack.c.b16 %v3254, %v3237
    %v4207 = vpack.c.b16 %v3255, %v3238
    %v4208 = vpack.c.b16 %v3256, %v3239
    %v4209 = vpack.c.b16 %v3257, %v3240
    %v4210 = vpack.c.b16 %v3258, %v3241
    %v4211 = vpack.c.b16 %v3259, %v3242
    %v4212 = vpack.c.b16 %v3260, %v3243
    %v4213 = vpack.c.b16 %v3261, %v3244
    %v4214 = vpack.c.b16 %v3262, %v3245
    %v4215 = vpack.c.b16 %v3263, %v3246
    %v4216 = vpack.c.b16 %v3264, %v3247
    %v4217 = vpack.c.b16 %v3265, %v3248
    %v4218 = vpack.c.b16 %v3266, %v3249
    %v4219 = vpack.c.b16 %v3267, %v3250
    %v4220 = vpack.c.b16 %v3268, %v3251
    %v4221 = vpack.c.b16 %v3269, %v3252
    %v4222 = vpack.c.b16 %v3287, %v3270
    %v4223 = vpack.c.b16 %v3288, %v3271
    %v4224 = vpack.c.b16 %v3289, %v3272
    %v4225 = vpack.c.b16 %v3290, %v3273
    %v4226 = vpack.c.b16 %v3291, %v3274
    %v4227 = vpack.c.b16 %v3292, %v3275
    %v4228 = vpack.c.b16 %v3293, %v3276
    %v4229 = vpack.c.b16 %v3294, %v3277
    %v4230 = vpack.c.b16 %v3295, %v3278
    %v4231 = vpack.c.b16 %v3296, %v3279
    %v4232 = vpack.c.b16 %v3297, %v3280
    %v4233 = vpack.c.b16 %v3298, %v3281
    %v4234 = vpack.c.b16 %v3299, %v3282
    %v4235 = vpack.c.b16 %v3300, %v3283
    %v4236 = vpack.c.b16 %v3301, %v3284
    %v4237 = vpack.c.b16 %v3302, %v3285
    %v4238 = vpack.c.b16 %v3303, %v3286
    %v4239 = vpack.c.b16 %v3321, %v3304
    %v4240 = vpack.c.b16 %v3322, %v3305
    %v4241 = vpack.c.b16 %v3323, %v3306
    %v4242 = vpack.c.b16 %v3324, %v3307
    %v4243 = vpack.c.b16 %v3325, %v3308
    %v4244 = vpack.c.b16 %v3326, %v3309
    %v4245 = vpack.c.b16 %v3327, %v3310
    %v4246 = vpack.c.b16 %v3328, %v3311
    %v4247 = vpack.c.b16 %v3329, %v3312
    %v4248 = vpack.c.b16 %v3330, %v3313
    %v4249 = vpack.c.b16 %v3331, %v3314
    %v4250 = vpack.c.b16 %v3332, %v3315
    %v4251 = vpack.c.b16 %v3333, %v3316
    %v4252 = vpack.c.b16 %v3334, %v3317
    %v4253 = vpack.c.b16 %v3335, %v3318
    %v4254 = vpack.c.b16 %v3336, %v3319
    %v4255 = vpack.c.b16 %v3337, %v3320
    %v4256 = vpack.c.b16 %v3355, %v3338
    %v4257 = vpack.c.b16 %v3356, %v3339
    %v4258 = vpack.c.b16 %v3357, %v3340
    %v4259 = vpack.c.b16 %v3358, %v3341
    %v4260 = vpack.c.b16 %v3359, %v3342
    %v4261 = vpack.c.b16 %v3360, %v3343
    %v4262 = vpack.c.b16 %v3361, %v3344
    %v4263 = vpack.c.b16 %v3362, %v3345
    %v4264 = vpack.c.b16 %v3363, %v3346
    %v4265 = vpack.c.b16 %v3364, %v3347
    %v4266 = vpack.c.b16 %v3365, %v3348
    %v4267 = vpack.c.b16 %v3366, %v3349
    %v4268 = vpack.c.b16 %v3367, %v3350
    %v4269 = vpack.c.b16 %v3368, %v3351
    %v4270 = vpack.c.b16 %v3369, %v3352
    %v4271 = vpack.c.b16 %v3370, %v3353
    %v4272 = vpack.c.b16 %v3371, %v3354
    %v4273 = vpack.c.b16 %v3389, %v3372
    %v4274 = vpack.c.b16 %v3390, %v3373
    %v4275 = vpack.c.b16 %v3391, %v3374
    %v4276 = vpack.c.b16 %v3392, %v3375
    %v4277 = vpack.c.b16 %v3393, %v3376
    %v4278 = vpack.c.b16 %v3394, %v3377
    %v4279 = vpack.c.b16 %v3395, %v3378
    %v4280 = vpack.c.b16 %v3396, %v3379
    %v4281 = vpack.c.b16 %v3397, %v3380
    %v4282 = vpack.c.b16 %v3398, %v3381
    %v4283 = vpack.c.b16 %v3399, %v3382
    %v4284 = vpack.c.b16 %v3400, %v3383
    %v4285 = vpack.c.b16 %v3401, %v3384
    %v4286 = vpack.c.b16 %v3402, %v3385
    %v4287 = vpack.c.b16 %v3403, %v3386
    %v4288 = vpack.c.b16 %v3404, %v3387
    %v4289 = vpack.c.b16 %v3405, %v3388
    %v4290 = vpack.c.b16 %v3423, %v3406
    %v4291 = vpack.c.b16 %v3424, %v3407
    %v4292 = vpack.c.b16 %v3425, %v3408
    %v4293 = vpack.c.b16 %v3426, %v3409
    %v4294 = vpack.c.b16 %v3427, %v3410
    %v4295 = vpack.c.b16 %v3428, %v3411
    %v4296 = vpack.c.b16 %v3429, %v3412
    %v4297 = vpack.c.b16 %v3430, %v3413
    %v4298 = vpack.c.b16 %v3431, %v3414
    %v4299 = vpack.c.b16 %v3432, %v3415
    %v4300 = vpack.c.b16 %v3433, %v3416
    %v4301 = vpack.c.b16 %v3434, %v3417
    %v4302 = vpack.c.b16 %v3435, %v3418
    %v4303 = vpack.c.b16 %v3436, %v3419
    %v4304 = vpack.c.b16 %v3437, %v3420
    %v4305 = vpack.c.b16 %v3438, %v3421
    %v4306 = vpack.c.b16 %v3439, %v3422
    %v4307 = vpack.c.b16 %v3457, %v3440
    %v4308 = vpack.c.b16 %v3458, %v3441
    %v4309 = vpack.c.b16 %v3459, %v3442
    %v4310 = vpack.c.b16 %v3460, %v3443
    %v4311 = vpack.c.b16 %v3461, %v3444
    %v4312 = vpack.c.b16 %v3462, %v3445
    %v4313 = vpack.c.b16 %v3463, %v3446
    %v4314 = vpack.c.b16 %v3464, %v3447
    %v4315 = vpack.c.b16 %v3465, %v3448
    %v4316 = vpack.c.b16 %v3466, %v3449
    %v4317 = vpack.c.b16 %v3467, %v3450
    %v4318 = vpack.c.b16 %v3468, %v3451
    %v4319 = vpack.c.b16 %v3469, %v3452
    %v4320 = vpack.c.b16 %v3470, %v3453
    %v4321 = vpack.c.b16 %v3471, %v3454
    %v4322 = vpack.c.b16 %v3472, %v3455
    %v4323 = vpack.c.b16 %v3473, %v3456
    %v4324 = vpack.c.b16 %v3491, %v3474
    %v4325 = vpack.c.b16 %v3492, %v3475
    %v4326 = vpack.c.b16 %v3493, %v3476
    %v4327 = vpack.c.b16 %v3494, %v3477
    %v4328 = vpack.c.b16 %v3495, %v3478
    %v4329 = vpack.c.b16 %v3496, %v3479
    %v4330 = vpack.c.b16 %v3497, %v3480
    %v4331 = vpack.c.b16 %v3498, %v3481
    %v4332 = vpack.c.b16 %v3499, %v3482
    %v4333 = vpack.c.b16 %v3500, %v3483
    %v4334 = vpack.c.b16 %v3501, %v3484
    %v4335 = vpack.c.b16 %v3502, %v3485
    %v4336 = vpack.c.b16 %v3503, %v3486
    %v4337 = vpack.c.b16 %v3504, %v3487
    %v4338 = vpack.c.b16 %v3505, %v3488
    %v4339 = vpack.c.b16 %v3506, %v3489
    %v4340 = vpack.c.b16 %v3507, %v3490
    %v4341 = vpack.c.b16 %v3525, %v3508
    %v4342 = vpack.c.b16 %v3526, %v3509
    %v4343 = vpack.c.b16 %v3527, %v3510
    %v4344 = vpack.c.b16 %v3528, %v3511
    %v4345 = vpack.c.b16 %v3529, %v3512
    %v4346 = vpack.c.b16 %v3530, %v3513
    %v4347 = vpack.c.b16 %v3531, %v3514
    %v4348 = vpack.c.b16 %v3532, %v3515
    %v4349 = vpack.c.b16 %v3533, %v3516
    %v4350 = vpack.c.b16 %v3534, %v3517
    %v4351 = vpack.c.b16 %v3535, %v3518
    %v4352 = vpack.c.b16 %v3536, %v3519
    %v4353 = vpack.c.b16 %v3537, %v3520
    %v4354 = vpack.c.b16 %v3538, %v3521
    %v4355 = vpack.c.b16 %v3539, %v3522
    %v4356 = vpack.c.b16 %v3540, %v3523
    %v4357 = vpack.c.b16 %v3541, %v3524
    %5174 = vmatprep.subr.bf16.mxu0 %v3543
    %5175 = vmatpush1.bf16.msra.mxu0 %v3542
    %5176 = vmatprep.subr.bf16.mxu0 %v3560
    %5177 = vmatpush1.bf16.msra.mxu0 %v3559
    %5178 = vmatprep.subr.bf16.mxu0 %v3577
    %5179 = vmatpush1.bf16.msra.mxu0 %v3576
    %5180 = vmatprep.subr.bf16.mxu0 %v3594
    %5181 = vmatpush1.bf16.msra.mxu0 %v3593
    %5182 = vmatprep.subr.bf16.mxu0 %v3611
    %5183 = vmatpush1.bf16.msra.mxu0 %v3610
    %5184 = vmatprep.subr.bf16.mxu0 %v3628
    %5185 = vmatpush1.bf16.msra.mxu0 %v3627
    %5186 = vmatprep.subr.bf16.mxu0 %v3645
    %5187 = vmatpush1.bf16.msra.mxu0 %v3644
    %5188 = vmatprep.subr.bf16.mxu0 %v3662
    %5189 = vmatpush1.bf16.msra.mxu0 %v3661
    %5190 = vmatprep.subr.bf16.mxu0 %v3679
    %5191 = vmatpush1.bf16.msra.mxu0 %v3678
    %5192 = vmatprep.subr.bf16.mxu0 %v3696
    %5193 = vmatpush1.bf16.msra.mxu0 %v3695
    %5194 = vmatprep.subr.bf16.mxu0 %v3713
    %5195 = vmatpush1.bf16.msra.mxu0 %v3712
    %5196 = vmatprep.subr.bf16.mxu0 %v3730
    %5197 = vmatpush1.bf16.msra.mxu0 %v3729
    %5198 = vmatprep.subr.bf16.mxu0 %v3747
    %5199 = vmatpush1.bf16.msra.mxu0 %v3746
    %5200 = vmatprep.subr.bf16.mxu0 %v3764
    %5201 = vmatpush1.bf16.msra.mxu0 %v3763
    %5202 = vmatprep.subr.bf16.mxu0 %v3781
    %5203 = vmatpush1.bf16.msra.mxu0 %v3780
    %5204 = vmatprep.subr.bf16.mxu0 %v3798
    %5205 = vmatpush1.bf16.msra.mxu0 %v3797
    %5206 = vmatprep.mubr.bf16.mxu0 %v1035
    %5207 = vmatmul.mubr.bf16.gmra.mrb[0].mxu0 %v1034
    %v5208 = vpop.f32.mrb[0].mxu0
    %v5209 = vadd.f32 %v934, %v5208
    %v5210 = vpop.f32.mrb[0].mxu0
    %v5211 = vadd.f32 %v938, %v5210
    %v5212 = vpop.f32.mrb[0].mxu0
    %v5213 = vadd.f32 %v934, %v5212
    %v5214 = vpop.f32.mrb[0].mxu0
    %v5215 = vadd.f32 %v938, %v5214
    %5216 = vdwg.mxu0
    %5217 = vmatprep.subr.bf16.mxu0 %v3815
    %5218 = vmatpush1.bf16.msra.mxu0 %v3814
    %5219 = vmatprep.subr.bf16.mxu0 %v3832
    %5220 = vmatpush1.bf16.msra.mxu0 %v3831
    %5221 = vmatprep.subr.bf16.mxu0 %v3849
    %5222 = vmatpush1.bf16.msra.mxu0 %v3848
    %5223 = vmatprep.subr.bf16.mxu0 %v3866
    %5224 = vmatpush1.bf16.msra.mxu0 %v3865
    %5225 = vmatprep.subr.bf16.mxu0 %v3883
    %5226 = vmatpush1.bf16.msra.mxu0 %v3882
    %5227 = vmatprep.subr.bf16.mxu0 %v3900
    %5228 = vmatpush1.bf16.msra.mxu0 %v3899
    %5229 = vmatprep.subr.bf16.mxu0 %v3917
    %5230 = vmatpush1.bf16.msra.mxu0 %v3916
    %5231 = vmatprep.subr.bf16.mxu0 %v3934
    %5232 = vmatpush1.bf16.msra.mxu0 %v3933
    %5233 = vmatprep.subr.bf16.mxu0 %v3951
    %5234 = vmatpush1.bf16.msra.mxu0 %v3950
    %5235 = vmatprep.subr.bf16.mxu0 %v3968
    %5236 = vmatpush1.bf16.msra.mxu0 %v3967
    %5237 = vmatprep.subr.bf16.mxu0 %v3985
    %5238 = vmatpush1.bf16.msra.mxu0 %v3984
    %5239 = vmatprep.subr.bf16.mxu0 %v4002
    %5240 = vmatpush1.bf16.msra.mxu0 %v4001
    %5241 = vmatprep.subr.bf16.mxu0 %v4019
    %5242 = vmatpush1.bf16.msra.mxu0 %v4018
    %5243 = vmatprep.subr.bf16.mxu0 %v4036
    %5244 = vmatpush1.bf16.msra.mxu0 %v4035
    %5245 = vmatprep.subr.bf16.mxu0 %v4053
    %5246 = vmatpush1.bf16.msra.mxu0 %v4052
    %5247 = vmatprep.subr.bf16.mxu0 %v4070
    %5248 = vmatpush1.bf16.msra.mxu0 %v4069
    %5249 = vmatprep.mubr.bf16.mxu0 %v1037
    %5250 = vmatmul.mubr.bf16.gmra.mrb[0].mxu0 %v1036
    %v5251 = vpop.f32.mrb[0].mxu0
    %v5252 = vadd.f32 %v5209, %v5251
    %v5253 = vpop.f32.mrb[0].mxu0
    %v5254 = vadd.f32 %v5211, %v5253
    %v5255 = vpop.f32.mrb[0].mxu0
    %v5256 = vadd.f32 %v5213, %v5255
    %v5257 = vpop.f32.mrb[0].mxu0
    %v5258 = vadd.f32 %v5215, %v5257
    %5259 = vdwg.mxu0
    %5260 = vmatprep.subr.bf16.mxu0 %v4087
    %5261 = vmatpush1.bf16.msra.mxu0 %v4086
    %5262 = vmatprep.subr.bf16.mxu0 %v4104
    %5263 = vmatpush1.bf16.msra.mxu0 %v4103
    %5264 = vmatprep.subr.bf16.mxu0 %v4121
    %5265 = vmatpush1.bf16.msra.mxu0 %v4120
    %5266 = vmatprep.subr.bf16.mxu0 %v4138
    %5267 = vmatpush1.bf16.msra.mxu0 %v4137
    %5268 = vmatprep.subr.bf16.mxu0 %v4155
    %5269 = vmatpush1.bf16.msra.mxu0 %v4154
    %5270 = vmatprep.subr.bf16.mxu0 %v4172
    %5271 = vmatpush1.bf16.msra.mxu0 %v4171
    %5272 = vmatprep.subr.bf16.mxu0 %v4189
    %5273 = vmatpush1.bf16.msra.mxu0 %v4188
    %5274 = vmatprep.subr.bf16.mxu0 %v4206
    %5275 = vmatpush1.bf16.msra.mxu0 %v4205
    %5276 = vmatprep.subr.bf16.mxu0 %v4223
    %5277 = vmatpush1.bf16.msra.mxu0 %v4222
    %5278 = vmatprep.subr.bf16.mxu0 %v4240
    %5279 = vmatpush1.bf16.msra.mxu0 %v4239
    %5280 = vmatprep.subr.bf16.mxu0 %v4257
    %5281 = vmatpush1.bf16.msra.mxu0 %v4256
    %5282 = vmatprep.subr.bf16.mxu0 %v4274
    %5283 = vmatpush1.bf16.msra.mxu0 %v4273
    %5284 = vmatprep.subr.bf16.mxu0 %v4291
    %5285 = vmatpush1.bf16.msra.mxu0 %v4290
    %5286 = vmatprep.subr.bf16.mxu0 %v4308
    %5287 = vmatpush1.bf16.msra.mxu0 %v4307
    %5288 = vmatprep.subr.bf16.mxu0 %v4325
    %5289 = vmatpush1.bf16.msra.mxu0 %v4324
    %5290 = vmatprep.subr.bf16.mxu0 %v4342
    %5291 = vmatpush1.bf16.msra.mxu0 %v4341
    %5292 = vmatprep.mubr.bf16.mxu0 %v1039
    %5293 = vmatmul.mubr.bf16.gmra.mrb[0].mxu0 %v1038
    %v5294 = vpop.f32.mrb[0].mxu0
    %v5295 = vadd.f32 %v5252, %v5294
    %v5296 = vpop.f32.mrb[0].mxu0
    %v5297 = vadd.f32 %v5254, %v5296
    %v5298 = vpop.f32.mrb[0].mxu0
    %v5299 = vadd.f32 %v5256, %v5298
    %v5300 = vpop.f32.mrb[0].mxu0
    %v5301 = vadd.f32 %v5258, %v5300
    %5302 = vdwg.mxu0
    %5303 = vmatprep.subr.bf16.mxu0 %v3545
    %5304 = vmatpush1.bf16.msra.mxu0 %v3544
    %5305 = vmatprep.subr.bf16.mxu0 %v3562
    %5306 = vmatpush1.bf16.msra.mxu0 %v3561
    %5307 = vmatprep.subr.bf16.mxu0 %v3579
    %5308 = vmatpush1.bf16.msra.mxu0 %v3578
    %5309 = vmatprep.subr.bf16.mxu0 %v3596
    %5310 = vmatpush1.bf16.msra.mxu0 %v3595
    %5311 = vmatprep.subr.bf16.mxu0 %v3613
    %5312 = vmatpush1.bf16.msra.mxu0 %v3612
    %5313 = vmatprep.subr.bf16.mxu0 %v3630
    %5314 = vmatpush1.bf16.msra.mxu0 %v3629
    %5315 = vmatprep.subr.bf16.mxu0 %v3647
    %5316 = vmatpush1.bf16.msra.mxu0 %v3646
    %5317 = vmatprep.subr.bf16.mxu0 %v3664
    %5318 = vmatpush1.bf16.msra.mxu0 %v3663
    %5319 = vmatprep.subr.bf16.mxu0 %v3681
    %5320 = vmatpush1.bf16.msra.mxu0 %v3680
    %5321 = vmatprep.subr.bf16.mxu0 %v3698
    %5322 = vmatpush1.bf16.msra.mxu0 %v3697
    %5323 = vmatprep.subr.bf16.mxu0 %v3715
    %5324 = vmatpush1.bf16.msra.mxu0 %v3714
    %5325 = vmatprep.subr.bf16.mxu0 %v3732
    %5326 = vmatpush1.bf16.msra.mxu0 %v3731
    %5327 = vmatprep.subr.bf16.mxu0 %v3749
    %5328 = vmatpush1.bf16.msra.mxu0 %v3748
    %5329 = vmatprep.subr.bf16.mxu0 %v3766
    %5330 = vmatpush1.bf16.msra.mxu0 %v3765
    %5331 = vmatprep.subr.bf16.mxu0 %v3783
    %5332 = vmatpush1.bf16.msra.mxu0 %v3782
    %5333 = vmatprep.subr.bf16.mxu0 %v3800
    %5334 = vmatpush1.bf16.msra.mxu0 %v3799
    %5335 = vmatprep.mubr.bf16.mxu0 %v1035
    %5336 = vmatmul.mubr.bf16.gmra.mrb[0].mxu0 %v1034
    %v5337 = vpop.f32.mrb[0].mxu0
    %v5338 = vadd.f32 %v942, %v5337
    %v5339 = vpop.f32.mrb[0].mxu0
    %v5340 = vadd.f32 %v946, %v5339
    %v5341 = vpop.f32.mrb[0].mxu0
    %v5342 = vadd.f32 %v942, %v5341
    %v5343 = vpop.f32.mrb[0].mxu0
    %v5344 = vadd.f32 %v946, %v5343
    %5345 = vdwg.mxu0
    %5346 = vmatprep.subr.bf16.mxu0 %v3817
    %5347 = vmatpush1.bf16.msra.mxu0 %v3816
    %5348 = vmatprep.subr.bf16.mxu0 %v3834
    %5349 = vmatpush1.bf16.msra.mxu0 %v3833
    %5350 = vmatprep.subr.bf16.mxu0 %v3851
    %5351 = vmatpush1.bf16.msra.mxu0 %v3850
    %5352 = vmatprep.subr.bf16.mxu0 %v3868
    %5353 = vmatpush1.bf16.msra.mxu0 %v3867
    %5354 = vmatprep.subr.bf16.mxu0 %v3885
    %5355 = vmatpush1.bf16.msra.mxu0 %v3884
    %5356 = vmatprep.subr.bf16.mxu0 %v3902
    %5357 = vmatpush1.bf16.msra.mxu0 %v3901
    %5358 = vmatprep.subr.bf16.mxu0 %v3919
    %5359 = vmatpush1.bf16.msra.mxu0 %v3918
    %5360 = vmatprep.subr.bf16.mxu0 %v3936
    %5361 = vmatpush1.bf16.msra.mxu0 %v3935
    %5362 = vmatprep.subr.bf16.mxu0 %v3953
    %5363 = vmatpush1.bf16.msra.mxu0 %v3952
    %5364 = vmatprep.subr.bf16.mxu0 %v3970
    %5365 = vmatpush1.bf16.msra.mxu0 %v3969
    %5366 = vmatprep.subr.bf16.mxu0 %v3987
    %5367 = vmatpush1.bf16.msra.mxu0 %v3986
    %5368 = vmatprep.subr.bf16.mxu0 %v4004
    %5369 = vmatpush1.bf16.msra.mxu0 %v4003
    %5370 = vmatprep.subr.bf16.mxu0 %v4021
    %5371 = vmatpush1.bf16.msra.mxu0 %v4020
    %5372 = vmatprep.subr.bf16.mxu0 %v4038
    %5373 = vmatpush1.bf16.msra.mxu0 %v4037
    %5374 = vmatprep.subr.bf16.mxu0 %v4055
    %5375 = vmatpush1.bf16.msra.mxu0 %v4054
    %5376 = vmatprep.subr.bf16.mxu0 %v4072
    %5377 = vmatpush1.bf16.msra.mxu0 %v4071
    %5378 = vmatprep.mubr.bf16.mxu0 %v1037
    %5379 = vmatmul.mubr.bf16.gmra.mrb[0].mxu0 %v1036
    %v5380 = vpop.f32.mrb[0].mxu0
    %v5381 = vadd.f32 %v5338, %v5380
    %v5382 = vpop.f32.mrb[0].mxu0
    %v5383 = vadd.f32 %v5340, %v5382
    %v5384 = vpop.f32.mrb[0].mxu0
    %v5385 = vadd.f32 %v5342, %v5384
    %v5386 = vpop.f32.mrb[0].mxu0
    %v5387 = vadd.f32 %v5344, %v5386
    %5388 = vdwg.mxu0
    %5389 = vmatprep.subr.bf16.mxu0 %v4089
    %5390 = vmatpush1.bf16.msra.mxu0 %v4088
    %5391 = vmatprep.subr.bf16.mxu0 %v4106
    %5392 = vmatpush1.bf16.msra.mxu0 %v4105
    %5393 = vmatprep.subr.bf16.mxu0 %v4123
    %5394 = vmatpush1.bf16.msra.mxu0 %v4122
    %5395 = vmatprep.subr.bf16.mxu0 %v4140
    %5396 = vmatpush1.bf16.msra.mxu0 %v4139
    %5397 = vmatprep.subr.bf16.mxu0 %v4157
    %5398 = vmatpush1.bf16.msra.mxu0 %v4156
    %5399 = vmatprep.subr.bf16.mxu0 %v4174
    %5400 = vmatpush1.bf16.msra.mxu0 %v4173
    %5401 = vmatprep.subr.bf16.mxu0 %v4191
    %5402 = vmatpush1.bf16.msra.mxu0 %v4190
    %5403 = vmatprep.subr.bf16.mxu0 %v4208
    %5404 = vmatpush1.bf16.msra.mxu0 %v4207
    %5405 = vmatprep.subr.bf16.mxu0 %v4225
    %5406 = vmatpush1.bf16.msra.mxu0 %v4224
    %5407 = vmatprep.subr.bf16.mxu0 %v4242
    %5408 = vmatpush1.bf16.msra.mxu0 %v4241
    %5409 = vmatprep.subr.bf16.mxu0 %v4259
    %5410 = vmatpush1.bf16.msra.mxu0 %v4258
    %5411 = vmatprep.subr.bf16.mxu0 %v4276
    %5412 = vmatpush1.bf16.msra.mxu0 %v4275
    %5413 = vmatprep.subr.bf16.mxu0 %v4293
    %5414 = vmatpush1.bf16.msra.mxu0 %v4292
    %5415 = vmatprep.subr.bf16.mxu0 %v4310
    %5416 = vmatpush1.bf16.msra.mxu0 %v4309
    %5417 = vmatprep.subr.bf16.mxu0 %v4327
    %5418 = vmatpush1.bf16.msra.mxu0 %v4326
    %5419 = vmatprep.subr.bf16.mxu0 %v4344
    %5420 = vmatpush1.bf16.msra.mxu0 %v4343
    %5421 = vmatprep.mubr.bf16.mxu0 %v1039
    %5422 = vmatmul.mubr.bf16.gmra.mrb[0].mxu0 %v1038
    %v5423 = vpop.f32.mrb[0].mxu0
    %v5424 = vadd.f32 %v5381, %v5423
    %v5425 = vpop.f32.mrb[0].mxu0
    %v5426 = vadd.f32 %v5383, %v5425
    %v5427 = vpop.f32.mrb[0].mxu0
    %v5428 = vadd.f32 %v5385, %v5427
    %v5429 = vpop.f32.mrb[0].mxu0
    %v5430 = vadd.f32 %v5387, %v5429
    %5431 = vdwg.mxu0
    %5432 = vmatprep.subr.bf16.mxu0 %v3547
    %5433 = vmatpush1.bf16.msra.mxu0 %v3546
    %5434 = vmatprep.subr.bf16.mxu0 %v3564
    %5435 = vmatpush1.bf16.msra.mxu0 %v3563
    %5436 = vmatprep.subr.bf16.mxu0 %v3581
    %5437 = vmatpush1.bf16.msra.mxu0 %v3580
    %5438 = vmatprep.subr.bf16.mxu0 %v3598
    %5439 = vmatpush1.bf16.msra.mxu0 %v3597
    %5440 = vmatprep.subr.bf16.mxu0 %v3615
    %5441 = vmatpush1.bf16.msra.mxu0 %v3614
    %5442 = vmatprep.subr.bf16.mxu0 %v3632
    %5443 = vmatpush1.bf16.msra.mxu0 %v3631
    %5444 = vmatprep.subr.bf16.mxu0 %v3649
    %5445 = vmatpush1.bf16.msra.mxu0 %v3648
    %5446 = vmatprep.subr.bf16.mxu0 %v3666
    %5447 = vmatpush1.bf16.msra.mxu0 %v3665
    %5448 = vmatprep.subr.bf16.mxu0 %v3683
    %5449 = vmatpush1.bf16.msra.mxu0 %v3682
    %5450 = vmatprep.subr.bf16.mxu0 %v3700
    %5451 = vmatpush1.bf16.msra.mxu0 %v3699
    %5452 = vmatprep.subr.bf16.mxu0 %v3717
    %5453 = vmatpush1.bf16.msra.mxu0 %v3716
    %5454 = vmatprep.subr.bf16.mxu0 %v3734
    %5455 = vmatpush1.bf16.msra.mxu0 %v3733
    %5456 = vmatprep.subr.bf16.mxu0 %v3751
    %5457 = vmatpush1.bf16.msra.mxu0 %v3750
    %5458 = vmatprep.subr.bf16.mxu0 %v3768
    %5459 = vmatpush1.bf16.msra.mxu0 %v3767
    %5460 = vmatprep.subr.bf16.mxu0 %v3785
    %5461 = vmatpush1.bf16.msra.mxu0 %v3784
    %5462 = vmatprep.subr.bf16.mxu0 %v3802
    %5463 = vmatpush1.bf16.msra.mxu0 %v3801
    %5464 = vmatprep.mubr.bf16.mxu0 %v1035
    %5465 = vmatmul.mubr.bf16.gmra.mrb[0].mxu0 %v1034
    %v5466 = vpop.f32.mrb[0].mxu0
    %v5467 = vadd.f32 %v950, %v5466
    %v5468 = vpop.f32.mrb[0].mxu0
    %v5469 = vadd.f32 %v954, %v5468
    %v5470 = vpop.f32.mrb[0].mxu0
    %v5471 = vadd.f32 %v950, %v5470
    %v5472 = vpop.f32.mrb[0].mxu0
    %v5473 = vadd.f32 %v954, %v5472
    %5474 = vdwg.mxu0
    %5475 = vmatprep.subr.bf16.mxu0 %v3819
    %5476 = vmatpush1.bf16.msra.mxu0 %v3818
    %5477 = vmatprep.subr.bf16.mxu0 %v3836
    %5478 = vmatpush1.bf16.msra.mxu0 %v3835
    %5479 = vmatprep.subr.bf16.mxu0 %v3853
    %5480 = vmatpush1.bf16.msra.mxu0 %v3852
    %5481 = vmatprep.subr.bf16.mxu0 %v3870
    %5482 = vmatpush1.bf16.msra.mxu0 %v3869
    %5483 = vmatprep.subr.bf16.mxu0 %v3887
    %5484 = vmatpush1.bf16.msra.mxu0 %v3886
    %5485 = vmatprep.subr.bf16.mxu0 %v3904
    %5486 = vmatpush1.bf16.msra.mxu0 %v3903
    %5487 = vmatprep.subr.bf16.mxu0 %v3921
    %5488 = vmatpush1.bf16.msra.mxu0 %v3920
    %5489 = vmatprep.subr.bf16.mxu0 %v3938
    %5490 = vmatpush1.bf16.msra.mxu0 %v3937
    %5491 = vmatprep.subr.bf16.mxu0 %v3955
    %5492 = vmatpush1.bf16.msra.mxu0 %v3954
    %5493 = vmatprep.subr.bf16.mxu0 %v3972
    %5494 = vmatpush1.bf16.msra.mxu0 %v3971
    %5495 = vmatprep.subr.bf16.mxu0 %v3989
    %5496 = vmatpush1.bf16.msra.mxu0 %v3988
    %5497 = vmatprep.subr.bf16.mxu0 %v4006
    %5498 = vmatpush1.bf16.msra.mxu0 %v4005
    %5499 = vmatprep.subr.bf16.mxu0 %v4023
    %5500 = vmatpush1.bf16.msra.mxu0 %v4022
    %5501 = vmatprep.subr.bf16.mxu0 %v4040
    %5502 = vmatpush1.bf16.msra.mxu0 %v4039
    %5503 = vmatprep.subr.bf16.mxu0 %v4057
    %5504 = vmatpush1.bf16.msra.mxu0 %v4056
    %5505 = vmatprep.subr.bf16.mxu0 %v4074
    %5506 = vmatpush1.bf16.msra.mxu0 %v4073
    %5507 = vmatprep.mubr.bf16.mxu0 %v1037
    %5508 = vmatmul.mubr.bf16.gmra.mrb[0].mxu0 %v1036
    %v5509 = vpop.f32.mrb[0].mxu0
    %v5510 = vadd.f32 %v5467, %v5509
    %v5511 = vpop.f32.mrb[0].mxu0
    %v5512 = vadd.f32 %v5469, %v5511
    %v5513 = vpop.f32.mrb[0].mxu0
    %v5514 = vadd.f32 %v5471, %v5513
    %v5515 = vpop.f32.mrb[0].mxu0
    %v5516 = vadd.f32 %v5473, %v5515
    %5517 = vdwg.mxu0
    %5518 = vmatprep.subr.bf16.mxu0 %v4091
    %5519 = vmatpush1.bf16.msra.mxu0 %v4090
    %5520 = vmatprep.subr.bf16.mxu0 %v4108
    %5521 = vmatpush1.bf16.msra.mxu0 %v4107
    %5522 = vmatprep.subr.bf16.mxu0 %v4125
    %5523 = vmatpush1.bf16.msra.mxu0 %v4124
    %5524 = vmatprep.subr.bf16.mxu0 %v4142
    %5525 = vmatpush1.bf16.msra.mxu0 %v4141
    %5526 = vmatprep.subr.bf16.mxu0 %v4159
    %5527 = vmatpush1.bf16.msra.mxu0 %v4158
    %5528 = vmatprep.subr.bf16.mxu0 %v4176
    %5529 = vmatpush1.bf16.msra.mxu0 %v4175
    %5530 = vmatprep.subr.bf16.mxu0 %v4193
    %5531 = vmatpush1.bf16.msra.mxu0 %v4192
    %5532 = vmatprep.subr.bf16.mxu0 %v4210
    %5533 = vmatpush1.bf16.msra.mxu0 %v4209
    %5534 = vmatprep.subr.bf16.mxu0 %v4227
    %5535 = vmatpush1.bf16.msra.mxu0 %v4226
    %5536 = vmatprep.subr.bf16.mxu0 %v4244
    %5537 = vmatpush1.bf16.msra.mxu0 %v4243
    %5538 = vmatprep.subr.bf16.mxu0 %v4261
    %5539 = vmatpush1.bf16.msra.mxu0 %v4260
    %5540 = vmatprep.subr.bf16.mxu0 %v4278
    %5541 = vmatpush1.bf16.msra.mxu0 %v4277
    %5542 = vmatprep.subr.bf16.mxu0 %v4295
    %5543 = vmatpush1.bf16.msra.mxu0 %v4294
    %5544 = vmatprep.subr.bf16.mxu0 %v4312
    %5545 = vmatpush1.bf16.msra.mxu0 %v4311
    %5546 = vmatprep.subr.bf16.mxu0 %v4329
    %5547 = vmatpush1.bf16.msra.mxu0 %v4328
    %5548 = vmatprep.subr.bf16.mxu0 %v4346
    %5549 = vmatpush1.bf16.msra.mxu0 %v4345
    %5550 = vmatprep.mubr.bf16.mxu0 %v1039
    %5551 = vmatmul.mubr.bf16.gmra.mrb[0].mxu0 %v1038
    %v5552 = vpop.f32.mrb[0].mxu0
    %v5553 = vadd.f32 %v5510, %v5552
    %v5554 = vpop.f32.mrb[0].mxu0
    %v5555 = vadd.f32 %v5512, %v5554
    %v5556 = vpop.f32.mrb[0].mxu0
    %v5557 = vadd.f32 %v5514, %v5556
    %v5558 = vpop.f32.mrb[0].mxu0
    %v5559 = vadd.f32 %v5516, %v5558
    %5560 = vdwg.mxu0
    %5561 = vmatprep.subr.bf16.mxu0 %v3549
    %5562 = vmatpush1.bf16.msra.mxu0 %v3548
    %5563 = vmatprep.subr.bf16.mxu0 %v3566
    %5564 = vmatpush1.bf16.msra.mxu0 %v3565
    %5565 = vmatprep.subr.bf16.mxu0 %v3583
    %5566 = vmatpush1.bf16.msra.mxu0 %v3582
    %5567 = vmatprep.subr.bf16.mxu0 %v3600
    %5568 = vmatpush1.bf16.msra.mxu0 %v3599
    %5569 = vmatprep.subr.bf16.mxu0 %v3617
    %5570 = vmatpush1.bf16.msra.mxu0 %v3616
    %5571 = vmatprep.subr.bf16.mxu0 %v3634
    %5572 = vmatpush1.bf16.msra.mxu0 %v3633
    %5573 = vmatprep.subr.bf16.mxu0 %v3651
    %5574 = vmatpush1.bf16.msra.mxu0 %v3650
    %5575 = vmatprep.subr.bf16.mxu0 %v3668
    %5576 = vmatpush1.bf16.msra.mxu0 %v3667
    %5577 = vmatprep.subr.bf16.mxu0 %v3685
    %5578 = vmatpush1.bf16.msra.mxu0 %v3684
    %5579 = vmatprep.subr.bf16.mxu0 %v3702
    %5580 = vmatpush1.bf16.msra.mxu0 %v3701
    %5581 = vmatprep.subr.bf16.mxu0 %v3719
    %5582 = vmatpush1.bf16.msra.mxu0 %v3718
    %5583 = vmatprep.subr.bf16.mxu0 %v3736
    %5584 = vmatpush1.bf16.msra.mxu0 %v3735
    %5585 = vmatprep.subr.bf16.mxu0 %v3753
    %5586 = vmatpush1.bf16.msra.mxu0 %v3752
    %5587 = vmatprep.subr.bf16.mxu0 %v3770
    %5588 = vmatpush1.bf16.msra.mxu0 %v3769
    %5589 = vmatprep.subr.bf16.mxu0 %v3787
    %5590 = vmatpush1.bf16.msra.mxu0 %v3786
    %5591 = vmatprep.subr.bf16.mxu0 %v3804
    %5592 = vmatpush1.bf16.msra.mxu0 %v3803
    %5593 = vmatprep.mubr.bf16.mxu0 %v1035
    %5594 = vmatmul.mubr.bf16.gmra.mrb[0].mxu0 %v1034
    %v5595 = vpop.f32.mrb[0].mxu0
    %v5596 = vadd.f32 %v958, %v5595
    %v5597 = vpop.f32.mrb[0].mxu0
    %v5598 = vadd.f32 %v962, %v5597
    %v5599 = vpop.f32.mrb[0].mxu0
    %v5600 = vadd.f32 %v958, %v5599
    %v5601 = vpop.f32.mrb[0].mxu0
    %v5602 = vadd.f32 %v962, %v5601
    %5603 = vdwg.mxu0
    %5604 = vmatprep.subr.bf16.mxu0 %v3821
    %5605 = vmatpush1.bf16.msra.mxu0 %v3820
    %5606 = vmatprep.subr.bf16.mxu0 %v3838
    %5607 = vmatpush1.bf16.msra.mxu0 %v3837
    %5608 = vmatprep.subr.bf16.mxu0 %v3855
    %5609 = vmatpush1.bf16.msra.mxu0 %v3854
    %5610 = vmatprep.subr.bf16.mxu0 %v3872
    %5611 = vmatpush1.bf16.msra.mxu0 %v3871
    %5612 = vmatprep.subr.bf16.mxu0 %v3889
    %5613 = vmatpush1.bf16.msra.mxu0 %v3888
    %5614 = vmatprep.subr.bf16.mxu0 %v3906
    %5615 = vmatpush1.bf16.msra.mxu0 %v3905
    %5616 = vmatprep.subr.bf16.mxu0 %v3923
    %5617 = vmatpush1.bf16.msra.mxu0 %v3922
    %5618 = vmatprep.subr.bf16.mxu0 %v3940
    %5619 = vmatpush1.bf16.msra.mxu0 %v3939
    %5620 = vmatprep.subr.bf16.mxu0 %v3957
    %5621 = vmatpush1.bf16.msra.mxu0 %v3956
    %5622 = vmatprep.subr.bf16.mxu0 %v3974
    %5623 = vmatpush1.bf16.msra.mxu0 %v3973
    %5624 = vmatprep.subr.bf16.mxu0 %v3991
    %5625 = vmatpush1.bf16.msra.mxu0 %v3990
    %5626 = vmatprep.subr.bf16.mxu0 %v4008
    %5627 = vmatpush1.bf16.msra.mxu0 %v4007
    %5628 = vmatprep.subr.bf16.mxu0 %v4025
    %5629 = vmatpush1.bf16.msra.mxu0 %v4024
    %5630 = vmatprep.subr.bf16.mxu0 %v4042
    %5631 = vmatpush1.bf16.msra.mxu0 %v4041
    %5632 = vmatprep.subr.bf16.mxu0 %v4059
    %5633 = vmatpush1.bf16.msra.mxu0 %v4058
    %5634 = vmatprep.subr.bf16.mxu0 %v4076
    %5635 = vmatpush1.bf16.msra.mxu0 %v4075
    %5636 = vmatprep.mubr.bf16.mxu0 %v1037
    %5637 = vmatmul.mubr.bf16.gmra.mrb[0].mxu0 %v1036
    %v5638 = vpop.f32.mrb[0].mxu0
    %v5639 = vadd.f32 %v5596, %v5638
    %v5640 = vpop.f32.mrb[0].mxu0
    %v5641 = vadd.f32 %v5598, %v5640
    %v5642 = vpop.f32.mrb[0].mxu0
    %v5643 = vadd.f32 %v5600, %v5642
    %v5644 = vpop.f32.mrb[0].mxu0
    %v5645 = vadd.f32 %v5602, %v5644
    %5646 = vdwg.mxu0
    %5647 = vmatprep.subr.bf16.mxu0 %v4093
    %5648 = vmatpush1.bf16.msra.mxu0 %v4092
    %5649 = vmatprep.subr.bf16.mxu0 %v4110
    %5650 = vmatpush1.bf16.msra.mxu0 %v4109
    %5651 = vmatprep.subr.bf16.mxu0 %v4127
    %5652 = vmatpush1.bf16.msra.mxu0 %v4126
    %5653 = vmatprep.subr.bf16.mxu0 %v4144
    %5654 = vmatpush1.bf16.msra.mxu0 %v4143
    %5655 = vmatprep.subr.bf16.mxu0 %v4161
    %5656 = vmatpush1.bf16.msra.mxu0 %v4160
    %5657 = vmatprep.subr.bf16.mxu0 %v4178
    %5658 = vmatpush1.bf16.msra.mxu0 %v4177
    %5659 = vmatprep.subr.bf16.mxu0 %v4195
    %5660 = vmatpush1.bf16.msra.mxu0 %v4194
    %5661 = vmatprep.subr.bf16.mxu0 %v4212
    %5662 = vmatpush1.bf16.msra.mxu0 %v4211
    %5663 = vmatprep.subr.bf16.mxu0 %v4229
    %5664 = vmatpush1.bf16.msra.mxu0 %v4228
    %5665 = vmatprep.subr.bf16.mxu0 %v4246
    %5666 = vmatpush1.bf16.msra.mxu0 %v4245
    %5667 = vmatprep.subr.bf16.mxu0 %v4263
    %5668 = vmatpush1.bf16.msra.mxu0 %v4262
    %5669 = vmatprep.subr.bf16.mxu0 %v4280
    %5670 = vmatpush1.bf16.msra.mxu0 %v4279
    %5671 = vmatprep.subr.bf16.mxu0 %v4297
    %5672 = vmatpush1.bf16.msra.mxu0 %v4296
    %5673 = vmatprep.subr.bf16.mxu0 %v4314
    %5674 = vmatpush1.bf16.msra.mxu0 %v4313
    %5675 = vmatprep.subr.bf16.mxu0 %v4331
    %5676 = vmatpush1.bf16.msra.mxu0 %v4330
    %5677 = vmatprep.subr.bf16.mxu0 %v4348
    %5678 = vmatpush1.bf16.msra.mxu0 %v4347
    %5679 = vmatprep.mubr.bf16.mxu0 %v1039
    %5680 = vmatmul.mubr.bf16.gmra.mrb[0].mxu0 %v1038
    %v5681 = vpop.f32.mrb[0].mxu0
    %v5682 = vadd.f32 %v5639, %v5681
    %v5683 = vpop.f32.mrb[0].mxu0
    %v5684 = vadd.f32 %v5641, %v5683
    %v5685 = vpop.f32.mrb[0].mxu0
    %v5686 = vadd.f32 %v5643, %v5685
    %v5687 = vpop.f32.mrb[0].mxu0
    %v5688 = vadd.f32 %v5645, %v5687
    %5689 = vdwg.mxu0
    %5690 = vmatprep.subr.bf16.mxu0 %v3551
    %5691 = vmatpush1.bf16.msra.mxu0 %v3550
    %5692 = vmatprep.subr.bf16.mxu0 %v3568
    %5693 = vmatpush1.bf16.msra.mxu0 %v3567
    %5694 = vmatprep.subr.bf16.mxu0 %v3585
    %5695 = vmatpush1.bf16.msra.mxu0 %v3584
    %5696 = vmatprep.subr.bf16.mxu0 %v3602
    %5697 = vmatpush1.bf16.msra.mxu0 %v3601
    %5698 = vmatprep.subr.bf16.mxu0 %v3619
    %5699 = vmatpush1.bf16.msra.mxu0 %v3618
    %5700 = vmatprep.subr.bf16.mxu0 %v3636
    %5701 = vmatpush1.bf16.msra.mxu0 %v3635
    %5702 = vmatprep.subr.bf16.mxu0 %v3653
    %5703 = vmatpush1.bf16.msra.mxu0 %v3652
    %5704 = vmatprep.subr.bf16.mxu0 %v3670
    %5705 = vmatpush1.bf16.msra.mxu0 %v3669
    %5706 = vmatprep.subr.bf16.mxu0 %v3687
    %5707 = vmatpush1.bf16.msra.mxu0 %v3686
    %5708 = vmatprep.subr.bf16.mxu0 %v3704
    %5709 = vmatpush1.bf16.msra.mxu0 %v3703
    %5710 = vmatprep.subr.bf16.mxu0 %v3721
    %5711 = vmatpush1.bf16.msra.mxu0 %v3720
    %5712 = vmatprep.subr.bf16.mxu0 %v3738
    %5713 = vmatpush1.bf16.msra.mxu0 %v3737
    %5714 = vmatprep.subr.bf16.mxu0 %v3755
    %5715 = vmatpush1.bf16.msra.mxu0 %v3754
    %5716 = vmatprep.subr.bf16.mxu0 %v3772
    %5717 = vmatpush1.bf16.msra.mxu0 %v3771
    %5718 = vmatprep.subr.bf16.mxu0 %v3789
    %5719 = vmatpush1.bf16.msra.mxu0 %v3788
    %5720 = vmatprep.subr.bf16.mxu0 %v3806
    %5721 = vmatpush1.bf16.msra.mxu0 %v3805
    %5722 = vmatprep.mubr.bf16.mxu0 %v1035
    %5723 = vmatmul.mubr.bf16.gmra.mrb[0].mxu0 %v1034
    %v5724 = vpop.f32.mrb[0].mxu0
    %v5725 = vadd.f32 %v966, %v5724
    %v5726 = vpop.f32.mrb[0].mxu0
    %v5727 = vadd.f32 %v970, %v5726
    %v5728 = vpop.f32.mrb[0].mxu0
    %v5729 = vadd.f32 %v966, %v5728
    %v5730 = vpop.f32.mrb[0].mxu0
    %v5731 = vadd.f32 %v970, %v5730
    %5732 = vdwg.mxu0
    %5733 = vmatprep.subr.bf16.mxu0 %v3823
    %5734 = vmatpush1.bf16.msra.mxu0 %v3822
    %5735 = vmatprep.subr.bf16.mxu0 %v3840
    %5736 = vmatpush1.bf16.msra.mxu0 %v3839
    %5737 = vmatprep.subr.bf16.mxu0 %v3857
    %5738 = vmatpush1.bf16.msra.mxu0 %v3856
    %5739 = vmatprep.subr.bf16.mxu0 %v3874
    %5740 = vmatpush1.bf16.msra.mxu0 %v3873
    %5741 = vmatprep.subr.bf16.mxu0 %v3891
    %5742 = vmatpush1.bf16.msra.mxu0 %v3890
    %5743 = vmatprep.subr.bf16.mxu0 %v3908
    %5744 = vmatpush1.bf16.msra.mxu0 %v3907
    %5745 = vmatprep.subr.bf16.mxu0 %v3925
    %5746 = vmatpush1.bf16.msra.mxu0 %v3924
    %5747 = vmatprep.subr.bf16.mxu0 %v3942
    %5748 = vmatpush1.bf16.msra.mxu0 %v3941
    %5749 = vmatprep.subr.bf16.mxu0 %v3959
    %5750 = vmatpush1.bf16.msra.mxu0 %v3958
    %5751 = vmatprep.subr.bf16.mxu0 %v3976
    %5752 = vmatpush1.bf16.msra.mxu0 %v3975
    %5753 = vmatprep.subr.bf16.mxu0 %v3993
    %5754 = vmatpush1.bf16.msra.mxu0 %v3992
    %5755 = vmatprep.subr.bf16.mxu0 %v4010
    %5756 = vmatpush1.bf16.msra.mxu0 %v4009
    %5757 = vmatprep.subr.bf16.mxu0 %v4027
    %5758 = vmatpush1.bf16.msra.mxu0 %v4026
    %5759 = vmatprep.subr.bf16.mxu0 %v4044
    %5760 = vmatpush1.bf16.msra.mxu0 %v4043
    %5761 = vmatprep.subr.bf16.mxu0 %v4061
    %5762 = vmatpush1.bf16.msra.mxu0 %v4060
    %5763 = vmatprep.subr.bf16.mxu0 %v4078
    %5764 = vmatpush1.bf16.msra.mxu0 %v4077
    %5765 = vmatprep.mubr.bf16.mxu0 %v1037
    %5766 = vmatmul.mubr.bf16.gmra.mrb[0].mxu0 %v1036
    %v5767 = vpop.f32.mrb[0].mxu0
    %v5768 = vadd.f32 %v5725, %v5767
    %v5769 = vpop.f32.mrb[0].mxu0
    %v5770 = vadd.f32 %v5727, %v5769
    %v5771 = vpop.f32.mrb[0].mxu0
    %v5772 = vadd.f32 %v5729, %v5771
    %v5773 = vpop.f32.mrb[0].mxu0
    %v5774 = vadd.f32 %v5731, %v5773
    %5775 = vdwg.mxu0
    %5776 = vmatprep.subr.bf16.mxu0 %v4095
    %5777 = vmatpush1.bf16.msra.mxu0 %v4094
    %5778 = vmatprep.subr.bf16.mxu0 %v4112
    %5779 = vmatpush1.bf16.msra.mxu0 %v4111
    %5780 = vmatprep.subr.bf16.mxu0 %v4129
    %5781 = vmatpush1.bf16.msra.mxu0 %v4128
    %5782 = vmatprep.subr.bf16.mxu0 %v4146
    %5783 = vmatpush1.bf16.msra.mxu0 %v4145
    %5784 = vmatprep.subr.bf16.mxu0 %v4163
    %5785 = vmatpush1.bf16.msra.mxu0 %v4162
    %5786 = vmatprep.subr.bf16.mxu0 %v4180
    %5787 = vmatpush1.bf16.msra.mxu0 %v4179
    %5788 = vmatprep.subr.bf16.mxu0 %v4197
    %5789 = vmatpush1.bf16.msra.mxu0 %v4196
    %5790 = vmatprep.subr.bf16.mxu0 %v4214
    %5791 = vmatpush1.bf16.msra.mxu0 %v4213
    %5792 = vmatprep.subr.bf16.mxu0 %v4231
    %5793 = vmatpush1.bf16.msra.mxu0 %v4230
    %5794 = vmatprep.subr.bf16.mxu0 %v4248
    %5795 = vmatpush1.bf16.msra.mxu0 %v4247
    %5796 = vmatprep.subr.bf16.mxu0 %v4265
    %5797 = vmatpush1.bf16.msra.mxu0 %v4264
    %5798 = vmatprep.subr.bf16.mxu0 %v4282
    %5799 = vmatpush1.bf16.msra.mxu0 %v4281
    %5800 = vmatprep.subr.bf16.mxu0 %v4299
    %5801 = vmatpush1.bf16.msra.mxu0 %v4298
    %5802 = vmatprep.subr.bf16.mxu0 %v4316
    %5803 = vmatpush1.bf16.msra.mxu0 %v4315
    %5804 = vmatprep.subr.bf16.mxu0 %v4333
    %5805 = vmatpush1.bf16.msra.mxu0 %v4332
    %5806 = vmatprep.subr.bf16.mxu0 %v4350
    %5807 = vmatpush1.bf16.msra.mxu0 %v4349
    %5808 = vmatprep.mubr.bf16.mxu0 %v1039
    %5809 = vmatmul.mubr.bf16.gmra.mrb[0].mxu0 %v1038
    %v5810 = vpop.f32.mrb[0].mxu0
    %v5811 = vadd.f32 %v5768, %v5810
    %v5812 = vpop.f32.mrb[0].mxu0
    %v5813 = vadd.f32 %v5770, %v5812
    %v5814 = vpop.f32.mrb[0].mxu0
    %v5815 = vadd.f32 %v5772, %v5814
    %v5816 = vpop.f32.mrb[0].mxu0
    %v5817 = vadd.f32 %v5774, %v5816
    %5818 = vdwg.mxu0
    %5819 = vmatprep.subr.bf16.mxu0 %v3553
    %5820 = vmatpush1.bf16.msra.mxu0 %v3552
    %5821 = vmatprep.subr.bf16.mxu0 %v3570
    %5822 = vmatpush1.bf16.msra.mxu0 %v3569
    %5823 = vmatprep.subr.bf16.mxu0 %v3587
    %5824 = vmatpush1.bf16.msra.mxu0 %v3586
    %5825 = vmatprep.subr.bf16.mxu0 %v3604
    %5826 = vmatpush1.bf16.msra.mxu0 %v3603
    %5827 = vmatprep.subr.bf16.mxu0 %v3621
    %5828 = vmatpush1.bf16.msra.mxu0 %v3620
    %5829 = vmatprep.subr.bf16.mxu0 %v3638
    %5830 = vmatpush1.bf16.msra.mxu0 %v3637
    %5831 = vmatprep.subr.bf16.mxu0 %v3655
    %5832 = vmatpush1.bf16.msra.mxu0 %v3654
    %5833 = vmatprep.subr.bf16.mxu0 %v3672
    %5834 = vmatpush1.bf16.msra.mxu0 %v3671
    %5835 = vmatprep.subr.bf16.mxu0 %v3689
    %5836 = vmatpush1.bf16.msra.mxu0 %v3688
    %5837 = vmatprep.subr.bf16.mxu0 %v3706
    %5838 = vmatpush1.bf16.msra.mxu0 %v3705
    %5839 = vmatprep.subr.bf16.mxu0 %v3723
    %5840 = vmatpush1.bf16.msra.mxu0 %v3722
    %5841 = vmatprep.subr.bf16.mxu0 %v3740
    %5842 = vmatpush1.bf16.msra.mxu0 %v3739
    %5843 = vmatprep.subr.bf16.mxu0 %v3757
    %5844 = vmatpush1.bf16.msra.mxu0 %v3756
    %5845 = vmatprep.subr.bf16.mxu0 %v3774
    %5846 = vmatpush1.bf16.msra.mxu0 %v3773
    %5847 = vmatprep.subr.bf16.mxu0 %v3791
    %5848 = vmatpush1.bf16.msra.mxu0 %v3790
    %5849 = vmatprep.subr.bf16.mxu0 %v3808
    %5850 = vmatpush1.bf16.msra.mxu0 %v3807
    %5851 = vmatprep.mubr.bf16.mxu0 %v1035
    %5852 = vmatmul.mubr.bf16.gmra.mrb[0].mxu0 %v1034
    %v5853 = vpop.f32.mrb[0].mxu0
    %v5854 = vadd.f32 %v974, %v5853
    %v5855 = vpop.f32.mrb[0].mxu0
    %v5856 = vadd.f32 %v978, %v5855
    %v5857 = vpop.f32.mrb[0].mxu0
    %v5858 = vadd.f32 %v974, %v5857
    %v5859 = vpop.f32.mrb[0].mxu0
    %v5860 = vadd.f32 %v978, %v5859
    %5861 = vdwg.mxu0
    %5862 = vmatprep.subr.bf16.mxu0 %v3825
    %5863 = vmatpush1.bf16.msra.mxu0 %v3824
    %5864 = vmatprep.subr.bf16.mxu0 %v3842
    %5865 = vmatpush1.bf16.msra.mxu0 %v3841
    %5866 = vmatprep.subr.bf16.mxu0 %v3859
    %5867 = vmatpush1.bf16.msra.mxu0 %v3858
    %5868 = vmatprep.subr.bf16.mxu0 %v3876
    %5869 = vmatpush1.bf16.msra.mxu0 %v3875
    %5870 = vmatprep.subr.bf16.mxu0 %v3893
    %5871 = vmatpush1.bf16.msra.mxu0 %v3892
    %5872 = vmatprep.subr.bf16.mxu0 %v3910
    %5873 = vmatpush1.bf16.msra.mxu0 %v3909
    %5874 = vmatprep.subr.bf16.mxu0 %v3927
    %5875 = vmatpush1.bf16.msra.mxu0 %v3926
    %5876 = vmatprep.subr.bf16.mxu0 %v3944
    %5877 = vmatpush1.bf16.msra.mxu0 %v3943
    %5878 = vmatprep.subr.bf16.mxu0 %v3961
    %5879 = vmatpush1.bf16.msra.mxu0 %v3960
    %5880 = vmatprep.subr.bf16.mxu0 %v3978
    %5881 = vmatpush1.bf16.msra.mxu0 %v3977
    %5882 = vmatprep.subr.bf16.mxu0 %v3995
    %5883 = vmatpush1.bf16.msra.mxu0 %v3994
    %5884 = vmatprep.subr.bf16.mxu0 %v4012
    %5885 = vmatpush1.bf16.msra.mxu0 %v4011
    %5886 = vmatprep.subr.bf16.mxu0 %v4029
    %5887 = vmatpush1.bf16.msra.mxu0 %v4028
    %5888 = vmatprep.subr.bf16.mxu0 %v4046
    %5889 = vmatpush1.bf16.msra.mxu0 %v4045
    %5890 = vmatprep.subr.bf16.mxu0 %v4063
    %5891 = vmatpush1.bf16.msra.mxu0 %v4062
    %5892 = vmatprep.subr.bf16.mxu0 %v4080
    %5893 = vmatpush1.bf16.msra.mxu0 %v4079
    %5894 = vmatprep.mubr.bf16.mxu0 %v1037
    %5895 = vmatmul.mubr.bf16.gmra.mrb[0].mxu0 %v1036
    %v5896 = vpop.f32.mrb[0].mxu0
    %v5897 = vadd.f32 %v5854, %v5896
    %v5898 = vpop.f32.mrb[0].mxu0
    %v5899 = vadd.f32 %v5856, %v5898
    %v5900 = vpop.f32.mrb[0].mxu0
    %v5901 = vadd.f32 %v5858, %v5900
    %v5902 = vpop.f32.mrb[0].mxu0
    %v5903 = vadd.f32 %v5860, %v5902
    %5904 = vdwg.mxu0
    %5905 = vmatprep.subr.bf16.mxu0 %v4097
    %5906 = vmatpush1.bf16.msra.mxu0 %v4096
    %5907 = vmatprep.subr.bf16.mxu0 %v4114
    %5908 = vmatpush1.bf16.msra.mxu0 %v4113
    %5909 = vmatprep.subr.bf16.mxu0 %v4131
    %5910 = vmatpush1.bf16.msra.mxu0 %v4130
    %5911 = vmatprep.subr.bf16.mxu0 %v4148
    %5912 = vmatpush1.bf16.msra.mxu0 %v4147
    %5913 = vmatprep.subr.bf16.mxu0 %v4165
    %5914 = vmatpush1.bf16.msra.mxu0 %v4164
    %5915 = vmatprep.subr.bf16.mxu0 %v4182
    %5916 = vmatpush1.bf16.msra.mxu0 %v4181
    %5917 = vmatprep.subr.bf16.mxu0 %v4199
    %5918 = vmatpush1.bf16.msra.mxu0 %v4198
    %5919 = vmatprep.subr.bf16.mxu0 %v4216
    %5920 = vmatpush1.bf16.msra.mxu0 %v4215
    %5921 = vmatprep.subr.bf16.mxu0 %v4233
    %5922 = vmatpush1.bf16.msra.mxu0 %v4232
    %5923 = vmatprep.subr.bf16.mxu0 %v4250
    %5924 = vmatpush1.bf16.msra.mxu0 %v4249
    %5925 = vmatprep.subr.bf16.mxu0 %v4267
    %5926 = vmatpush1.bf16.msra.mxu0 %v4266
    %5927 = vmatprep.subr.bf16.mxu0 %v4284
    %5928 = vmatpush1.bf16.msra.mxu0 %v4283
    %5929 = vmatprep.subr.bf16.mxu0 %v4301
    %5930 = vmatpush1.bf16.msra.mxu0 %v4300
    %5931 = vmatprep.subr.bf16.mxu0 %v4318
    %5932 = vmatpush1.bf16.msra.mxu0 %v4317
    %5933 = vmatprep.subr.bf16.mxu0 %v4335
    %5934 = vmatpush1.bf16.msra.mxu0 %v4334
    %5935 = vmatprep.subr.bf16.mxu0 %v4352
    %5936 = vmatpush1.bf16.msra.mxu0 %v4351
    %5937 = vmatprep.mubr.bf16.mxu0 %v1039
    %5938 = vmatmul.mubr.bf16.gmra.mrb[0].mxu0 %v1038
    %v5939 = vpop.f32.mrb[0].mxu0
    %v5940 = vadd.f32 %v5897, %v5939
    %v5941 = vpop.f32.mrb[0].mxu0
    %v5942 = vadd.f32 %v5899, %v5941
    %v5943 = vpop.f32.mrb[0].mxu0
    %v5944 = vadd.f32 %v5901, %v5943
    %v5945 = vpop.f32.mrb[0].mxu0
    %v5946 = vadd.f32 %v5903, %v5945
    %5947 = vdwg.mxu0
    %5948 = vmatprep.subr.bf16.mxu0 %v3555
    %5949 = vmatpush1.bf16.msra.mxu0 %v3554
    %5950 = vmatprep.subr.bf16.mxu0 %v3572
    %5951 = vmatpush1.bf16.msra.mxu0 %v3571
    %5952 = vmatprep.subr.bf16.mxu0 %v3589
    %5953 = vmatpush1.bf16.msra.mxu0 %v3588
    %5954 = vmatprep.subr.bf16.mxu0 %v3606
    %5955 = vmatpush1.bf16.msra.mxu0 %v3605
    %5956 = vmatprep.subr.bf16.mxu0 %v3623
    %5957 = vmatpush1.bf16.msra.mxu0 %v3622
    %5958 = vmatprep.subr.bf16.mxu0 %v3640
    %5959 = vmatpush1.bf16.msra.mxu0 %v3639
    %5960 = vmatprep.subr.bf16.mxu0 %v3657
    %5961 = vmatpush1.bf16.msra.mxu0 %v3656
    %5962 = vmatprep.subr.bf16.mxu0 %v3674
    %5963 = vmatpush1.bf16.msra.mxu0 %v3673
    %5964 = vmatprep.subr.bf16.mxu0 %v3691
    %5965 = vmatpush1.bf16.msra.mxu0 %v3690
    %5966 = vmatprep.subr.bf16.mxu0 %v3708
    %5967 = vmatpush1.bf16.msra.mxu0 %v3707
    %5968 = vmatprep.subr.bf16.mxu0 %v3725
    %5969 = vmatpush1.bf16.msra.mxu0 %v3724
    %5970 = vmatprep.subr.bf16.mxu0 %v3742
    %5971 = vmatpush1.bf16.msra.mxu0 %v3741
    %5972 = vmatprep.subr.bf16.mxu0 %v3759
    %5973 = vmatpush1.bf16.msra.mxu0 %v3758
    %5974 = vmatprep.subr.bf16.mxu0 %v3776
    %5975 = vmatpush1.bf16.msra.mxu0 %v3775
    %5976 = vmatprep.subr.bf16.mxu0 %v3793
    %5977 = vmatpush1.bf16.msra.mxu0 %v3792
    %5978 = vmatprep.subr.bf16.mxu0 %v3810
    %5979 = vmatpush1.bf16.msra.mxu0 %v3809
    %5980 = vmatprep.mubr.bf16.mxu0 %v1035
    %5981 = vmatmul.mubr.bf16.gmra.mrb[0].mxu0 %v1034
    %v5982 = vpop.f32.mrb[0].mxu0
    %v5983 = vadd.f32 %v982, %v5982
    %v5984 = vpop.f32.mrb[0].mxu0
    %v5985 = vadd.f32 %v986, %v5984
    %v5986 = vpop.f32.mrb[0].mxu0
    %v5987 = vadd.f32 %v982, %v5986
    %v5988 = vpop.f32.mrb[0].mxu0
    %v5989 = vadd.f32 %v986, %v5988
    %5990 = vdwg.mxu0
    %5991 = vmatprep.subr.bf16.mxu0 %v3827
    %5992 = vmatpush1.bf16.msra.mxu0 %v3826
    %5993 = vmatprep.subr.bf16.mxu0 %v3844
    %5994 = vmatpush1.bf16.msra.mxu0 %v3843
    %5995 = vmatprep.subr.bf16.mxu0 %v3861
    %5996 = vmatpush1.bf16.msra.mxu0 %v3860
    %5997 = vmatprep.subr.bf16.mxu0 %v3878
    %5998 = vmatpush1.bf16.msra.mxu0 %v3877
    %5999 = vmatprep.subr.bf16.mxu0 %v3895
    %6000 = vmatpush1.bf16.msra.mxu0 %v3894
    %6001 = vmatprep.subr.bf16.mxu0 %v3912
    %6002 = vmatpush1.bf16.msra.mxu0 %v3911
    %6003 = vmatprep.subr.bf16.mxu0 %v3929
    %6004 = vmatpush1.bf16.msra.mxu0 %v3928
    %6005 = vmatprep.subr.bf16.mxu0 %v3946
    %6006 = vmatpush1.bf16.msra.mxu0 %v3945
    %6007 = vmatprep.subr.bf16.mxu0 %v3963
    %6008 = vmatpush1.bf16.msra.mxu0 %v3962
    %6009 = vmatprep.subr.bf16.mxu0 %v3980
    %6010 = vmatpush1.bf16.msra.mxu0 %v3979
    %6011 = vmatprep.subr.bf16.mxu0 %v3997
    %6012 = vmatpush1.bf16.msra.mxu0 %v3996
    %6013 = vmatprep.subr.bf16.mxu0 %v4014
    %6014 = vmatpush1.bf16.msra.mxu0 %v4013
    %6015 = vmatprep.subr.bf16.mxu0 %v4031
    %6016 = vmatpush1.bf16.msra.mxu0 %v4030
    %6017 = vmatprep.subr.bf16.mxu0 %v4048
    %6018 = vmatpush1.bf16.msra.mxu0 %v4047
    %6019 = vmatprep.subr.bf16.mxu0 %v4065
    %6020 = vmatpush1.bf16.msra.mxu0 %v4064
    %6021 = vmatprep.subr.bf16.mxu0 %v4082
    %6022 = vmatpush1.bf16.msra.mxu0 %v4081
    %6023 = vmatprep.mubr.bf16.mxu0 %v1037
    %6024 = vmatmul.mubr.bf16.gmra.mrb[0].mxu0 %v1036
    %v6025 = vpop.f32.mrb[0].mxu0
    %v6026 = vadd.f32 %v5983, %v6025
    %v6027 = vpop.f32.mrb[0].mxu0
    %v6028 = vadd.f32 %v5985, %v6027
    %v6029 = vpop.f32.mrb[0].mxu0
    %v6030 = vadd.f32 %v5987, %v6029
    %v6031 = vpop.f32.mrb[0].mxu0
    %v6032 = vadd.f32 %v5989, %v6031
    %6033 = vdwg.mxu0
    %6034 = vmatprep.subr.bf16.mxu0 %v4099
    %6035 = vmatpush1.bf16.msra.mxu0 %v4098
    %6036 = vmatprep.subr.bf16.mxu0 %v4116
    %6037 = vmatpush1.bf16.msra.mxu0 %v4115
    %6038 = vmatprep.subr.bf16.mxu0 %v4133
    %6039 = vmatpush1.bf16.msra.mxu0 %v4132
    %6040 = vmatprep.subr.bf16.mxu0 %v4150
    %6041 = vmatpush1.bf16.msra.mxu0 %v4149
    %6042 = vmatprep.subr.bf16.mxu0 %v4167
    %6043 = vmatpush1.bf16.msra.mxu0 %v4166
    %6044 = vmatprep.subr.bf16.mxu0 %v4184
    %6045 = vmatpush1.bf16.msra.mxu0 %v4183
    %6046 = vmatprep.subr.bf16.mxu0 %v4201
    %6047 = vmatpush1.bf16.msra.mxu0 %v4200
    %6048 = vmatprep.subr.bf16.mxu0 %v4218
    %6049 = vmatpush1.bf16.msra.mxu0 %v4217
    %6050 = vmatprep.subr.bf16.mxu0 %v4235
    %6051 = vmatpush1.bf16.msra.mxu0 %v4234
    %6052 = vmatprep.subr.bf16.mxu0 %v4252
    %6053 = vmatpush1.bf16.msra.mxu0 %v4251
    %6054 = vmatprep.subr.bf16.mxu0 %v4269
    %6055 = vmatpush1.bf16.msra.mxu0 %v4268
    %6056 = vmatprep.subr.bf16.mxu0 %v4286
    %6057 = vmatpush1.bf16.msra.mxu0 %v4285
    %6058 = vmatprep.subr.bf16.mxu0 %v4303
    %6059 = vmatpush1.bf16.msra.mxu0 %v4302
    %6060 = vmatprep.subr.bf16.mxu0 %v4320
    %6061 = vmatpush1.bf16.msra.mxu0 %v4319
    %6062 = vmatprep.subr.bf16.mxu0 %v4337
    %6063 = vmatpush1.bf16.msra.mxu0 %v4336
    %6064 = vmatprep.subr.bf16.mxu0 %v4354
    %6065 = vmatpush1.bf16.msra.mxu0 %v4353
    %6066 = vmatprep.mubr.bf16.mxu0 %v1039
    %6067 = vmatmul.mubr.bf16.gmra.mrb[0].mxu0 %v1038
    %v6068 = vpop.f32.mrb[0].mxu0
    %v6069 = vadd.f32 %v6026, %v6068
    %v6070 = vpop.f32.mrb[0].mxu0
    %v6071 = vadd.f32 %v6028, %v6070
    %v6072 = vpop.f32.mrb[0].mxu0
    %v6073 = vadd.f32 %v6030, %v6072
    %v6074 = vpop.f32.mrb[0].mxu0
    %v6075 = vadd.f32 %v6032, %v6074
    %6076 = vdwg.mxu0
    %6077 = vmatprep.subr.bf16.mxu0 %v3557
    %6078 = vmatpush1.bf16.msra.mxu0 %v3556
    %6079 = vmatprep.subr.bf16.mxu0 %v3574
    %6080 = vmatpush1.bf16.msra.mxu0 %v3573
    %6081 = vmatprep.subr.bf16.mxu0 %v3591
    %6082 = vmatpush1.bf16.msra.mxu0 %v3590
    %6083 = vmatprep.subr.bf16.mxu0 %v3608
    %6084 = vmatpush1.bf16.msra.mxu0 %v3607
    %6085 = vmatprep.subr.bf16.mxu0 %v3625
    %6086 = vmatpush1.bf16.msra.mxu0 %v3624
    %6087 = vmatprep.subr.bf16.mxu0 %v3642
    %6088 = vmatpush1.bf16.msra.mxu0 %v3641
    %6089 = vmatprep.subr.bf16.mxu0 %v3659
    %6090 = vmatpush1.bf16.msra.mxu0 %v3658
    %6091 = vmatprep.subr.bf16.mxu0 %v3676
    %6092 = vmatpush1.bf16.msra.mxu0 %v3675
    %6093 = vmatprep.subr.bf16.mxu0 %v3693
    %6094 = vmatpush1.bf16.msra.mxu0 %v3692
    %6095 = vmatprep.subr.bf16.mxu0 %v3710
    %6096 = vmatpush1.bf16.msra.mxu0 %v3709
    %6097 = vmatprep.subr.bf16.mxu0 %v3727
    %6098 = vmatpush1.bf16.msra.mxu0 %v3726
    %6099 = vmatprep.subr.bf16.mxu0 %v3744
    %6100 = vmatpush1.bf16.msra.mxu0 %v3743
    %6101 = vmatprep.subr.bf16.mxu0 %v3761
    %6102 = vmatpush1.bf16.msra.mxu0 %v3760
    %6103 = vmatprep.subr.bf16.mxu0 %v3778
    %6104 = vmatpush1.bf16.msra.mxu0 %v3777
    %6105 = vmatprep.subr.bf16.mxu0 %v3795
    %6106 = vmatpush1.bf16.msra.mxu0 %v3794
    %6107 = vmatprep.subr.bf16.mxu0 %v3812
    %6108 = vmatpush1.bf16.msra.mxu0 %v3811
    %6109 = vmatprep.mubr.bf16.mxu0 %v1035
    %6110 = vmatmul.mubr.bf16.gmra.mrb[0].mxu0 %v1034
    %v6111 = vpop.f32.mrb[0].mxu0
    %v6112 = vadd.f32 %v990, %v6111
    %v6113 = vpop.f32.mrb[0].mxu0
    %v6114 = vadd.f32 %v994, %v6113
    %v6115 = vpop.f32.mrb[0].mxu0
    %v6116 = vadd.f32 %v990, %v6115
    %v6117 = vpop.f32.mrb[0].mxu0
    %v6118 = vadd.f32 %v994, %v6117
    %6119 = vdwg.mxu0
    %6120 = vmatprep.subr.bf16.mxu0 %v3829
    %6121 = vmatpush1.bf16.msra.mxu0 %v3828
    %6122 = vmatprep.subr.bf16.mxu0 %v3846
    %6123 = vmatpush1.bf16.msra.mxu0 %v3845
    %6124 = vmatprep.subr.bf16.mxu0 %v3863
    %6125 = vmatpush1.bf16.msra.mxu0 %v3862
    %6126 = vmatprep.subr.bf16.mxu0 %v3880
    %6127 = vmatpush1.bf16.msra.mxu0 %v3879
    %6128 = vmatprep.subr.bf16.mxu0 %v3897
    %6129 = vmatpush1.bf16.msra.mxu0 %v3896
    %6130 = vmatprep.subr.bf16.mxu0 %v3914
    %6131 = vmatpush1.bf16.msra.mxu0 %v3913
    %6132 = vmatprep.subr.bf16.mxu0 %v3931
    %6133 = vmatpush1.bf16.msra.mxu0 %v3930
    %6134 = vmatprep.subr.bf16.mxu0 %v3948
    %6135 = vmatpush1.bf16.msra.mxu0 %v3947
    %6136 = vmatprep.subr.bf16.mxu0 %v3965
    %6137 = vmatpush1.bf16.msra.mxu0 %v3964
    %6138 = vmatprep.subr.bf16.mxu0 %v3982
    %6139 = vmatpush1.bf16.msra.mxu0 %v3981
    %6140 = vmatprep.subr.bf16.mxu0 %v3999
    %6141 = vmatpush1.bf16.msra.mxu0 %v3998
    %6142 = vmatprep.subr.bf16.mxu0 %v4016
    %6143 = vmatpush1.bf16.msra.mxu0 %v4015
    %6144 = vmatprep.subr.bf16.mxu0 %v4033
    %6145 = vmatpush1.bf16.msra.mxu0 %v4032
    %6146 = vmatprep.subr.bf16.mxu0 %v4050
    %6147 = vmatpush1.bf16.msra.mxu0 %v4049
    %6148 = vmatprep.subr.bf16.mxu0 %v4067
    %6149 = vmatpush1.bf16.msra.mxu0 %v4066
    %6150 = vmatprep.subr.bf16.mxu0 %v4084
    %6151 = vmatpush1.bf16.msra.mxu0 %v4083
    %6152 = vmatprep.mubr.bf16.mxu0 %v1037
    %6153 = vmatmul.mubr.bf16.gmra.mrb[0].mxu0 %v1036
    %v6154 = vpop.f32.mrb[0].mxu0
    %v6155 = vadd.f32 %v6112, %v6154
    %v6156 = vpop.f32.mrb[0].mxu0
    %v6157 = vadd.f32 %v6114, %v6156
    %v6158 = vpop.f32.mrb[0].mxu0
    %v6159 = vadd.f32 %v6116, %v6158
    %v6160 = vpop.f32.mrb[0].mxu0
    %v6161 = vadd.f32 %v6118, %v6160
    %6162 = vdwg.mxu0
    %6163 = vmatprep.subr.bf16.mxu0 %v4101
    %6164 = vmatpush1.bf16.msra.mxu0 %v4100
    %6165 = vmatprep.subr.bf16.mxu0 %v4118
    %6166 = vmatpush1.bf16.msra.mxu0 %v4117
    %6167 = vmatprep.subr.bf16.mxu0 %v4135
    %6168 = vmatpush1.bf16.msra.mxu0 %v4134
    %6169 = vmatprep.subr.bf16.mxu0 %v4152
    %6170 = vmatpush1.bf16.msra.mxu0 %v4151
    %6171 = vmatprep.subr.bf16.mxu0 %v4169
    %6172 = vmatpush1.bf16.msra.mxu0 %v4168
    %6173 = vmatprep.subr.bf16.mxu0 %v4186
    %6174 = vmatpush1.bf16.msra.mxu0 %v4185
    %6175 = vmatprep.subr.bf16.mxu0 %v4203
    %6176 = vmatpush1.bf16.msra.mxu0 %v4202
    %6177 = vmatprep.subr.bf16.mxu0 %v4220
    %6178 = vmatpush1.bf16.msra.mxu0 %v4219
    %6179 = vmatprep.subr.bf16.mxu0 %v4237
    %6180 = vmatpush1.bf16.msra.mxu0 %v4236
    %6181 = vmatprep.subr.bf16.mxu0 %v4254
    %6182 = vmatpush1.bf16.msra.mxu0 %v4253
    %6183 = vmatprep.subr.bf16.mxu0 %v4271
    %6184 = vmatpush1.bf16.msra.mxu0 %v4270
    %6185 = vmatprep.subr.bf16.mxu0 %v4288
    %6186 = vmatpush1.bf16.msra.mxu0 %v4287
    %6187 = vmatprep.subr.bf16.mxu0 %v4305
    %6188 = vmatpush1.bf16.msra.mxu0 %v4304
    %6189 = vmatprep.subr.bf16.mxu0 %v4322
    %6190 = vmatpush1.bf16.msra.mxu0 %v4321
    %6191 = vmatprep.subr.bf16.mxu0 %v4339
    %6192 = vmatpush1.bf16.msra.mxu0 %v4338
    %6193 = vmatprep.subr.bf16.mxu0 %v4356
    %6194 = vmatpush1.bf16.msra.mxu0 %v4355
    %6195 = vmatprep.mubr.bf16.mxu0 %v1039
    %6196 = vmatmul.mubr.bf16.gmra.mrb[0].mxu0 %v1038
    %v6197 = vpop.f32.mrb[0].mxu0
    %v6198 = vadd.f32 %v6155, %v6197
    %v6199 = vpop.f32.mrb[0].mxu0
    %v6200 = vadd.f32 %v6157, %v6199
    %v6201 = vpop.f32.mrb[0].mxu0
    %v6202 = vadd.f32 %v6159, %v6201
    %v6203 = vpop.f32.mrb[0].mxu0
    %v6204 = vadd.f32 %v6161, %v6203
    %6205 = vdwg.mxu0
    %6206 = vmatprep.subr.bf16.mxu0 0
    %6207 = vmatpush1.bf16.msra.mxu0 %v3558
    %6208 = vmatprep.subr.bf16.mxu0 0
    %6209 = vmatpush1.bf16.msra.mxu0 %v3575
    %6210 = vmatprep.subr.bf16.mxu0 0
    %6211 = vmatpush1.bf16.msra.mxu0 %v3592
    %6212 = vmatprep.subr.bf16.mxu0 0
    %6213 = vmatpush1.bf16.msra.mxu0 %v3609
    %6214 = vmatprep.subr.bf16.mxu0 0
    %6215 = vmatpush1.bf16.msra.mxu0 %v3626
    %6216 = vmatprep.subr.bf16.mxu0 0
    %6217 = vmatpush1.bf16.msra.mxu0 %v3643
    %6218 = vmatprep.subr.bf16.mxu0 0
    %6219 = vmatpush1.bf16.msra.mxu0 %v3660
    %6220 = vmatprep.subr.bf16.mxu0 0
    %6221 = vmatpush1.bf16.msra.mxu0 %v3677
    %6222 = vmatprep.subr.bf16.mxu0 0
    %6223 = vmatpush1.bf16.msra.mxu0 %v3694
    %6224 = vmatprep.subr.bf16.mxu0 0
    %6225 = vmatpush1.bf16.msra.mxu0 %v3711
    %6226 = vmatprep.subr.bf16.mxu0 0
    %6227 = vmatpush1.bf16.msra.mxu0 %v3728
    %6228 = vmatprep.subr.bf16.mxu0 0
    %6229 = vmatpush1.bf16.msra.mxu0 %v3745
    %6230 = vmatprep.subr.bf16.mxu0 0
    %6231 = vmatpush1.bf16.msra.mxu0 %v3762
    %6232 = vmatprep.subr.bf16.mxu0 0
    %6233 = vmatpush1.bf16.msra.mxu0 %v3779
    %6234 = vmatprep.subr.bf16.mxu0 0
    %6235 = vmatpush1.bf16.msra.mxu0 %v3796
    %6236 = vmatprep.subr.bf16.mxu0 0
    %6237 = vmatpush1.bf16.msra.mxu0 %v3813
    %6238 = vmatprep.mubr.bf16.mxu0 %v1035
    %6239 = vmatmul.mubr.bf16.gmra.mrb[0].mxu0 %v1034
    %v6240 = vpop.f32.mrb[0].mxu0
    %v6241 = vadd.f32 %v998, %v6240
    %v6242 = vpop.f32.mrb[0].mxu0
    %v6243 = vpop.f32.mrb[0].mxu0
    %v6244 = vadd.f32 %v998, %v6243
    %v6245 = vpop.f32.mrb[0].mxu0
    %6246 = vdwg.mxu0
    %6247 = vmatprep.subr.bf16.mxu0 0
    %6248 = vmatpush1.bf16.msra.mxu0 %v3830
    %6249 = vmatprep.subr.bf16.mxu0 0
    %6250 = vmatpush1.bf16.msra.mxu0 %v3847
    %6251 = vmatprep.subr.bf16.mxu0 0
    %6252 = vmatpush1.bf16.msra.mxu0 %v3864
    %6253 = vmatprep.subr.bf16.mxu0 0
    %6254 = vmatpush1.bf16.msra.mxu0 %v3881
    %6255 = vmatprep.subr.bf16.mxu0 0
    %6256 = vmatpush1.bf16.msra.mxu0 %v3898
    %6257 = vmatprep.subr.bf16.mxu0 0
    %6258 = vmatpush1.bf16.msra.mxu0 %v3915
    %6259 = vmatprep.subr.bf16.mxu0 0
    %6260 = vmatpush1.bf16.msra.mxu0 %v3932
    %6261 = vmatprep.subr.bf16.mxu0 0
    %6262 = vmatpush1.bf16.msra.mxu0 %v3949
    %6263 = vmatprep.subr.bf16.mxu0 0
    %6264 = vmatpush1.bf16.msra.mxu0 %v3966
    %6265 = vmatprep.subr.bf16.mxu0 0
    %6266 = vmatpush1.bf16.msra.mxu0 %v3983
    %6267 = vmatprep.subr.bf16.mxu0 0
    %6268 = vmatpush1.bf16.msra.mxu0 %v4000
    %6269 = vmatprep.subr.bf16.mxu0 0
    %6270 = vmatpush1.bf16.msra.mxu0 %v4017
    %6271 = vmatprep.subr.bf16.mxu0 0
    %6272 = vmatpush1.bf16.msra.mxu0 %v4034
    %6273 = vmatprep.subr.bf16.mxu0 0
    %6274 = vmatpush1.bf16.msra.mxu0 %v4051
    %6275 = vmatprep.subr.bf16.mxu0 0
    %6276 = vmatpush1.bf16.msra.mxu0 %v4068
    %6277 = vmatprep.subr.bf16.mxu0 0
    %6278 = vmatpush1.bf16.msra.mxu0 %v4085
    %6279 = vmatprep.mubr.bf16.mxu0 %v1037
    %6280 = vmatmul.mubr.bf16.gmra.mrb[0].mxu0 %v1036
    %v6281 = vpop.f32.mrb[0].mxu0
    %v6282 = vadd.f32 %v6241, %v6281
    %v6283 = vpop.f32.mrb[0].mxu0
    %v6284 = vpop.f32.mrb[0].mxu0
    %v6285 = vadd.f32 %v6244, %v6284
    %v6286 = vpop.f32.mrb[0].mxu0
    %6287 = vdwg.mxu0
    %6288 = vmatprep.subr.bf16.mxu0 0
    %6289 = vmatpush1.bf16.msra.mxu0 %v4102
    %6290 = vmatprep.subr.bf16.mxu0 0
    %6291 = vmatpush1.bf16.msra.mxu0 %v4119
    %6292 = vmatprep.subr.bf16.mxu0 0
    %6293 = vmatpush1.bf16.msra.mxu0 %v4136
    %6294 = vmatprep.subr.bf16.mxu0 0
    %6295 = vmatpush1.bf16.msra.mxu0 %v4153
    %6296 = vmatprep.subr.bf16.mxu0 0
    %6297 = vmatpush1.bf16.msra.mxu0 %v4170
    %6298 = vmatprep.subr.bf16.mxu0 0
    %6299 = vmatpush1.bf16.msra.mxu0 %v4187
    %6300 = vmatprep.subr.bf16.mxu0 0
    %6301 = vmatpush1.bf16.msra.mxu0 %v4204
    %6302 = vmatprep.subr.bf16.mxu0 0
    %6303 = vmatpush1.bf16.msra.mxu0 %v4221
    %6304 = vmatprep.subr.bf16.mxu0 0
    %6305 = vmatpush1.bf16.msra.mxu0 %v4238
    %6306 = vmatprep.subr.bf16.mxu0 0
    %6307 = vmatpush1.bf16.msra.mxu0 %v4255
    %6308 = vmatprep.subr.bf16.mxu0 0
    %6309 = vmatpush1.bf16.msra.mxu0 %v4272
    %6310 = vmatprep.subr.bf16.mxu0 0
    %6311 = vmatpush1.bf16.msra.mxu0 %v4289
    %6312 = vmatprep.subr.bf16.mxu0 0
    %6313 = vmatpush1.bf16.msra.mxu0 %v4306
    %6314 = vmatprep.subr.bf16.mxu0 0
    %6315 = vmatpush1.bf16.msra.mxu0 %v4323
    %6316 = vmatprep.subr.bf16.mxu0 0
    %6317 = vmatpush1.bf16.msra.mxu0 %v4340
    %6318 = vmatprep.subr.bf16.mxu0 0
    %6319 = vmatpush1.bf16.msra.mxu0 %v4357
    %6320 = vmatprep.mubr.bf16.mxu0 %v1039
    %6321 = vmatmul.mubr.bf16.gmra.mrb[0].mxu0 %v1038
    %v6322 = vpop.f32.mrb[0].mxu0
    %v6323 = vadd.f32 %v6282, %v6322
    %v6324 = vpop.f32.mrb[0].mxu0
    %v6325 = vpop.f32.mrb[0].mxu0
    %v6326 = vadd.f32 %v6285, %v6325
    %v6327 = vpop.f32.mrb[0].mxu0
    %6328 = vdwg.mxu0
    %v6329 = vpack.c.bf16 %v5299, %v5295
    %v6330 = vpack.c.bf16 %v5301, %v5297
    %v6331 = vpack.c.bf16 %v5428, %v5424
    %v6332 = vpack.c.bf16 %v5430, %v5426
    %v6333 = vpack.c.bf16 %v5557, %v5553
    %v6334 = vpack.c.bf16 %v5559, %v5555
    %v6335 = vpack.c.bf16 %v5686, %v5682
    %v6336 = vpack.c.bf16 %v5688, %v5684
    %v6337 = vpack.c.bf16 %v5815, %v5811
    %v6338 = vpack.c.bf16 %v5817, %v5813
    %v6339 = vpack.c.bf16 %v5944, %v5940
    %v6340 = vpack.c.bf16 %v5946, %v5942
    %v6341 = vpack.c.bf16 %v6073, %v6069
    %v6342 = vpack.c.bf16 %v6075, %v6071
    %v6343 = vpack.c.bf16 %v6202, %v6198
    %v6344 = vpack.c.bf16 %v6204, %v6200
    %v6345 = vpack.c.bf16 %v6326, %v6323
    %v6363 = vunpack.c.l.b16 %v6329
    %v6364 = vunpack.c.l.b16 %v6330
    %v6365 = vunpack.c.l.b16 %v6331
    %v6366 = vunpack.c.l.b16 %v6332
    %v6367 = vunpack.c.l.b16 %v6333
    %v6368 = vunpack.c.l.b16 %v6334
    %v6369 = vunpack.c.l.b16 %v6335
    %v6370 = vunpack.c.l.b16 %v6336
    %v6371 = vunpack.c.l.b16 %v6337
    %v6372 = vunpack.c.l.b16 %v6338
    %v6373 = vunpack.c.l.b16 %v6339
    %v6374 = vunpack.c.l.b16 %v6340
    %v6375 = vunpack.c.l.b16 %v6341
    %v6376 = vunpack.c.l.b16 %v6342
    %v6377 = vunpack.c.l.b16 %v6343
    %v6378 = vunpack.c.l.b16 %v6344
    %v6379 = vunpack.c.l.b16 %v6345
    %v6380 = vunpack.c.h.b16 %v6329
    %v6381 = vunpack.c.h.b16 %v6330
    %v6382 = vunpack.c.h.b16 %v6331
    %v6383 = vunpack.c.h.b16 %v6332
    %v6384 = vunpack.c.h.b16 %v6333
    %v6385 = vunpack.c.h.b16 %v6334
    %v6386 = vunpack.c.h.b16 %v6335
    %v6387 = vunpack.c.h.b16 %v6336
    %v6388 = vunpack.c.h.b16 %v6337
    %v6389 = vunpack.c.h.b16 %v6338
    %v6390 = vunpack.c.h.b16 %v6339
    %v6391 = vunpack.c.h.b16 %v6340
    %v6392 = vunpack.c.h.b16 %v6341
    %v6393 = vunpack.c.h.b16 %v6342
    %v6394 = vunpack.c.h.b16 %v6343
    %v6395 = vunpack.c.h.b16 %v6344
    %v6396 = vunpack.c.h.b16 %v6345
    %v6397 = vpack.c.b16 %v6364, %v6363
    %v6398 = vpack.c.b16 %v6366, %v6365
    %v6399 = vpack.c.b16 %v6368, %v6367
    %v6400 = vpack.c.b16 %v6370, %v6369
    %v6401 = vpack.c.b16 %v6372, %v6371
    %v6402 = vpack.c.b16 %v6374, %v6373
    %v6403 = vpack.c.b16 %v6376, %v6375
    %v6404 = vpack.c.b16 %v6378, %v6377
    %v6405 = vpack.c.b16 %v6379, %v6379
    %v6406 = vpack.c.b16 %v6381, %v6380
    %v6407 = vpack.c.b16 %v6383, %v6382
    %v6408 = vpack.c.b16 %v6385, %v6384
    %v6409 = vpack.c.b16 %v6387, %v6386
    %v6410 = vpack.c.b16 %v6389, %v6388
    %v6411 = vpack.c.b16 %v6391, %v6390
    %v6412 = vpack.c.b16 %v6393, %v6392
    %v6413 = vpack.c.b16 %v6395, %v6394
    %v6414 = vpack.c.b16 %v6396, %v6396
    %6433 = vst [vmem:[#allocation8] sm:$0xff] %v6397
    %6434 = vst [vmem:[#allocation8 + $0x8] sm:$0xff] %v6398
    %6435 = vst [vmem:[#allocation8 + $0x10] sm:$0xff] %v6399
    %6436 = vst [vmem:[#allocation8 + $0x18] sm:$0xff] %v6400
    %6437 = vst [vmem:[#allocation8 + $0x20] sm:$0xff] %v6401
    %6438 = vst [vmem:[#allocation8 + $0x28] sm:$0xff] %v6402
    %6439 = vst [vmem:[#allocation8 + $0x30] sm:$0xff] %v6403
    %6440 = vst [vmem:[#allocation8 + $0x38] sm:$0xff] %v6404
    %6441 = vst [vmem:[#allocation8 + $0x40] sm:$0xf] %v6405
    %6442 = vst [vmem:[#allocation8 + $0x44] sm:$0xff] %v6406
    %6443 = vst [vmem:[#allocation8 + $0x4c] sm:$0xff] %v6407
    %6444 = vst [vmem:[#allocation8 + $0x54] sm:$0xff] %v6408
    %6445 = vst [vmem:[#allocation8 + $0x5c] sm:$0xff] %v6409
    %6446 = vst [vmem:[#allocation8 + $0x64] sm:$0xff] %v6410
    %6447 = vst [vmem:[#allocation8 + $0x6c] sm:$0xff] %v6411
    %6448 = vst [vmem:[#allocation8 + $0x74] sm:$0xff] %v6412
    %6449 = vst [vmem:[#allocation8 + $0x7c] sm:$0xff] %v6413
    %6450 = vst [vmem:[#allocation8 + $0x84] sm:$0xf] %v6414
    // Predicated region
    $region26: #{tpu_custom_call.1} parent=1 // pred_check
      _
    $region27: #{tpu_custom_call.1} parent=1 // pred_check_branch
      %6452 = sbr.rel (0) target = $region29
    $region28: #{tpu_custom_call.1} parent=1 // pred_region
      %s6454 = ssub.s32 2176, 2176
      %6455 = vsyncadd [#allocation4], %s6454
      %s6456 = sshll.u32 [#allocation8], 4
      %s6457 = int_to_ptr.vmem [resolvable:$true] %s6456
      %6462 = dma.vmem_to_hbm [thread:$0]  %s6457, 2176, %s3, [#allocation4], 1088, 1088, 68
    $region29: #{tpu_custom_call.1} parent=1 // pred_fallthru
      _
    // Predicated region
    $region30: #{tpu_custom_call.1} parent=1 // pred_check
      _
    $region31: #{tpu_custom_call.1} parent=1 // pred_check_branch
      %6464 = sbr.rel (0) target = $region33
    $region32: #{tpu_custom_call.1} parent=1 // pred_region
      %6465 = dma.done [#allocation4], 2176
    $region33: #{tpu_custom_call.1} parent=1 // pred_fallthru
      _
    %6466 = vsyncpa [#allocation3], 1
    %6467 = vsyncpa [#allocation6], 1
    %6468 = vsyncpa [#allocation4], 1

</llo_original>
